<compile_context>
chip_gen: v6e
topology: v6e:2x2x1
jax: 0.10.0
libtpu: 0.0.40
codegen_flags: <defaults>
</compile_context>

<pallas_src>
import math

import jax
import jax.numpy as jnp
from jax.experimental import pallas as pl
from jax.experimental.pallas import tpu as pltpu

# ----------------------------- static config -----------------------------
N_BATCH = 2
C0, C1 = 16, 32                 # in_channels = num_channels = (16, 32)
H0 = W0 = 16                    # branch 0 resolution
H1 = W1 = 8                     # branch 1 resolution (half)
P0 = N_BATCH * H0 * W0          # 512 pixels (branch 0)
P1 = N_BATCH * H1 * W1          # 128 pixels (branch 1)
PATCH = 8                       # m2mrf_patch_size
ENC_RATE = 4
FC_RATE = 16
BN_EPS = 1e-5
ENC = C0 // ENC_RATE            # 4 encode channels (both paths use in_channels=16)
ENC_PAD = 8                     # encode/decode channel dim zero-padded 4 -> 8 (exact)
FC_CH = (PATCH * PATCH * ENC) // FC_RATE   # 16
S2_UP = PATCH * 2               # 16 : fold kernel for scale 2
S2_DN = PATCH // 2              # 4  : fold kernel for scale 0.5
ROWS_PAD = 8                    # tiny block-row counts padded to one sublane tile


# ----------------------------- fused Pallas kernels -----------------------------
def _stage1_kernel(a0, w0, s0, b0, a1, w1, s1, b1, h0_o, h1_o):
    """conv3x3_1 (as matmul on im2col slab) + BN + ReLU for both branches."""
    t0 = jnp.dot(w0[...], a0[...], preferred_element_type=jnp.float32)
    h0_o[...] = jnp.maximum(t0 * s0[...] + b0[...], 0.0)
    t1 = jnp.dot(w1[...], a1[...], preferred_element_type=jnp.float32)
    h1_o[...] = jnp.maximum(t1 * s1[...] + b1[...], 0.0)


def _stage2_kernel(b0, w0, s0, sh0, x0,
                   b1, w1, s1, sh1, x1,
                   wc, sc, shc,
                   ew_up, eb_up, ew_dn, eb_dn,
                   yb0_o, yb1_o, eup_o, edn_o):
    """conv3x3_2 + BN + residual + ReLU (both branches), then the fuse-path
    1x1 convs: fuse01 conv+BN and both M2MRF encode convs -- all in VMEM."""
    t0 = jnp.dot(w0[...], b0[...], preferred_element_type=jnp.float32)
    yb0 = jnp.maximum(t0 * s0[...] + sh0[...] + x0[...], 0.0)          # (16, 512)
    yb0_o[...] = yb0
    t1 = jnp.dot(w1[...], b1[...], preferred_element_type=jnp.float32)
    yb1 = jnp.maximum(t1 * s1[...] + sh1[...] + x1[...], 0.0)          # (32, 128)
    yb1_o[...] = yb1
    # fuse01: conv1x1(32->16, no bias) + BN, then M2MRF-up encode (16->4, bias)
    u = jnp.dot(wc[...], yb1, preferred_element_type=jnp.float32) * sc[...] + shc[...]
    eup_o[...] = jnp.dot(ew_up[...], u, preferred_element_type=jnp.float32) + eb_up[...]
    # fuse10: M2MRF-down encode (16->4, bias) applied to branch-0 output
    edn_o[...] = jnp.dot(ew_dn[...], yb0, preferred_element_type=jnp.float32) + eb_dn[...]


def _stage3_kernel(uu, fwu, fbu, f1wu, f1bu,
                   ud, fwd_, fbd, f1wd, f1bd,
                   zu_o, zd_o):
    """M2MRF sample_fc -> sample_fc1 (Conv1d k=1 chains) for both paths; the
    (rows, 16) intermediate never leaves VMEM.  Weights are pre-permuted so the
    slab column order is (kh, kw, c) in / (ph, pw, c) out (exact permutation)."""
    vu = jnp.dot(uu[...], fwu[...], preferred_element_type=jnp.float32) + fbu[...]
    zu_o[...] = jnp.dot(vu, f1wu[...], preferred_element_type=jnp.float32) + f1bu[...]
    vd = jnp.dot(ud[...], fwd_[...], preferred_element_type=jnp.float32) + fbd[...]
    zd_o[...] = jnp.dot(vd, f1wd[...], preferred_element_type=jnp.float32) + f1bd[...]


def _stage4_kernel(fu, dwu, dbu, yb0,
                   fd, dwd, dbd, s10, sh10, yb1,
                   y0_o, y1_o):
    """M2MRF decode 1x1 (+BN on the down path) + fuse residual add + ReLU."""
    up = jnp.dot(dwu[...], fu[...], preferred_element_type=jnp.float32) + dbu[...]
    y0_o[...] = jnp.maximum(yb0[...] + up, 0.0)
    dn = jnp.dot(dwd[...], fd[...], preferred_element_type=jnp.float32) + dbd[...]
    dn = dn * s10[...] + sh10[...]
    y1_o[...] = jnp.maximum(dn + yb1[...], 0.0)


def _fused_call(kernel, inputs, out_shapes, input_output_aliases=None):
    """Single-step pallas_call; every block covers the full (tiny) array."""
    extra = {}
    if input_output_aliases:
        extra["input_output_aliases"] = input_output_aliases
    return pl.pallas_call(
        kernel,
        out_shape=tuple(jax.ShapeDtypeStruct(s, jnp.float32) for s in out_shapes),
        grid=(1,),
        in_specs=[pl.BlockSpec(tuple(a.shape), lambda i, _nd=a.ndim: (0,) * _nd)
                  for a in inputs],
        out_specs=tuple(pl.BlockSpec(tuple(s), lambda i, _nd=len(s): (0,) * _nd)
                        for s in out_shapes),
        compiler_params=pltpu.CompilerParams(dimension_semantics=("arbitrary",)),
        **extra,
    )(*inputs)


# ----------------------------- XLA glue (layout shuffles only) -----------------------------
def _im2col_nchw(x):
    """NCHW -> (C*9, N*H*W) im2col slab for 3x3/stride1/pad1 conv.
    Row order (c, kh, kw) matches W.reshape(Cout, Cin*9); column order (n, h, w)."""
    N, C, H, W = x.shape
    xp = jnp.pad(x, ((0, 0), (0, 0), (1, 1), (1, 1)))
    taps = [xp[:, :, kh:kh + H, kw:kw + W] for kh in range(3) for kw in range(3)]
    t = jnp.stack(taps, axis=2)                        # (N, C, 9, H, W)
    return jnp.transpose(t, (1, 2, 0, 3, 4)).reshape(C * 9, N * H * W)


def _im2col_cp(h_cp, N, H, W):
    """(C, N*H*W) channel-major slab -> (C*9, N*H*W) im2col slab (same conventions)."""
    C = h_cp.shape[0]
    x = h_cp.reshape(C, N, H, W)
    xp = jnp.pad(x, ((0, 0), (0, 0), (1, 1), (1, 1)))
    taps = [xp[:, :, kh:kh + H, kw:kw + W] for kh in range(3) for kw in range(3)]
    t = jnp.stack(taps, axis=1)                        # (C, 9, N, H, W)
    return t.reshape(C * 9, N * H * W)


def _nchw_to_cp(x):
    N, C, H, W = x.shape
    return jnp.transpose(x, (1, 0, 2, 3)).reshape(C, N * H * W)


def _cp_to_nchw(x_cp, N, H, W):
    C = x_cp.shape[0]
    return jnp.transpose(x_cp.reshape(C, N, H, W), (1, 0, 2, 3))


# ----------------------------- forward -----------------------------
def hrmodule_m2mrf_forward(x0, x1, p):
    N = x0.shape[0]
    # pad_input is a no-op for these sizes (H,W multiples of the 8x8 patch),
    # and the M2MRF up output already matches x[0]'s size (resize == identity).
    assert H1 % PATCH == 0 and W1 % PATCH == 0 and H0 % PATCH == 0 and W0 % PATCH == 0
    assert H1 * 2 == H0 and W1 * 2 == W0

    # ---- stage 1: conv3x3_1 + BN + ReLU for both branches ----
    a0 = _im2col_nchw(x0)                              # (144, 512)
    a1 = _im2col_nchw(x1)                              # (288, 128)
    h0, h1 = _fused_call(
        _stage1_kernel,
        [a0, p['b0_w1'], p['b0_bn1_s'], p['b0_bn1_b'],
         a1, p['b1_w1'], p['b1_bn1_s'], p['b1_bn1_b']],
        [(C0, P0), (C1, P1)])

    # ---- stage 2: conv3x3_2 + BN + residual + ReLU, fuse 1x1s, M2MRF encodes ----
    b0 = _im2col_cp(h0, N, H0, W0)                     # (144, 512)
    b1 = _im2col_cp(h1, N, H1, W1)                     # (288, 128)
    x0_cp = _nchw_to_cp(x0)                            # (16, 512)
    x1_cp = _nchw_to_cp(x1)                            # (32, 128)
    yb0, yb1, e_up, e_dn = _fused_call(
        _stage2_kernel,
        [b0, p['b0_w2'], p['b0_bn2_s'], p['b0_bn2_b'], x0_cp,
         b1, p['b1_w2'], p['b1_bn2_s'], p['b1_bn2_b'], x1_cp,
         p['f01_w'], p['f01_bn_s'], p['f01_bn_b'],
         p['up_enc_w'], p['up_enc_b'], p['dn_enc_w'], p['dn_enc_b']],
        [(C0, P0), (C1, P1), (ENC_PAD, P1), (ENC_PAD, P0)])

    # ---- glue: Unfold(kernel=8, stride=8), pure index shuffles on tiny tensors ----
    # up path (8x8 image == one block): rows=(n), cols=(kh, kw, c)
    u_up = jnp.transpose(e_up[:ENC].reshape(ENC, N, PATCH, PATCH),
                         (1, 2, 3, 0)).reshape(N, PATCH * PATCH * ENC)
    u_up = jnp.pad(u_up, ((0, ROWS_PAD - N), (0, 0)))                  # (8, 256)
    # down path (16x16 image, 2x2 blocks): rows=(n, bh, bw), cols=(kh, kw, c)
    e6 = e_dn[:ENC].reshape(ENC, N, 2, PATCH, 2, PATCH)                # (c,n,bh,kh,bw,kw)
    u_dn = jnp.transpose(e6, (1, 2, 4, 3, 5, 0)).reshape(N * 4, PATCH * PATCH * ENC)

    # ---- stage 3: fc -> fc1 for both M2MRF paths ----
    z_up, z_dn = _fused_call(
        _stage3_kernel,
        [u_up, p['up_fc_w'], p['up_fc_b'], p['up_fc1_w'], p['up_fc1_b'],
         u_dn, p['dn_fc_w'], p['dn_fc_b'], p['dn_fc1_w'], p['dn_fc1_b']],
        [(ROWS_PAD, S2_UP * S2_UP * ENC), (N * 4, S2_DN * S2_DN * ENC)])

    # ---- glue: Fold(kernel=stride=s2) + zero-pad the 4-ch decode contraction to 8 ----
    f_up = jnp.transpose(z_up[:N].reshape(N, S2_UP, S2_UP, ENC),
                         (3, 0, 1, 2)).reshape(ENC, P0)
    f_up = jnp.pad(f_up, ((0, ENC_PAD - ENC), (0, 0)))                 # (8, 512)
    z6 = z_dn.reshape(N, 2, 2, S2_DN, S2_DN, ENC)                      # (n,bh,bw,ph,pw,c)
    f_dn = jnp.transpose(z6, (5, 0, 1, 3, 2, 4)).reshape(ENC, P1)
    f_dn = jnp.pad(f_dn, ((0, ENC_PAD - ENC), (0, 0)))                 # (8, 128)

    # ---- stage 4: decode 1x1 (+BN on down path) + fuse residual add + ReLU ----
    y0_cp, y1_cp = _fused_call(
        _stage4_kernel,
        [f_up, p['up_dec_w'], p['up_dec_b'], yb0,
         f_dn, p['dn_dec_w'], p['dn_dec_b'], p['f10_bn_s'], p['f10_bn_b'], yb1],
        [(C0, P0), (C1, P1)],
        input_output_aliases={3: 0, 9: 1})   # y0 reuses yb0's buffer, y1 reuses yb1's

    return [_cp_to_nchw(y0_cp, N, H0, W0), _cp_to_nchw(y1_cp, N, H1, W1)]


# ----------------------------- deterministic parameter init -----------------------------
def _xavier(key, shape):
    """xavier_uniform_ for conv weights shaped (Cout, Cin, *kernel)."""
    receptive = 1
    for d in shape[2:]:
        receptive *= d
    fan_in = shape[1] * receptive
    fan_out = shape[0] * receptive
    bound = math.sqrt(6.0 / (fan_in + fan_out))
    return jax.random.uniform(key, shape, jnp.float32, -bound, bound)


def _bn_affine(c):
    # eval-mode BN with PyTorch defaults: scale = 1/sqrt(var+eps), shift = 0.
    scale = jnp.full((c, 1), 1.0 / math.sqrt(1.0 + BN_EPS), jnp.float32)
    shift = jnp.zeros((c, 1), jnp.float32)
    return scale, shift


def _init_basicblock(key, c):
    k1, k2 = jax.random.split(key)
    s1, b1 = _bn_affine(c)
    s2, b2 = _bn_affine(c)
    return dict(
        w1=_xavier(k1, (c, c, 3, 3)).reshape(c, c * 9),     # cols ordered (c, kh, kw)
        w2=_xavier(k2, (c, c, 3, 3)).reshape(c, c * 9),
        bn1_s=s1, bn1_b=b1, bn2_s=s2, bn2_b=b2,
    )


def _init_m2mrf(key, scale_factor, cin, cout, patch):
    """PyTorch-layout weights, then packed into kernel-ready layout (exact
    permutations / zero padding only -- no numeric change)."""
    enc = cin // ENC_RATE
    fc = int(patch * patch * enc / FC_RATE)
    s2 = int(patch * scale_factor)
    k = jax.random.split(key, 4)
    enc_w = _xavier(k[0], (enc, cin, 1, 1)).reshape(enc, cin)
    enc_b = jnp.zeros((enc,), jnp.float32)
    fc_w = _xavier(k[1], (fc, patch * patch * enc, 1)).reshape(fc, patch * patch * enc)
    fc_b = jnp.zeros((fc,), jnp.float32)
    fc1_w = _xavier(k[2], (s2 * s2 * enc, fc, 1)).reshape(s2 * s2 * enc, fc)
    fc1_b = jnp.zeros((s2 * s2 * enc,), jnp.float32)
    dec_w = _xavier(k[3], (cout, enc, 1, 1)).reshape(cout, enc)
    dec_b = jnp.zeros((cout,), jnp.float32)
    return dict(
        # encode: zero-pad output channels 4 -> 8 (rows 4..7 produce zeros)
        enc_w=jnp.zeros((ENC_PAD, cin), jnp.float32).at[:enc].set(enc_w),
        enc_b=jnp.zeros((ENC_PAD, 1), jnp.float32).at[:enc, 0].set(enc_b),
        # fc: (fc, enc*s*s) with cols (c,kh,kw)  ->  (s*s*enc, fc) with rows (kh,kw,c)
        fc_w=jnp.transpose(fc_w.reshape(fc, enc, patch, patch),
                           (2, 3, 1, 0)).reshape(patch * patch * enc, fc),
        fc_b=fc_b.reshape(1, fc),
        # fc1: (enc*s2*s2, fc) with rows (c,ph,pw) -> (fc, s2*s2*enc) with cols (ph,pw,c)
        fc1_w=jnp.transpose(fc1_w.reshape(enc, s2, s2, fc),
                            (3, 1, 2, 0)).reshape(fc, s2 * s2 * enc),
        fc1_b=jnp.transpose(fc1_b.reshape(enc, s2, s2), (1, 2, 0)).reshape(1, s2 * s2 * enc),
        # decode: zero-pad the contraction dim 4 -> 8
        dec_w=jnp.zeros((cout, ENC_PAD), jnp.float32).at[:, :enc].set(dec_w),
        dec_b=dec_b.reshape(cout, 1),
    )


def init_hrmodule_params(key):
    k = jax.random.split(key, 5)
    bb0 = _init_basicblock(k[0], C0)
    bb1 = _init_basicblock(k[1], C1)
    f01_w = _xavier(k[2], (C0, C1, 1, 1)).reshape(C0, C1)
    f01_s, f01_b = _bn_affine(C0)
    up = _init_m2mrf(k[3], 2.0, C0, C0, PATCH)
    dn = _init_m2mrf(k[4], 0.5, C0, C1, PATCH)
    f10_s, f10_b = _bn_affine(C1)
    return dict(
        b0_w1=bb0['w1'], b0_w2=bb0['w2'],
        b0_bn1_s=bb0['bn1_s'], b0_bn1_b=bb0['bn1_b'],
        b0_bn2_s=bb0['bn2_s'], b0_bn2_b=bb0['bn2_b'],
        b1_w1=bb1['w1'], b1_w2=bb1['w2'],
        b1_bn1_s=bb1['bn1_s'], b1_bn1_b=bb1['bn1_b'],
        b1_bn2_s=bb1['bn2_s'], b1_bn2_b=bb1['bn2_b'],
        f01_w=f01_w, f01_bn_s=f01_s, f01_bn_b=f01_b,
        up_enc_w=up['enc_w'], up_enc_b=up['enc_b'],
        up_fc_w=up['fc_w'], up_fc_b=up['fc_b'],
        up_fc1_w=up['fc1_w'], up_fc1_b=up['fc1_b'],
        up_dec_w=up['dec_w'], up_dec_b=up['dec_b'],
        dn_enc_w=dn['enc_w'], dn_enc_b=dn['enc_b'],
        dn_fc_w=dn['fc_w'], dn_fc_b=dn['fc_b'],
        dn_fc1_w=dn['fc1_w'], dn_fc1_b=dn['fc1_b'],
        dn_dec_w=dn['dec_w'], dn_dec_b=dn['dec_b'],
        f10_bn_s=f10_s, f10_bn_b=f10_b,
    )


# ----------------------------- main -----------------------------
if __name__ == "__main__":
    key = jax.random.PRNGKey(0)
    kp, kx0, kx1 = jax.random.split(key, 3)

    # NCHW inputs: branch0 at 16x16x16, branch1 at half resolution 8x8x32
    x0 = jax.random.normal(kx0, (N_BATCH, C0, H0, W0), jnp.float32)
    x1 = jax.random.normal(kx1, (N_BATCH, C1, H1, W1), jnp.float32)

    params = init_hrmodule_params(kp)
    fwd = jax.jit(hrmodule_m2mrf_forward)
    outs = fwd(x0, x1, params)
    outs = jax.block_until_ready(outs)

    assert outs[0].shape == (N_BATCH, C0, H0, W0)
    assert outs[1].shape == (N_BATCH, C1, H1, W1)
    assert bool(jnp.all(jnp.isfinite(outs[0]))) and bool(jnp.all(jnp.isfinite(outs[1])))
    print("KERNEL_OK")
</pallas_src>

<mosaic_0001>
module attributes {stable_mosaic.version = 11 : i64} {
  func.func @_stage1_kernel(%arg0: i32, %arg1: memref<144x512xf32, #tpu.memory_space<vmem>>, %arg2: memref<16x144xf32, #tpu.memory_space<vmem>>, %arg3: memref<16x1xf32, #tpu.memory_space<vmem>>, %arg4: memref<16x1xf32, #tpu.memory_space<vmem>>, %arg5: memref<288x128xf32, #tpu.memory_space<vmem>>, %arg6: memref<32x288xf32, #tpu.memory_space<vmem>>, %arg7: memref<32x1xf32, #tpu.memory_space<vmem>>, %arg8: memref<32x1xf32, #tpu.memory_space<vmem>>, %arg9: memref<16x512xf32, #tpu.memory_space<vmem>>, %arg10: memref<32x128xf32, #tpu.memory_space<vmem>>) attributes {dimension_semantics = [#tpu.dimension_semantics<arbitrary>], iteration_bounds = array<i64: 1>, scalar_prefetch = 0 : i64, scratch_operands = 0 : i64, tpu.core_type = #tpu.core_type<tc>, window_params = [{pipeline_mode = #tpu.pipeline_mode<synchronous>, transform_indices = @transform_0, window_bounds = array<i64: 144, 512>}, {pipeline_mode = #tpu.pipeline_mode<synchronous>, transform_indices = @transform_1, window_bounds = array<i64: 16, 144>}, {pipeline_mode = #tpu.pipeline_mode<synchronous>, transform_indices = @transform_2, window_bounds = array<i64: 16, 1>}, {pipeline_mode = #tpu.pipeline_mode<synchronous>, transform_indices = @transform_3, window_bounds = array<i64: 16, 1>}, {pipeline_mode = #tpu.pipeline_mode<synchronous>, transform_indices = @transform_4, window_bounds = array<i64: 288, 128>}, {pipeline_mode = #tpu.pipeline_mode<synchronous>, transform_indices = @transform_5, window_bounds = array<i64: 32, 288>}, {pipeline_mode = #tpu.pipeline_mode<synchronous>, transform_indices = @transform_6, window_bounds = array<i64: 32, 1>}, {pipeline_mode = #tpu.pipeline_mode<synchronous>, transform_indices = @transform_7, window_bounds = array<i64: 32, 1>}, {pipeline_mode = #tpu.pipeline_mode<synchronous>, transform_indices = @transform_8, window_bounds = array<i64: 16, 512>}, {pipeline_mode = #tpu.pipeline_mode<synchronous>, transform_indices = @transform_9, window_bounds = array<i64: 32, 128>}]} {
    %c0 = arith.constant 0 : index
    %c0_0 = arith.constant 0 : index
    %0 = vector.load %arg2[%c0, %c0_0] : memref<16x144xf32, #tpu.memory_space<vmem>>, vector<16x144xf32>
    %c0_1 = arith.constant 0 : index
    %c0_2 = arith.constant 0 : index
    %1 = vector.load %arg1[%c0_1, %c0_2] : memref<144x512xf32, #tpu.memory_space<vmem>>, vector<144x512xf32>
    %cst = arith.constant dense<0.000000e+00> : vector<16x512xf32>
    %2 = tpu.matmul %0, %1, %cst {dimension_numbers = #tpu.dot_dimension_numbers<[1], [0], [0], [1], [0, 0, 1, 1], [], []>} : vector<16x144xf32>, vector<144x512xf32>, vector<16x512xf32> -> vector<16x512xf32>
    %c0_3 = arith.constant 0 : index
    %c0_4 = arith.constant 0 : index
    %3 = vector.load %arg3[%c0_3, %c0_4] : memref<16x1xf32, #tpu.memory_space<vmem>>, vector<16x1xf32>
    %4 = vector.broadcast %3 : vector<16x1xf32> to vector<16x512xf32>
    %5 = arith.mulf %2, %4 : vector<16x512xf32>
    %c0_5 = arith.constant 0 : index
    %c0_6 = arith.constant 0 : index
    %6 = vector.load %arg4[%c0_5, %c0_6] : memref<16x1xf32, #tpu.memory_space<vmem>>, vector<16x1xf32>
    %7 = vector.broadcast %6 : vector<16x1xf32> to vector<16x512xf32>
    %8 = arith.addf %5, %7 : vector<16x512xf32>
    %cst_7 = arith.constant 0.000000e+00 : f32
    %9 = vector.broadcast %cst_7 : f32 to vector<16x512xf32>
    %10 = arith.maximumf %8, %9 : vector<16x512xf32>
    %c0_8 = arith.constant 0 : index
    %c0_9 = arith.constant 0 : index
    %11 = vector.load %arg9[%c0_8, %c0_9] : memref<16x512xf32, #tpu.memory_space<vmem>>, vector<16x512xf32>
    tpu.vector_store %arg9[%c0_8, %c0_9], %10 {strides = array<i32>} : memref<16x512xf32, #tpu.memory_space<vmem>>, vector<16x512xf32>,
    %c0_10 = arith.constant 0 : index
    %c0_11 = arith.constant 0 : index
    %12 = vector.load %arg6[%c0_10, %c0_11] : memref<32x288xf32, #tpu.memory_space<vmem>>, vector<32x288xf32>
    %c0_12 = arith.constant 0 : index
    %c0_13 = arith.constant 0 : index
    %13 = vector.load %arg5[%c0_12, %c0_13] : memref<288x128xf32, #tpu.memory_space<vmem>>, vector<288x128xf32>
    %cst_14 = arith.constant dense<0.000000e+00> : vector<32x128xf32>
    %14 = tpu.matmul %12, %13, %cst_14 {dimension_numbers = #tpu.dot_dimension_numbers<[1], [0], [0], [1], [0, 0, 1, 1], [], []>} : vector<32x288xf32>, vector<288x128xf32>, vector<32x128xf32> -> vector<32x128xf32>
    %c0_15 = arith.constant 0 : index
    %c0_16 = arith.constant 0 : index
    %15 = vector.load %arg7[%c0_15, %c0_16] : memref<32x1xf32, #tpu.memory_space<vmem>>, vector<32x1xf32>
    %16 = vector.broadcast %15 : vector<32x1xf32> to vector<32x128xf32>
    %17 = arith.mulf %14, %16 : vector<32x128xf32>
    %c0_17 = arith.constant 0 : index
    %c0_18 = arith.constant 0 : index
    %18 = vector.load %arg8[%c0_17, %c0_18] : memref<32x1xf32, #tpu.memory_space<vmem>>, vector<32x1xf32>
    %19 = vector.broadcast %18 : vector<32x1xf32> to vector<32x128xf32>
    %20 = arith.addf %17, %19 : vector<32x128xf32>
    %cst_19 = arith.constant 0.000000e+00 : f32
    %21 = vector.broadcast %cst_19 : f32 to vector<32x128xf32>
    %22 = arith.maximumf %20, %21 : vector<32x128xf32>
    %c0_20 = arith.constant 0 : index
    %c0_21 = arith.constant 0 : index
    %23 = vector.load %arg10[%c0_20, %c0_21] : memref<32x128xf32, #tpu.memory_space<vmem>>, vector<32x128xf32>
    tpu.vector_store %arg10[%c0_20, %c0_21], %22 {strides = array<i32>} : memref<32x128xf32, #tpu.memory_space<vmem>>, vector<32x128xf32>,
    return
  }
  func.func @transform_0(%arg0: i32) -> (i32, i32) {
    %c0_i32 = arith.constant 0 : i32
    %c0_i32_0 = arith.constant 0 : i32
    %c0_i32_1 = arith.constant 0 : i32
    return %c0_i32, %c0_i32_0 : i32, i32
  }
  func.func @transform_1(%arg0: i32) -> (i32, i32) {
    %c0_i32 = arith.constant 0 : i32
    %c0_i32_0 = arith.constant 0 : i32
    %c0_i32_1 = arith.constant 0 : i32
    return %c0_i32, %c0_i32_0 : i32, i32
  }
  func.func @transform_2(%arg0: i32) -> (i32, i32) {
    %c0_i32 = arith.constant 0 : i32
    %c0_i32_0 = arith.constant 0 : i32
    %c0_i32_1 = arith.constant 0 : i32
    return %c0_i32, %c0_i32_0 : i32, i32
  }
  func.func @transform_3(%arg0: i32) -> (i32, i32) {
    %c0_i32 = arith.constant 0 : i32
    %c0_i32_0 = arith.constant 0 : i32
    %c0_i32_1 = arith.constant 0 : i32
    return %c0_i32, %c0_i32_0 : i32, i32
  }
  func.func @transform_4(%arg0: i32) -> (i32, i32) {
    %c0_i32 = arith.constant 0 : i32
    %c0_i32_0 = arith.constant 0 : i32
    %c0_i32_1 = arith.constant 0 : i32
    return %c0_i32, %c0_i32_0 : i32, i32
  }
  func.func @transform_5(%arg0: i32) -> (i32, i32) {
    %c0_i32 = arith.constant 0 : i32
    %c0_i32_0 = arith.constant 0 : i32
    %c0_i32_1 = arith.constant 0 : i32
    return %c0_i32, %c0_i32_0 : i32, i32
  }
  func.func @transform_6(%arg0: i32) -> (i32, i32) {
    %c0_i32 = arith.constant 0 : i32
    %c0_i32_0 = arith.constant 0 : i32
    %c0_i32_1 = arith.constant 0 : i32
    return %c0_i32, %c0_i32_0 : i32, i32
  }
  func.func @transform_7(%arg0: i32) -> (i32, i32) {
    %c0_i32 = arith.constant 0 : i32
    %c0_i32_0 = arith.constant 0 : i32
    %c0_i32_1 = arith.constant 0 : i32
    return %c0_i32, %c0_i32_0 : i32, i32
  }
  func.func @transform_8(%arg0: i32) -> (i32, i32) {
    %c0_i32 = arith.constant 0 : i32
    %c0_i32_0 = arith.constant 0 : i32
    %c0_i32_1 = arith.constant 0 : i32
    return %c0_i32, %c0_i32_0 : i32, i32
  }
  func.func @transform_9(%arg0: i32) -> (i32, i32) {
    %c0_i32 = arith.constant 0 : i32
    %c0_i32_0 = arith.constant 0 : i32
    %c0_i32_1 = arith.constant 0 : i32
    return %c0_i32, %c0_i32_0 : i32, i32
  }
}

module attributes {stable_mosaic.version = 11 : i64} {
  func.func @_stage2_kernel(%arg0: i32, %arg1: memref<144x512xf32, #tpu.memory_space<vmem>>, %arg2: memref<16x144xf32, #tpu.memory_space<vmem>>, %arg3: memref<16x1xf32, #tpu.memory_space<vmem>>, %arg4: memref<16x1xf32, #tpu.memory_space<vmem>>, %arg5: memref<16x512xf32, #tpu.memory_space<vmem>>, %arg6: memref<288x128xf32, #tpu.memory_space<vmem>>, %arg7: memref<32x288xf32, #tpu.memory_space<vmem>>, %arg8: memref<32x1xf32, #tpu.memory_space<vmem>>, %arg9: memref<32x1xf32, #tpu.memory_space<vmem>>, %arg10: memref<32x128xf32, #tpu.memory_space<vmem>>, %arg11: memref<16x32xf32, #tpu.memory_space<vmem>>, %arg12: memref<16x1xf32, #tpu.memory_space<vmem>>, %arg13: memref<16x1xf32, #tpu.memory_space<vmem>>, %arg14: memref<8x16xf32, #tpu.memory_space<vmem>>, %arg15: memref<8x1xf32, #tpu.memory_space<vmem>>, %arg16: memref<8x16xf32, #tpu.memory_space<vmem>>, %arg17: memref<8x1xf32, #tpu.memory_space<vmem>>, %arg18: memref<16x512xf32, #tpu.memory_space<vmem>>, %arg19: memref<32x128xf32, #tpu.memory_space<vmem>>, %arg20: memref<8x128xf32, #tpu.memory_space<vmem>>, %arg21: memref<8x512xf32, #tpu.memory_space<vmem>>) attributes {dimension_semantics = [#tpu.dimension_semantics<arbitrary>], iteration_bounds = array<i64: 1>, scalar_prefetch = 0 : i64, scratch_operands = 0 : i64, tpu.core_type = #tpu.core_type<tc>, window_params = [{pipeline_mode = #tpu.pipeline_mode<synchronous>, transform_indices = @transform_0, window_bounds = array<i64: 144, 512>}, {pipeline_mode = #tpu.pipeline_mode<synchronous>, transform_indices = @transform_1, window_bounds = array<i64: 16, 144>}, {pipeline_mode = #tpu.pipeline_mode<synchronous>, transform_indices = @transform_2, window_bounds = array<i64: 16, 1>}, {pipeline_mode = #tpu.pipeline_mode<synchronous>, transform_indices = @transform_3, window_bounds = array<i64: 16, 1>}, {pipeline_mode = #tpu.pipeline_mode<synchronous>, transform_indices = @transform_4, window_bounds = array<i64: 16, 512>}, {pipeline_mode = #tpu.pipeline_mode<synchronous>, transform_indices = @transform_5, window_bounds = array<i64: 288, 128>}, {pipeline_mode = #tpu.pipeline_mode<synchronous>, transform_indices = @transform_6, window_bounds = array<i64: 32, 288>}, {pipeline_mode = #tpu.pipeline_mode<synchronous>, transform_indices = @transform_7, window_bounds = array<i64: 32, 1>}, {pipeline_mode = #tpu.pipeline_mode<synchronous>, transform_indices = @transform_8, window_bounds = array<i64: 32, 1>}, {pipeline_mode = #tpu.pipeline_mode<synchronous>, transform_indices = @transform_9, window_bounds = array<i64: 32, 128>}, {pipeline_mode = #tpu.pipeline_mode<synchronous>, transform_indices = @transform_10, window_bounds = array<i64: 16, 32>}, {pipeline_mode = #tpu.pipeline_mode<synchronous>, transform_indices = @transform_11, window_bounds = array<i64: 16, 1>}, {pipeline_mode = #tpu.pipeline_mode<synchronous>, transform_indices = @transform_12, window_bounds = array<i64: 16, 1>}, {pipeline_mode = #tpu.pipeline_mode<synchronous>, transform_indices = @transform_13, window_bounds = array<i64: 8, 16>}, {pipeline_mode = #tpu.pipeline_mode<synchronous>, transform_indices = @transform_14, window_bounds = array<i64: 8, 1>}, {pipeline_mode = #tpu.pipeline_mode<synchronous>, transform_indices = @transform_15, window_bounds = array<i64: 8, 16>}, {pipeline_mode = #tpu.pipeline_mode<synchronous>, transform_indices = @transform_16, window_bounds = array<i64: 8, 1>}, {pipeline_mode = #tpu.pipeline_mode<synchronous>, transform_indices = @transform_17, window_bounds = array<i64: 16, 512>}, {pipeline_mode = #tpu.pipeline_mode<synchronous>, transform_indices = @transform_18, window_bounds = array<i64: 32, 128>}, {pipeline_mode = #tpu.pipeline_mode<synchronous>, transform_indices = @transform_19, window_bounds = array<i64: 8, 128>}, {pipeline_mode = #tpu.pipeline_mode<synchronous>, transform_indices = @transform_20, window_bounds = array<i64: 8, 512>}]} {
    %c0 = arith.constant 0 : index
    %c0_0 = arith.constant 0 : index
    %0 = vector.load %arg2[%c0, %c0_0] : memref<16x144xf32, #tpu.memory_space<vmem>>, vector<16x144xf32>
    %c0_1 = arith.constant 0 : index
    %c0_2 = arith.constant 0 : index
    %1 = vector.load %arg1[%c0_1, %c0_2] : memref<144x512xf32, #tpu.memory_space<vmem>>, vector<144x512xf32>
    %cst = arith.constant dense<0.000000e+00> : vector<16x512xf32>
    %2 = tpu.matmul %0, %1, %cst {dimension_numbers = #tpu.dot_dimension_numbers<[1], [0], [0], [1], [0, 0, 1, 1], [], []>} : vector<16x144xf32>, vector<144x512xf32>, vector<16x512xf32> -> vector<16x512xf32>
    %c0_3 = arith.constant 0 : index
    %c0_4 = arith.constant 0 : index
    %3 = vector.load %arg3[%c0_3, %c0_4] : memref<16x1xf32, #tpu.memory_space<vmem>>, vector<16x1xf32>
    %4 = vector.broadcast %3 : vector<16x1xf32> to vector<16x512xf32>
    %5 = arith.mulf %2, %4 : vector<16x512xf32>
    %c0_5 = arith.constant 0 : index
    %c0_6 = arith.constant 0 : index
    %6 = vector.load %arg4[%c0_5, %c0_6] : memref<16x1xf32, #tpu.memory_space<vmem>>, vector<16x1xf32>
    %7 = vector.broadcast %6 : vector<16x1xf32> to vector<16x512xf32>
    %8 = arith.addf %5, %7 : vector<16x512xf32>
    %c0_7 = arith.constant 0 : index
    %c0_8 = arith.constant 0 : index
    %9 = vector.load %arg5[%c0_7, %c0_8] : memref<16x512xf32, #tpu.memory_space<vmem>>, vector<16x512xf32>
    %10 = arith.addf %8, %9 : vector<16x512xf32>
    %cst_9 = arith.constant 0.000000e+00 : f32
    %11 = vector.broadcast %cst_9 : f32 to vector<16x512xf32>
    %12 = arith.maximumf %10, %11 : vector<16x512xf32>
    %c0_10 = arith.constant 0 : index
    %c0_11 = arith.constant 0 : index
    %13 = vector.load %arg18[%c0_10, %c0_11] : memref<16x512xf32, #tpu.memory_space<vmem>>, vector<16x512xf32>
    tpu.vector_store %arg18[%c0_10, %c0_11], %12 {strides = array<i32>} : memref<16x512xf32, #tpu.memory_space<vmem>>, vector<16x512xf32>,
    %c0_12 = arith.constant 0 : index
    %c0_13 = arith.constant 0 : index
    %14 = vector.load %arg7[%c0_12, %c0_13] : memref<32x288xf32, #tpu.memory_space<vmem>>, vector<32x288xf32>
    %c0_14 = arith.constant 0 : index
    %c0_15 = arith.constant 0 : index
    %15 = vector.load %arg6[%c0_14, %c0_15] : memref<288x128xf32, #tpu.memory_space<vmem>>, vector<288x128xf32>
    %cst_16 = arith.constant dense<0.000000e+00> : vector<32x128xf32>
    %16 = tpu.matmul %14, %15, %cst_16 {dimension_numbers = #tpu.dot_dimension_numbers<[1], [0], [0], [1], [0, 0, 1, 1], [], []>} : vector<32x288xf32>, vector<288x128xf32>, vector<32x128xf32> -> vector<32x128xf32>
    %c0_17 = arith.constant 0 : index
    %c0_18 = arith.constant 0 : index
    %17 = vector.load %arg8[%c0_17, %c0_18] : memref<32x1xf32, #tpu.memory_space<vmem>>, vector<32x1xf32>
    %18 = vector.broadcast %17 : vector<32x1xf32> to vector<32x128xf32>
    %19 = arith.mulf %16, %18 : vector<32x128xf32>
    %c0_19 = arith.constant 0 : index
    %c0_20 = arith.constant 0 : index
    %20 = vector.load %arg9[%c0_19, %c0_20] : memref<32x1xf32, #tpu.memory_space<vmem>>, vector<32x1xf32>
    %21 = vector.broadcast %20 : vector<32x1xf32> to vector<32x128xf32>
    %22 = arith.addf %19, %21 : vector<32x128xf32>
    %c0_21 = arith.constant 0 : index
    %c0_22 = arith.constant 0 : index
    %23 = vector.load %arg10[%c0_21, %c0_22] : memref<32x128xf32, #tpu.memory_space<vmem>>, vector<32x128xf32>
    %24 = arith.addf %22, %23 : vector<32x128xf32>
    %cst_23 = arith.constant 0.000000e+00 : f32
    %25 = vector.broadcast %cst_23 : f32 to vector<32x128xf32>
    %26 = arith.maximumf %24, %25 : vector<32x128xf32>
    %c0_24 = arith.constant 0 : index
    %c0_25 = arith.constant 0 : index
    %27 = vector.load %arg19[%c0_24, %c0_25] : memref<32x128xf32, #tpu.memory_space<vmem>>, vector<32x128xf32>
    tpu.vector_store %arg19[%c0_24, %c0_25], %26 {strides = array<i32>} : memref<32x128xf32, #tpu.memory_space<vmem>>, vector<32x128xf32>,
    %c0_26 = arith.constant 0 : index
    %c0_27 = arith.constant 0 : index
    %28 = vector.load %arg11[%c0_26, %c0_27] : memref<16x32xf32, #tpu.memory_space<vmem>>, vector<16x32xf32>
    %cst_28 = arith.constant dense<0.000000e+00> : vector<16x128xf32>
    %29 = tpu.matmul %28, %26, %cst_28 {dimension_numbers = #tpu.dot_dimension_numbers<[1], [0], [0], [1], [0, 0, 1, 1], [], []>} : vector<16x32xf32>, vector<32x128xf32>, vector<16x128xf32> -> vector<16x128xf32>
    %c0_29 = arith.constant 0 : index
    %c0_30 = arith.constant 0 : index
    %30 = vector.load %arg12[%c0_29, %c0_30] : memref<16x1xf32, #tpu.memory_space<vmem>>, vector<16x1xf32>
    %31 = vector.broadcast %30 : vector<16x1xf32> to vector<16x128xf32>
    %32 = arith.mulf %29, %31 : vector<16x128xf32>
    %c0_31 = arith.constant 0 : index
    %c0_32 = arith.constant 0 : index
    %33 = vector.load %arg13[%c0_31, %c0_32] : memref<16x1xf32, #tpu.memory_space<vmem>>, vector<16x1xf32>
    %34 = vector.broadcast %33 : vector<16x1xf32> to vector<16x128xf32>
    %35 = arith.addf %32, %34 : vector<16x128xf32>
    %c0_33 = arith.constant 0 : index
    %c0_34 = arith.constant 0 : index
    %36 = vector.load %arg14[%c0_33, %c0_34] : memref<8x16xf32, #tpu.memory_space<vmem>>, vector<8x16xf32>
    %cst_35 = arith.constant dense<0.000000e+00> : vector<8x128xf32>
    %37 = tpu.matmul %36, %35, %cst_35 {dimension_numbers = #tpu.dot_dimension_numbers<[1], [0], [0], [1], [0, 0, 1, 1], [], []>} : vector<8x16xf32>, vector<16x128xf32>, vector<8x128xf32> -> vector<8x128xf32>
    %c0_36 = arith.constant 0 : index
    %c0_37 = arith.constant 0 : index
    %38 = vector.load %arg15[%c0_36, %c0_37] : memref<8x1xf32, #tpu.memory_space<vmem>>, vector<8x1xf32>
    %39 = vector.broadcast %38 : vector<8x1xf32> to vector<8x128xf32>
    %40 = arith.addf %37, %39 : vector<8x128xf32>
    %c0_38 = arith.constant 0 : index
    %c0_39 = arith.constant 0 : index
    %41 = vector.load %arg20[%c0_38, %c0_39] : memref<8x128xf32, #tpu.memory_space<vmem>>, vector<8x128xf32>
    tpu.vector_store %arg20[%c0_38, %c0_39], %40 {strides = array<i32>} : memref<8x128xf32, #tpu.memory_space<vmem>>, vector<8x128xf32>,
    %c0_40 = arith.constant 0 : index
    %c0_41 = arith.constant 0 : index
    %42 = vector.load %arg16[%c0_40, %c0_41] : memref<8x16xf32, #tpu.memory_space<vmem>>, vector<8x16xf32>
    %cst_42 = arith.constant dense<0.000000e+00> : vector<8x512xf32>
    %43 = tpu.matmul %42, %12, %cst_42 {dimension_numbers = #tpu.dot_dimension_numbers<[1], [0], [0], [1], [0, 0, 1, 1], [], []>} : vector<8x16xf32>, vector<16x512xf32>, vector<8x512xf32> -> vector<8x512xf32>
    %c0_43 = arith.constant 0 : index
    %c0_44 = arith.constant 0 : index
    %44 = vector.load %arg17[%c0_43, %c0_44] : memref<8x1xf32, #tpu.memory_space<vmem>>, vector<8x1xf32>
    %45 = vector.broadcast %44 : vector<8x1xf32> to vector<8x512xf32>
    %46 = arith.addf %43, %45 : vector<8x512xf32>
    %c0_45 = arith.constant 0 : index
    %c0_46 = arith.constant 0 : index
    %47 = vector.load %arg21[%c0_45, %c0_46] : memref<8x512xf32, #tpu.memory_space<vmem>>, vector<8x512xf32>
    tpu.vector_store %arg21[%c0_45, %c0_46], %46 {strides = array<i32>} : memref<8x512xf32, #tpu.memory_space<vmem>>, vector<8x512xf32>,
    return
  }
  func.func @transform_0(%arg0: i32) -> (i32, i32) {
    %c0_i32 = arith.constant 0 : i32
    %c0_i32_0 = arith.constant 0 : i32
    %c0_i32_1 = arith.constant 0 : i32
    return %c0_i32, %c0_i32_0 : i32, i32
  }
  func.func @transform_1(%arg0: i32) -> (i32, i32) {
    %c0_i32 = arith.constant 0 : i32
    %c0_i32_0 = arith.constant 0 : i32
    %c0_i32_1 = arith.constant 0 : i32
    return %c0_i32, %c0_i32_0 : i32, i32
  }
  func.func @transform_2(%arg0: i32) -> (i32, i32) {
    %c0_i32 = arith.constant 0 : i32
    %c0_i32_0 = arith.constant 0 : i32
    %c0_i32_1 = arith.constant 0 : i32
    return %c0_i32, %c0_i32_0 : i32, i32
  }
  func.func @transform_3(%arg0: i32) -> (i32, i32) {
    %c0_i32 = arith.constant 0 : i32
    %c0_i32_0 = arith.constant 0 : i32
    %c0_i32_1 = arith.constant 0 : i32
    return %c0_i32, %c0_i32_0 : i32, i32
  }
  func.func @transform_4(%arg0: i32) -> (i32, i32) {
    %c0_i32 = arith.constant 0 : i32
    %c0_i32_0 = arith.constant 0 : i32
    %c0_i32_1 = arith.constant 0 : i32
    return %c0_i32, %c0_i32_0 : i32, i32
  }
  func.func @transform_5(%arg0: i32) -> (i32, i32) {
    %c0_i32 = arith.constant 0 : i32
    %c0_i32_0 = arith.constant 0 : i32
    %c0_i32_1 = arith.constant 0 : i32
    return %c0_i32, %c0_i32_0 : i32, i32
  }
  func.func @transform_6(%arg0: i32) -> (i32, i32) {
    %c0_i32 = arith.constant 0 : i32
    %c0_i32_0 = arith.constant 0 : i32
    %c0_i32_1 = arith.constant 0 : i32
    return %c0_i32, %c0_i32_0 : i32, i32
  }
  func.func @transform_7(%arg0: i32) -> (i32, i32) {
    %c0_i32 = arith.constant 0 : i32
    %c0_i32_0 = arith.constant 0 : i32
    %c0_i32_1 = arith.constant 0 : i32
    return %c0_i32, %c0_i32_0 : i32, i32
  }
  func.func @transform_8(%arg0: i32) -> (i32, i32) {
    %c0_i32 = arith.constant 0 : i32
    %c0_i32_0 = arith.constant 0 : i32
    %c0_i32_1 = arith.constant 0 : i32
    return %c0_i32, %c0_i32_0 : i32, i32
  }
  func.func @transform_9(%arg0: i32) -> (i32, i32) {
    %c0_i32 = arith.constant 0 : i32
    %c0_i32_0 = arith.constant 0 : i32
    %c0_i32_1 = arith.constant 0 : i32
    return %c0_i32, %c0_i32_0 : i32, i32
  }
  func.func @transform_10(%arg0: i32) -> (i32, i32) {
    %c0_i32 = arith.constant 0 : i32
    %c0_i32_0 = arith.constant 0 : i32
    %c0_i32_1 = arith.constant 0 : i32
    return %c0_i32, %c0_i32_0 : i32, i32
  }
  func.func @transform_11(%arg0: i32) -> (i32, i32) {
    %c0_i32 = arith.constant 0 : i32
    %c0_i32_0 = arith.constant 0 : i32
    %c0_i32_1 = arith.constant 0 : i32
    return %c0_i32, %c0_i32_0 : i32, i32
  }
  func.func @transform_12(%arg0: i32) -> (i32, i32) {
    %c0_i32 = arith.constant 0 : i32
    %c0_i32_0 = arith.constant 0 : i32
    %c0_i32_1 = arith.constant 0 : i32
    return %c0_i32, %c0_i32_0 : i32, i32
  }
  func.func @transform_13(%arg0: i32) -> (i32, i32) {
    %c0_i32 = arith.constant 0 : i32
    %c0_i32_0 = arith.constant 0 : i32
    %c0_i32_1 = arith.constant 0 : i32
    return %c0_i32, %c0_i32_0 : i32, i32
  }
  func.func @transform_14(%arg0: i32) -> (i32, i32) {
    %c0_i32 = arith.constant 0 : i32
    %c0_i32_0 = arith.constant 0 : i32
    %c0_i32_1 = arith.constant 0 : i32
    return %c0_i32, %c0_i32_0 : i32, i32
  }
  func.func @transform_15(%arg0: i32) -> (i32, i32) {
    %c0_i32 = arith.constant 0 : i32
    %c0_i32_0 = arith.constant 0 : i32
    %c0_i32_1 = arith.constant 0 : i32
    return %c0_i32, %c0_i32_0 : i32, i32
  }
  func.func @transform_16(%arg0: i32) -> (i32, i32) {
    %c0_i32 = arith.constant 0 : i32
    %c0_i32_0 = arith.constant 0 : i32
    %c0_i32_1 = arith.constant 0 : i32
    return %c0_i32, %c0_i32_0 : i32, i32
  }
  func.func @transform_17(%arg0: i32) -> (i32, i32) {
    %c0_i32 = arith.constant 0 : i32
    %c0_i32_0 = arith.constant 0 : i32
    %c0_i32_1 = arith.constant 0 : i32
    return %c0_i32, %c0_i32_0 : i32, i32
  }
  func.func @transform_18(%arg0: i32) -> (i32, i32) {
    %c0_i32 = arith.constant 0 : i32
    %c0_i32_0 = arith.constant 0 : i32
    %c0_i32_1 = arith.constant 0 : i32
    return %c0_i32, %c0_i32_0 : i32, i32
  }
  func.func @transform_19(%arg0: i32) -> (i32, i32) {
    %c0_i32 = arith.constant 0 : i32
    %c0_i32_0 = arith.constant 0 : i32
    %c0_i32_1 = arith.constant 0 : i32
    return %c0_i32, %c0_i32_0 : i32, i32
  }
  func.func @transform_20(%arg0: i32) -> (i32, i32) {
    %c0_i32 = arith.constant 0 : i32
    %c0_i32_0 = arith.constant 0 : i32
    %c0_i32_1 = arith.constant 0 : i32
    return %c0_i32, %c0_i32_0 : i32, i32
  }
}

module attributes {stable_mosaic.version = 11 : i64} {
  func.func @_stage3_kernel(%arg0: i32, %arg1: memref<8x256xf32, #tpu.memory_space<vmem>>, %arg2: memref<256x16xf32, #tpu.memory_space<vmem>>, %arg3: memref<1x16xf32, #tpu.memory_space<vmem>>, %arg4: memref<16x1024xf32, #tpu.memory_space<vmem>>, %arg5: memref<1x1024xf32, #tpu.memory_space<vmem>>, %arg6: memref<8x256xf32, #tpu.memory_space<vmem>>, %arg7: memref<256x16xf32, #tpu.memory_space<vmem>>, %arg8: memref<1x16xf32, #tpu.memory_space<vmem>>, %arg9: memref<16x64xf32, #tpu.memory_space<vmem>>, %arg10: memref<1x64xf32, #tpu.memory_space<vmem>>, %arg11: memref<8x1024xf32, #tpu.memory_space<vmem>>, %arg12: memref<8x64xf32, #tpu.memory_space<vmem>>) attributes {dimension_semantics = [#tpu.dimension_semantics<arbitrary>], iteration_bounds = array<i64: 1>, scalar_prefetch = 0 : i64, scratch_operands = 0 : i64, tpu.core_type = #tpu.core_type<tc>, window_params = [{pipeline_mode = #tpu.pipeline_mode<synchronous>, transform_indices = @transform_0, window_bounds = array<i64: 8, 256>}, {pipeline_mode = #tpu.pipeline_mode<synchronous>, transform_indices = @transform_1, window_bounds = array<i64: 256, 16>}, {pipeline_mode = #tpu.pipeline_mode<synchronous>, transform_indices = @transform_2, window_bounds = array<i64: 1, 16>}, {pipeline_mode = #tpu.pipeline_mode<synchronous>, transform_indices = @transform_3, window_bounds = array<i64: 16, 1024>}, {pipeline_mode = #tpu.pipeline_mode<synchronous>, transform_indices = @transform_4, window_bounds = array<i64: 1, 1024>}, {pipeline_mode = #tpu.pipeline_mode<synchronous>, transform_indices = @transform_5, window_bounds = array<i64: 8, 256>}, {pipeline_mode = #tpu.pipeline_mode<synchronous>, transform_indices = @transform_6, window_bounds = array<i64: 256, 16>}, {pipeline_mode = #tpu.pipeline_mode<synchronous>, transform_indices = @transform_7, window_bounds = array<i64: 1, 16>}, {pipeline_mode = #tpu.pipeline_mode<synchronous>, transform_indices = @transform_8, window_bounds = array<i64: 16, 64>}, {pipeline_mode = #tpu.pipeline_mode<synchronous>, transform_indices = @transform_9, window_bounds = array<i64: 1, 64>}, {pipeline_mode = #tpu.pipeline_mode<synchronous>, transform_indices = @transform_10, window_bounds = array<i64: 8, 1024>}, {pipeline_mode = #tpu.pipeline_mode<synchronous>, transform_indices = @transform_11, window_bounds = array<i64: 8, 64>}]} {
    %c0 = arith.constant 0 : index
    %c0_0 = arith.constant 0 : index
    %0 = vector.load %arg1[%c0, %c0_0] : memref<8x256xf32, #tpu.memory_space<vmem>>, vector<8x256xf32>
    %c0_1 = arith.constant 0 : index
    %c0_2 = arith.constant 0 : index
    %1 = vector.load %arg2[%c0_1, %c0_2] : memref<256x16xf32, #tpu.memory_space<vmem>>, vector<256x16xf32>
    %cst = arith.constant dense<0.000000e+00> : vector<8x16xf32>
    %2 = tpu.matmul %0, %1, %cst {dimension_numbers = #tpu.dot_dimension_numbers<[1], [0], [0], [1], [0, 0, 1, 1], [], []>} : vector<8x256xf32>, vector<256x16xf32>, vector<8x16xf32> -> vector<8x16xf32>
    %c0_3 = arith.constant 0 : index
    %c0_4 = arith.constant 0 : index
    %3 = vector.load %arg3[%c0_3, %c0_4] : memref<1x16xf32, #tpu.memory_space<vmem>>, vector<1x16xf32>
    %4 = vector.broadcast %3 : vector<1x16xf32> to vector<8x16xf32>
    %5 = arith.addf %2, %4 : vector<8x16xf32>
    %c0_5 = arith.constant 0 : index
    %c0_6 = arith.constant 0 : index
    %6 = vector.load %arg4[%c0_5, %c0_6] : memref<16x1024xf32, #tpu.memory_space<vmem>>, vector<16x1024xf32>
    %cst_7 = arith.constant dense<0.000000e+00> : vector<8x1024xf32>
    %7 = tpu.matmul %5, %6, %cst_7 {dimension_numbers = #tpu.dot_dimension_numbers<[1], [0], [0], [1], [0, 0, 1, 1], [], []>} : vector<8x16xf32>, vector<16x1024xf32>, vector<8x1024xf32> -> vector<8x1024xf32>
    %c0_8 = arith.constant 0 : index
    %c0_9 = arith.constant 0 : index
    %8 = vector.load %arg5[%c0_8, %c0_9] : memref<1x1024xf32, #tpu.memory_space<vmem>>, vector<1x1024xf32>
    %9 = vector.broadcast %8 : vector<1x1024xf32> to vector<8x1024xf32>
    %10 = arith.addf %7, %9 : vector<8x1024xf32>
    %c0_10 = arith.constant 0 : index
    %c0_11 = arith.constant 0 : index
    %11 = vector.load %arg11[%c0_10, %c0_11] : memref<8x1024xf32, #tpu.memory_space<vmem>>, vector<8x1024xf32>
    tpu.vector_store %arg11[%c0_10, %c0_11], %10 {strides = array<i32>} : memref<8x1024xf32, #tpu.memory_space<vmem>>, vector<8x1024xf32>,
    %c0_12 = arith.constant 0 : index
    %c0_13 = arith.constant 0 : index
    %12 = vector.load %arg6[%c0_12, %c0_13] : memref<8x256xf32, #tpu.memory_space<vmem>>, vector<8x256xf32>
    %c0_14 = arith.constant 0 : index
    %c0_15 = arith.constant 0 : index
    %13 = vector.load %arg7[%c0_14, %c0_15] : memref<256x16xf32, #tpu.memory_space<vmem>>, vector<256x16xf32>
    %cst_16 = arith.constant dense<0.000000e+00> : vector<8x16xf32>
    %14 = tpu.matmul %12, %13, %cst_16 {dimension_numbers = #tpu.dot_dimension_numbers<[1], [0], [0], [1], [0, 0, 1, 1], [], []>} : vector<8x256xf32>, vector<256x16xf32>, vector<8x16xf32> -> vector<8x16xf32>
    %c0_17 = arith.constant 0 : index
    %c0_18 = arith.constant 0 : index
    %15 = vector.load %arg8[%c0_17, %c0_18] : memref<1x16xf32, #tpu.memory_space<vmem>>, vector<1x16xf32>
    %16 = vector.broadcast %15 : vector<1x16xf32> to vector<8x16xf32>
    %17 = arith.addf %14, %16 : vector<8x16xf32>
    %c0_19 = arith.constant 0 : index
    %c0_20 = arith.constant 0 : index
    %18 = vector.load %arg9[%c0_19, %c0_20] : memref<16x64xf32, #tpu.memory_space<vmem>>, vector<16x64xf32>
    %cst_21 = arith.constant dense<0.000000e+00> : vector<8x64xf32>
    %19 = tpu.matmul %17, %18, %cst_21 {dimension_numbers = #tpu.dot_dimension_numbers<[1], [0], [0], [1], [0, 0, 1, 1], [], []>} : vector<8x16xf32>, vector<16x64xf32>, vector<8x64xf32> -> vector<8x64xf32>
    %c0_22 = arith.constant 0 : index
    %c0_23 = arith.constant 0 : index
    %20 = vector.load %arg10[%c0_22, %c0_23] : memref<1x64xf32, #tpu.memory_space<vmem>>, vector<1x64xf32>
    %21 = vector.broadcast %20 : vector<1x64xf32> to vector<8x64xf32>
    %22 = arith.addf %19, %21 : vector<8x64xf32>
    %c0_24 = arith.constant 0 : index
    %c0_25 = arith.constant 0 : index
    %23 = vector.load %arg12[%c0_24, %c0_25] : memref<8x64xf32, #tpu.memory_space<vmem>>, vector<8x64xf32>
    tpu.vector_store %arg12[%c0_24, %c0_25], %22 {strides = array<i32>} : memref<8x64xf32, #tpu.memory_space<vmem>>, vector<8x64xf32>,
    return
  }
  func.func @transform_0(%arg0: i32) -> (i32, i32) {
    %c0_i32 = arith.constant 0 : i32
    %c0_i32_0 = arith.constant 0 : i32
    %c0_i32_1 = arith.constant 0 : i32
    return %c0_i32, %c0_i32_0 : i32, i32
  }
  func.func @transform_1(%arg0: i32) -> (i32, i32) {
    %c0_i32 = arith.constant 0 : i32
    %c0_i32_0 = arith.constant 0 : i32
    %c0_i32_1 = arith.constant 0 : i32
    return %c0_i32, %c0_i32_0 : i32, i32
  }
  func.func @transform_2(%arg0: i32) -> (i32, i32) {
    %c0_i32 = arith.constant 0 : i32
    %c0_i32_0 = arith.constant 0 : i32
    %c0_i32_1 = arith.constant 0 : i32
    return %c0_i32, %c0_i32_0 : i32, i32
  }
  func.func @transform_3(%arg0: i32) -> (i32, i32) {
    %c0_i32 = arith.constant 0 : i32
    %c0_i32_0 = arith.constant 0 : i32
    %c0_i32_1 = arith.constant 0 : i32
    return %c0_i32, %c0_i32_0 : i32, i32
  }
  func.func @transform_4(%arg0: i32) -> (i32, i32) {
    %c0_i32 = arith.constant 0 : i32
    %c0_i32_0 = arith.constant 0 : i32
    %c0_i32_1 = arith.constant 0 : i32
    return %c0_i32, %c0_i32_0 : i32, i32
  }
  func.func @transform_5(%arg0: i32) -> (i32, i32) {
    %c0_i32 = arith.constant 0 : i32
    %c0_i32_0 = arith.constant 0 : i32
    %c0_i32_1 = arith.constant 0 : i32
    return %c0_i32, %c0_i32_0 : i32, i32
  }
  func.func @transform_6(%arg0: i32) -> (i32, i32) {
    %c0_i32 = arith.constant 0 : i32
    %c0_i32_0 = arith.constant 0 : i32
    %c0_i32_1 = arith.constant 0 : i32
    return %c0_i32, %c0_i32_0 : i32, i32
  }
  func.func @transform_7(%arg0: i32) -> (i32, i32) {
    %c0_i32 = arith.constant 0 : i32
    %c0_i32_0 = arith.constant 0 : i32
    %c0_i32_1 = arith.constant 0 : i32
    return %c0_i32, %c0_i32_0 : i32, i32
  }
  func.func @transform_8(%arg0: i32) -> (i32, i32) {
    %c0_i32 = arith.constant 0 : i32
    %c0_i32_0 = arith.constant 0 : i32
    %c0_i32_1 = arith.constant 0 : i32
    return %c0_i32, %c0_i32_0 : i32, i32
  }
  func.func @transform_9(%arg0: i32) -> (i32, i32) {
    %c0_i32 = arith.constant 0 : i32
    %c0_i32_0 = arith.constant 0 : i32
    %c0_i32_1 = arith.constant 0 : i32
    return %c0_i32, %c0_i32_0 : i32, i32
  }
  func.func @transform_10(%arg0: i32) -> (i32, i32) {
    %c0_i32 = arith.constant 0 : i32
    %c0_i32_0 = arith.constant 0 : i32
    %c0_i32_1 = arith.constant 0 : i32
    return %c0_i32, %c0_i32_0 : i32, i32
  }
  func.func @transform_11(%arg0: i32) -> (i32, i32) {
    %c0_i32 = arith.constant 0 : i32
    %c0_i32_0 = arith.constant 0 : i32
    %c0_i32_1 = arith.constant 0 : i32
    return %c0_i32, %c0_i32_0 : i32, i32
  }
}

module attributes {stable_mosaic.version = 11 : i64} {
  func.func @_stage4_kernel(%arg0: i32, %arg1: memref<8x512xf32, #tpu.memory_space<vmem>>, %arg2: memref<16x8xf32, #tpu.memory_space<vmem>>, %arg3: memref<16x1xf32, #tpu.memory_space<vmem>>, %arg4: memref<16x512xf32, #tpu.memory_space<vmem>>, %arg5: memref<8x128xf32, #tpu.memory_space<vmem>>, %arg6: memref<32x8xf32, #tpu.memory_space<vmem>>, %arg7: memref<32x1xf32, #tpu.memory_space<vmem>>, %arg8: memref<32x1xf32, #tpu.memory_space<vmem>>, %arg9: memref<32x1xf32, #tpu.memory_space<vmem>>, %arg10: memref<32x128xf32, #tpu.memory_space<vmem>>, %arg11: memref<16x512xf32, #tpu.memory_space<vmem>>, %arg12: memref<32x128xf32, #tpu.memory_space<vmem>>) attributes {dimension_semantics = [#tpu.dimension_semantics<arbitrary>], iteration_bounds = array<i64: 1>, scalar_prefetch = 0 : i64, scratch_operands = 0 : i64, tpu.core_type = #tpu.core_type<tc>, window_params = [{pipeline_mode = #tpu.pipeline_mode<synchronous>, transform_indices = @transform_0, window_bounds = array<i64: 8, 512>}, {pipeline_mode = #tpu.pipeline_mode<synchronous>, transform_indices = @transform_1, window_bounds = array<i64: 16, 8>}, {pipeline_mode = #tpu.pipeline_mode<synchronous>, transform_indices = @transform_2, window_bounds = array<i64: 16, 1>}, {pipeline_mode = #tpu.pipeline_mode<synchronous>, transform_indices = @transform_3, window_bounds = array<i64: 16, 512>}, {pipeline_mode = #tpu.pipeline_mode<synchronous>, transform_indices = @transform_4, window_bounds = array<i64: 8, 128>}, {pipeline_mode = #tpu.pipeline_mode<synchronous>, transform_indices = @transform_5, window_bounds = array<i64: 32, 8>}, {pipeline_mode = #tpu.pipeline_mode<synchronous>, transform_indices = @transform_6, window_bounds = array<i64: 32, 1>}, {pipeline_mode = #tpu.pipeline_mode<synchronous>, transform_indices = @transform_7, window_bounds = array<i64: 32, 1>}, {pipeline_mode = #tpu.pipeline_mode<synchronous>, transform_indices = @transform_8, window_bounds = array<i64: 32, 1>}, {pipeline_mode = #tpu.pipeline_mode<synchronous>, transform_indices = @transform_9, window_bounds = array<i64: 32, 128>}, {pipeline_mode = #tpu.pipeline_mode<synchronous>, transform_indices = @transform_10, window_bounds = array<i64: 16, 512>}, {pipeline_mode = #tpu.pipeline_mode<synchronous>, transform_indices = @transform_11, window_bounds = array<i64: 32, 128>}]} {
    %c0 = arith.constant 0 : index
    %c0_0 = arith.constant 0 : index
    %0 = vector.load %arg2[%c0, %c0_0] : memref<16x8xf32, #tpu.memory_space<vmem>>, vector<16x8xf32>
    %c0_1 = arith.constant 0 : index
    %c0_2 = arith.constant 0 : index
    %1 = vector.load %arg1[%c0_1, %c0_2] : memref<8x512xf32, #tpu.memory_space<vmem>>, vector<8x512xf32>
    %cst = arith.constant dense<0.000000e+00> : vector<16x512xf32>
    %2 = tpu.matmul %0, %1, %cst {dimension_numbers = #tpu.dot_dimension_numbers<[1], [0], [0], [1], [0, 0, 1, 1], [], []>} : vector<16x8xf32>, vector<8x512xf32>, vector<16x512xf32> -> vector<16x512xf32>
    %c0_3 = arith.constant 0 : index
    %c0_4 = arith.constant 0 : index
    %3 = vector.load %arg3[%c0_3, %c0_4] : memref<16x1xf32, #tpu.memory_space<vmem>>, vector<16x1xf32>
    %4 = vector.broadcast %3 : vector<16x1xf32> to vector<16x512xf32>
    %5 = arith.addf %2, %4 : vector<16x512xf32>
    %c0_5 = arith.constant 0 : index
    %c0_6 = arith.constant 0 : index
    %6 = vector.load %arg4[%c0_5, %c0_6] : memref<16x512xf32, #tpu.memory_space<vmem>>, vector<16x512xf32>
    %7 = arith.addf %6, %5 : vector<16x512xf32>
    %cst_7 = arith.constant 0.000000e+00 : f32
    %8 = vector.broadcast %cst_7 : f32 to vector<16x512xf32>
    %9 = arith.maximumf %7, %8 : vector<16x512xf32>
    %c0_8 = arith.constant 0 : index
    %c0_9 = arith.constant 0 : index
    %10 = vector.load %arg11[%c0_8, %c0_9] : memref<16x512xf32, #tpu.memory_space<vmem>>, vector<16x512xf32>
    tpu.vector_store %arg11[%c0_8, %c0_9], %9 {strides = array<i32>} : memref<16x512xf32, #tpu.memory_space<vmem>>, vector<16x512xf32>,
    %c0_10 = arith.constant 0 : index
    %c0_11 = arith.constant 0 : index
    %11 = vector.load %arg6[%c0_10, %c0_11] : memref<32x8xf32, #tpu.memory_space<vmem>>, vector<32x8xf32>
    %c0_12 = arith.constant 0 : index
    %c0_13 = arith.constant 0 : index
    %12 = vector.load %arg5[%c0_12, %c0_13] : memref<8x128xf32, #tpu.memory_space<vmem>>, vector<8x128xf32>
    %cst_14 = arith.constant dense<0.000000e+00> : vector<32x128xf32>
    %13 = tpu.matmul %11, %12, %cst_14 {dimension_numbers = #tpu.dot_dimension_numbers<[1], [0], [0], [1], [0, 0, 1, 1], [], []>} : vector<32x8xf32>, vector<8x128xf32>, vector<32x128xf32> -> vector<32x128xf32>
    %c0_15 = arith.constant 0 : index
    %c0_16 = arith.constant 0 : index
    %14 = vector.load %arg7[%c0_15, %c0_16] : memref<32x1xf32, #tpu.memory_space<vmem>>, vector<32x1xf32>
    %15 = vector.broadcast %14 : vector<32x1xf32> to vector<32x128xf32>
    %16 = arith.addf %13, %15 : vector<32x128xf32>
    %c0_17 = arith.constant 0 : index
    %c0_18 = arith.constant 0 : index
    %17 = vector.load %arg8[%c0_17, %c0_18] : memref<32x1xf32, #tpu.memory_space<vmem>>, vector<32x1xf32>
    %18 = vector.broadcast %17 : vector<32x1xf32> to vector<32x128xf32>
    %19 = arith.mulf %16, %18 : vector<32x128xf32>
    %c0_19 = arith.constant 0 : index
    %c0_20 = arith.constant 0 : index
    %20 = vector.load %arg9[%c0_19, %c0_20] : memref<32x1xf32, #tpu.memory_space<vmem>>, vector<32x1xf32>
    %21 = vector.broadcast %20 : vector<32x1xf32> to vector<32x128xf32>
    %22 = arith.addf %19, %21 : vector<32x128xf32>
    %c0_21 = arith.constant 0 : index
    %c0_22 = arith.constant 0 : index
    %23 = vector.load %arg10[%c0_21, %c0_22] : memref<32x128xf32, #tpu.memory_space<vmem>>, vector<32x128xf32>
    %24 = arith.addf %22, %23 : vector<32x128xf32>
    %cst_23 = arith.constant 0.000000e+00 : f32
    %25 = vector.broadcast %cst_23 : f32 to vector<32x128xf32>
    %26 = arith.maximumf %24, %25 : vector<32x128xf32>
    %c0_24 = arith.constant 0 : index
    %c0_25 = arith.constant 0 : index
    %27 = vector.load %arg12[%c0_24, %c0_25] : memref<32x128xf32, #tpu.memory_space<vmem>>, vector<32x128xf32>
    tpu.vector_store %arg12[%c0_24, %c0_25], %26 {strides = array<i32>} : memref<32x128xf32, #tpu.memory_space<vmem>>, vector<32x128xf32>,
    return
  }
  func.func @transform_0(%arg0: i32) -> (i32, i32) {
    %c0_i32 = arith.constant 0 : i32
    %c0_i32_0 = arith.constant 0 : i32
    %c0_i32_1 = arith.constant 0 : i32
    return %c0_i32, %c0_i32_0 : i32, i32
  }
  func.func @transform_1(%arg0: i32) -> (i32, i32) {
    %c0_i32 = arith.constant 0 : i32
    %c0_i32_0 = arith.constant 0 : i32
    %c0_i32_1 = arith.constant 0 : i32
    return %c0_i32, %c0_i32_0 : i32, i32
  }
  func.func @transform_2(%arg0: i32) -> (i32, i32) {
    %c0_i32 = arith.constant 0 : i32
    %c0_i32_0 = arith.constant 0 : i32
    %c0_i32_1 = arith.constant 0 : i32
    return %c0_i32, %c0_i32_0 : i32, i32
  }
  func.func @transform_3(%arg0: i32) -> (i32, i32) {
    %c0_i32 = arith.constant 0 : i32
    %c0_i32_0 = arith.constant 0 : i32
    %c0_i32_1 = arith.constant 0 : i32
    return %c0_i32, %c0_i32_0 : i32, i32
  }
  func.func @transform_4(%arg0: i32) -> (i32, i32) {
    %c0_i32 = arith.constant 0 : i32
    %c0_i32_0 = arith.constant 0 : i32
    %c0_i32_1 = arith.constant 0 : i32
    return %c0_i32, %c0_i32_0 : i32, i32
  }
  func.func @transform_5(%arg0: i32) -> (i32, i32) {
    %c0_i32 = arith.constant 0 : i32
    %c0_i32_0 = arith.constant 0 : i32
    %c0_i32_1 = arith.constant 0 : i32
    return %c0_i32, %c0_i32_0 : i32, i32
  }
  func.func @transform_6(%arg0: i32) -> (i32, i32) {
    %c0_i32 = arith.constant 0 : i32
    %c0_i32_0 = arith.constant 0 : i32
    %c0_i32_1 = arith.constant 0 : i32
    return %c0_i32, %c0_i32_0 : i32, i32
  }
  func.func @transform_7(%arg0: i32) -> (i32, i32) {
    %c0_i32 = arith.constant 0 : i32
    %c0_i32_0 = arith.constant 0 : i32
    %c0_i32_1 = arith.constant 0 : i32
    return %c0_i32, %c0_i32_0 : i32, i32
  }
  func.func @transform_8(%arg0: i32) -> (i32, i32) {
    %c0_i32 = arith.constant 0 : i32
    %c0_i32_0 = arith.constant 0 : i32
    %c0_i32_1 = arith.constant 0 : i32
    return %c0_i32, %c0_i32_0 : i32, i32
  }
  func.func @transform_9(%arg0: i32) -> (i32, i32) {
    %c0_i32 = arith.constant 0 : i32
    %c0_i32_0 = arith.constant 0 : i32
    %c0_i32_1 = arith.constant 0 : i32
    return %c0_i32, %c0_i32_0 : i32, i32
  }
  func.func @transform_10(%arg0: i32) -> (i32, i32) {
    %c0_i32 = arith.constant 0 : i32
    %c0_i32_0 = arith.constant 0 : i32
    %c0_i32_1 = arith.constant 0 : i32
    return %c0_i32, %c0_i32_0 : i32, i32
  }
  func.func @transform_11(%arg0: i32) -> (i32, i32) {
    %c0_i32 = arith.constant 0 : i32
    %c0_i32_0 = arith.constant 0 : i32
    %c0_i32_1 = arith.constant 0 : i32
    return %c0_i32, %c0_i32_0 : i32, i32
  }
}

</mosaic_0001>

<llo_original>
// kernel: hrmodule_m2mrf_forward.4
$region0: #{hrmodule_m2mrf_forward.4}
  #allocation0 [shape = 'u32[]', space=smem, size = 0x4, offset = 0x4, fixed_abs, tag = 'smem constant byte address 0x4 - core index']
  #allocation1 [shape = 'u32[144,128]{1,0:T(1,128)}', space=vmem, size = 0x12000, scoped, tag = 'internal scratch']
  %s0 = inlined_call_operand.vmem [shape: f32[144,512], index: 0, kind: input, shape index: {}]
  %s1 = inlined_call_operand.vmem [shape: f32[16,144], index: 1, kind: input, shape index: {}]
  %s2 = inlined_call_operand.vmem [shape: f32[16,1], index: 2, kind: input, shape index: {}]
  %s3 = inlined_call_operand.vmem [shape: f32[16,1], index: 3, kind: input, shape index: {}]
  %s4 = inlined_call_operand.vmem [shape: f32[288,128], index: 4, kind: input, shape index: {}]
  %s5 = inlined_call_operand.vmem [shape: f32[32,288], index: 5, kind: input, shape index: {}]
  %s6 = inlined_call_operand.vmem [shape: f32[32,1], index: 6, kind: input, shape index: {}]
  %s7 = inlined_call_operand.vmem [shape: f32[32,1], index: 7, kind: input, shape index: {}]
  %s8 = inlined_call_operand.vmem [shape: f32[16,512], index: 8, kind: output, shape index: {0}]
  %s9 = inlined_call_operand.vmem [shape: f32[32,128], index: 9, kind: output, shape index: {1}]
  %10 = xla_tuple %s8, %s9
  %s11 = sld [smem:[#allocation0]]
  $region50: #{hrmodule_m2mrf_forward.4} parent=0
    _
  %s13 = ssub.s32 1, %s11
  %s14 = scalar_select 0, %s13, %s11
  // Predicated region
  $region2: #{hrmodule_m2mrf_forward.4} parent=0 // pred_check
    _
  $region3: #{hrmodule_m2mrf_forward.4} parent=0 // pred_check_branch
    %16 = sbr.rel (0) target = $region5
  $region4: #{hrmodule_m2mrf_forward.4} parent=0 // pred_region
    _
  $region5: #{hrmodule_m2mrf_forward.4} parent=0 // pred_fallthru
    _
  // Predicated region
  $region6: #{hrmodule_m2mrf_forward.4} parent=0 // pred_check
    _
  $region7: #{hrmodule_m2mrf_forward.4} parent=0 // pred_check_branch
    %18 = sbr.rel (0) target = $region9
  $region8: #{hrmodule_m2mrf_forward.4} parent=0 // pred_region
    _
  $region9: #{hrmodule_m2mrf_forward.4} parent=0 // pred_fallthru
    _
  // Predicated region
  $region10: #{hrmodule_m2mrf_forward.4} parent=0 // pred_check
    _
  $region11: #{hrmodule_m2mrf_forward.4} parent=0 // pred_check_branch
    %20 = sbr.rel (0) target = $region13
  $region12: #{hrmodule_m2mrf_forward.4} parent=0 // pred_region
    _
  $region13: #{hrmodule_m2mrf_forward.4} parent=0 // pred_fallthru
    _
  // Predicated region
  $region14: #{hrmodule_m2mrf_forward.4} parent=0 // pred_check
    _
  $region15: #{hrmodule_m2mrf_forward.4} parent=0 // pred_check_branch
    %22 = sbr.rel (0) target = $region17
  $region16: #{hrmodule_m2mrf_forward.4} parent=0 // pred_region
    _
  $region17: #{hrmodule_m2mrf_forward.4} parent=0 // pred_fallthru
    _
  // Predicated region
  $region18: #{hrmodule_m2mrf_forward.4} parent=0 // pred_check
    _
  $region19: #{hrmodule_m2mrf_forward.4} parent=0 // pred_check_branch
    %24 = sbr.rel (0) target = $region21
  $region20: #{hrmodule_m2mrf_forward.4} parent=0 // pred_region
    _
  $region21: #{hrmodule_m2mrf_forward.4} parent=0 // pred_fallthru
    _
  // Predicated region
  $region22: #{hrmodule_m2mrf_forward.4} parent=0 // pred_check
    _
  $region23: #{hrmodule_m2mrf_forward.4} parent=0 // pred_check_branch
    %26 = sbr.rel (0) target = $region25
  $region24: #{hrmodule_m2mrf_forward.4} parent=0 // pred_region
    _
  $region25: #{hrmodule_m2mrf_forward.4} parent=0 // pred_fallthru
    _
  // Predicated region
  $region26: #{hrmodule_m2mrf_forward.4} parent=0 // pred_check
    _
  $region27: #{hrmodule_m2mrf_forward.4} parent=0 // pred_check_branch
    %28 = sbr.rel (0) target = $region29
  $region28: #{hrmodule_m2mrf_forward.4} parent=0 // pred_region
    _
  $region29: #{hrmodule_m2mrf_forward.4} parent=0 // pred_fallthru
    _
  // Predicated region
  $region30: #{hrmodule_m2mrf_forward.4} parent=0 // pred_check
    _
  $region31: #{hrmodule_m2mrf_forward.4} parent=0 // pred_check_branch
    %30 = sbr.rel (0) target = $region33
  $region32: #{hrmodule_m2mrf_forward.4} parent=0 // pred_region
    _
  $region33: #{hrmodule_m2mrf_forward.4} parent=0 // pred_fallthru
    _
  %v31 = vld [vmem:[%s1] sm:$0xff]
  %v32 = vld [vmem:[%s1 + $0x8] sm:$0xff]
  %v33 = vld [vmem:[%s1 + $0x10] sm:$0xff]
  %v34 = vld [vmem:[%s1 + $0x18] sm:$0xff]
  %v35 = vld [vmem:[%s0] sm:$0xff]
  %v36 = vld [vmem:[%s0 + $0x8] sm:$0xff]
  %v37 = vld [vmem:[%s0 + $0x10] sm:$0xff]
  %v38 = vld [vmem:[%s0 + $0x18] sm:$0xff]
  %v39 = vld [vmem:[%s0 + $0x20] sm:$0xff]
  %v40 = vld [vmem:[%s0 + $0x28] sm:$0xff]
  %v41 = vld [vmem:[%s0 + $0x30] sm:$0xff]
  %v42 = vld [vmem:[%s0 + $0x38] sm:$0xff]
  %v43 = vld [vmem:[%s0 + $0x40] sm:$0xff]
  %v44 = vld [vmem:[%s0 + $0x48] sm:$0xff]
  %v45 = vld [vmem:[%s0 + $0x50] sm:$0xff]
  %v46 = vld [vmem:[%s0 + $0x58] sm:$0xff]
  %v47 = vld [vmem:[%s0 + $0x60] sm:$0xff]
  %v48 = vld [vmem:[%s0 + $0x68] sm:$0xff]
  %v49 = vld [vmem:[%s0 + $0x70] sm:$0xff]
  %v50 = vld [vmem:[%s0 + $0x78] sm:$0xff]
  %v51 = vld [vmem:[%s0 + $0x80] sm:$0xff]
  %v52 = vld [vmem:[%s0 + $0x88] sm:$0xff]
  %v53 = vld [vmem:[%s0 + $0x90] sm:$0xff]
  %v54 = vld [vmem:[%s0 + $0x98] sm:$0xff]
  %v55 = vld [vmem:[%s0 + $0xa0] sm:$0xff]
  %v56 = vld [vmem:[%s0 + $0xa8] sm:$0xff]
  %v57 = vld [vmem:[%s0 + $0xb0] sm:$0xff]
  %v58 = vld [vmem:[%s0 + $0xb8] sm:$0xff]
  %v59 = vld [vmem:[%s0 + $0xc0] sm:$0xff]
  %v60 = vld [vmem:[%s0 + $0xc8] sm:$0xff]
  %v61 = vld [vmem:[%s0 + $0xd0] sm:$0xff]
  %v62 = vld [vmem:[%s0 + $0xd8] sm:$0xff]
  %v63 = vld [vmem:[%s0 + $0xe0] sm:$0xff]
  %v64 = vld [vmem:[%s0 + $0xe8] sm:$0xff]
  %v65 = vld [vmem:[%s0 + $0xf0] sm:$0xff]
  %v66 = vld [vmem:[%s0 + $0xf8] sm:$0xff]
  %v67 = vld [vmem:[%s0 + $0x100] sm:$0xff]
  %v68 = vld [vmem:[%s0 + $0x108] sm:$0xff]
  %v69 = vld [vmem:[%s0 + $0x110] sm:$0xff]
  %v70 = vld [vmem:[%s0 + $0x118] sm:$0xff]
  %v71 = vld [vmem:[%s0 + $0x120] sm:$0xff]
  %v72 = vld [vmem:[%s0 + $0x128] sm:$0xff]
  %v73 = vld [vmem:[%s0 + $0x130] sm:$0xff]
  %v74 = vld [vmem:[%s0 + $0x138] sm:$0xff]
  %v75 = vld [vmem:[%s0 + $0x140] sm:$0xff]
  %v76 = vld [vmem:[%s0 + $0x148] sm:$0xff]
  %v77 = vld [vmem:[%s0 + $0x150] sm:$0xff]
  %v78 = vld [vmem:[%s0 + $0x158] sm:$0xff]
  %v79 = vld [vmem:[%s0 + $0x160] sm:$0xff]
  %v80 = vld [vmem:[%s0 + $0x168] sm:$0xff]
  %v81 = vld [vmem:[%s0 + $0x170] sm:$0xff]
  %v82 = vld [vmem:[%s0 + $0x178] sm:$0xff]
  %v83 = vld [vmem:[%s0 + $0x180] sm:$0xff]
  %v84 = vld [vmem:[%s0 + $0x188] sm:$0xff]
  %v85 = vld [vmem:[%s0 + $0x190] sm:$0xff]
  %v86 = vld [vmem:[%s0 + $0x198] sm:$0xff]
  %v87 = vld [vmem:[%s0 + $0x1a0] sm:$0xff]
  %v88 = vld [vmem:[%s0 + $0x1a8] sm:$0xff]
  %v89 = vld [vmem:[%s0 + $0x1b0] sm:$0xff]
  %v90 = vld [vmem:[%s0 + $0x1b8] sm:$0xff]
  %v91 = vld [vmem:[%s0 + $0x1c0] sm:$0xff]
  %v92 = vld [vmem:[%s0 + $0x1c8] sm:$0xff]
  %v93 = vld [vmem:[%s0 + $0x1d0] sm:$0xff]
  %v94 = vld [vmem:[%s0 + $0x1d8] sm:$0xff]
  %v95 = vld [vmem:[%s0 + $0x1e0] sm:$0xff]
  %v96 = vld [vmem:[%s0 + $0x1e8] sm:$0xff]
  %v97 = vld [vmem:[%s0 + $0x1f0] sm:$0xff]
  %v98 = vld [vmem:[%s0 + $0x1f8] sm:$0xff]
  %v99 = vld [vmem:[%s0 + $0x200] sm:$0xff]
  %v100 = vld [vmem:[%s0 + $0x208] sm:$0xff]
  %v101 = vld [vmem:[%s0 + $0x210] sm:$0xff]
  %v102 = vld [vmem:[%s0 + $0x218] sm:$0xff]
  %v103 = vld [vmem:[%s0 + $0x220] sm:$0xff]
  %v104 = vld [vmem:[%s0 + $0x228] sm:$0xff]
  %v105 = vld [vmem:[%s0 + $0x230] sm:$0xff]
  %v106 = vld [vmem:[%s0 + $0x238] sm:$0xff]
  %vm107 = vcmask 130048
  %v109 = vsel %vm107, %v32, 0
  %v112 = vsel %vm107, %v34, 0
  %114 = vmatprep.subr.mxu0 %v96
  %115 = vmatpush1.msra.mxu0 %v95
  %116 = vmatprep.subr.mxu0 %v92
  %117 = vmatpush1.msra.mxu0 %v91
  %118 = vmatprep.subr.mxu0 %v88
  %119 = vmatpush1.msra.mxu0 %v87
  %120 = vmatprep.subr.mxu0 %v84
  %121 = vmatpush1.msra.mxu0 %v83
  %122 = vmatprep.subr.mxu0 %v80
  %123 = vmatpush1.msra.mxu0 %v79
  %124 = vmatprep.subr.mxu0 %v76
  %125 = vmatpush1.msra.mxu0 %v75
  %126 = vmatprep.subr.mxu0 %v72
  %127 = vmatpush1.msra.mxu0 %v71
  %128 = vmatprep.subr.mxu0 %v68
  %129 = vmatpush1.msra.mxu0 %v67
  %130 = vmatprep.subr.mxu0 %v64
  %131 = vmatpush1.msra.mxu0 %v63
  %132 = vmatprep.subr.mxu0 %v60
  %133 = vmatpush1.msra.mxu0 %v59
  %134 = vmatprep.subr.mxu0 %v56
  %135 = vmatpush1.msra.mxu0 %v55
  %136 = vmatprep.subr.mxu0 %v52
  %137 = vmatpush1.msra.mxu0 %v51
  %138 = vmatprep.subr.mxu0 %v48
  %139 = vmatpush1.msra.mxu0 %v47
  %140 = vmatprep.subr.mxu0 %v44
  %141 = vmatpush1.msra.mxu0 %v43
  %142 = vmatprep.subr.mxu0 %v40
  %143 = vmatpush1.msra.mxu0 %v39
  %144 = vmatprep.subr.mxu0 %v36
  %145 = vmatpush1.msra.mxu0 %v35
  %146 = vmatprep.subr.mxu0 0.0
  %147 = vmatpush2.msra.mxu0 0.0
  %148 = vmatprep.subr.mxu0 0.0
  %149 = vmatpush2.msra.mxu0 0.0
  %150 = vmatprep.subr.mxu0 0.0
  %151 = vmatpush2.msra.mxu0 0.0
  %152 = vmatprep.subr.mxu0 0.0
  %153 = vmatpush2.msra.mxu0 0.0
  %154 = vmatprep.subr.mxu0 0.0
  %155 = vmatpush2.msra.mxu0 0.0
  %156 = vmatprep.subr.mxu0 0.0
  %157 = vmatpush2.msra.mxu0 0.0
  %158 = vmatprep.subr.mxu0 0.0
  %159 = vmatpush2.msra.mxu0 0.0
  %160 = vmatprep.subr.mxu0 0.0
  %161 = vmatpush2.msra.mxu0 0.0
  %162 = vmatprep.subr.mxu0 0.0
  %163 = vmatpush2.msra.mxu0 0.0
  %164 = vmatprep.subr.mxu0 0.0
  %165 = vmatpush2.msra.mxu0 0.0
  %166 = vmatprep.subr.mxu0 0.0
  %167 = vmatpush2.msra.mxu0 0.0
  %168 = vmatprep.subr.mxu0 0.0
  %169 = vmatpush2.msra.mxu0 0.0
  %170 = vmatprep.subr.mxu0 0.0
  %171 = vmatpush2.msra.mxu0 0.0
  %172 = vmatprep.subr.mxu0 0.0
  %173 = vmatpush2.msra.mxu0 0.0
  %174 = vmatprep.subr.mxu0 %v104
  %175 = vmatpush2.msra.mxu0 %v103
  %176 = vmatprep.subr.mxu0 %v100
  %177 = vmatpush2.msra.mxu0 %v99
  %178 = vmatprep.mubr.f32.mxu0 %v109
  %179 = vmatmul.mubr.f32.gmra.mxu0 %v31
  %v180 = vpop.f32.mrf.mxu0
  %v181 = vadd.f32 0.0, %v180
  %v182 = vpop.f32.mrf.mxu0
  %v183 = vadd.f32 0.0, %v182
  %184 = vmatprep.mubr.f32.mxu0 %v112
  %185 = vmatmul.mubr.f32.gmra.mxu0 %v33
  %v186 = vpop.f32.mrf.mxu0
  %v187 = vadd.f32 0.0, %v186
  %v188 = vpop.f32.mrf.mxu0
  %v189 = vadd.f32 0.0, %v188
  %190 = vdwg.mxu0
  %191 = vmatprep.subr.mxu0 %v98
  %192 = vmatpush1.msra.mxu0 %v97
  %193 = vmatprep.subr.mxu0 %v94
  %194 = vmatpush1.msra.mxu0 %v93
  %195 = vmatprep.subr.mxu0 %v90
  %196 = vmatpush1.msra.mxu0 %v89
  %197 = vmatprep.subr.mxu0 %v86
  %198 = vmatpush1.msra.mxu0 %v85
  %199 = vmatprep.subr.mxu0 %v82
  %200 = vmatpush1.msra.mxu0 %v81
  %201 = vmatprep.subr.mxu0 %v78
  %202 = vmatpush1.msra.mxu0 %v77
  %203 = vmatprep.subr.mxu0 %v74
  %204 = vmatpush1.msra.mxu0 %v73
  %205 = vmatprep.subr.mxu0 %v70
  %206 = vmatpush1.msra.mxu0 %v69
  %207 = vmatprep.subr.mxu0 %v66
  %208 = vmatpush1.msra.mxu0 %v65
  %209 = vmatprep.subr.mxu0 %v62
  %210 = vmatpush1.msra.mxu0 %v61
  %211 = vmatprep.subr.mxu0 %v58
  %212 = vmatpush1.msra.mxu0 %v57
  %213 = vmatprep.subr.mxu0 %v54
  %214 = vmatpush1.msra.mxu0 %v53
  %215 = vmatprep.subr.mxu0 %v50
  %216 = vmatpush1.msra.mxu0 %v49
  %217 = vmatprep.subr.mxu0 %v46
  %218 = vmatpush1.msra.mxu0 %v45
  %219 = vmatprep.subr.mxu0 %v42
  %220 = vmatpush1.msra.mxu0 %v41
  %221 = vmatprep.subr.mxu0 %v38
  %222 = vmatpush1.msra.mxu0 %v37
  %223 = vmatprep.subr.mxu0 0.0
  %224 = vmatpush2.msra.mxu0 0.0
  %225 = vmatprep.subr.mxu0 0.0
  %226 = vmatpush2.msra.mxu0 0.0
  %227 = vmatprep.subr.mxu0 0.0
  %228 = vmatpush2.msra.mxu0 0.0
  %229 = vmatprep.subr.mxu0 0.0
  %230 = vmatpush2.msra.mxu0 0.0
  %231 = vmatprep.subr.mxu0 0.0
  %232 = vmatpush2.msra.mxu0 0.0
  %233 = vmatprep.subr.mxu0 0.0
  %234 = vmatpush2.msra.mxu0 0.0
  %235 = vmatprep.subr.mxu0 0.0
  %236 = vmatpush2.msra.mxu0 0.0
  %237 = vmatprep.subr.mxu0 0.0
  %238 = vmatpush2.msra.mxu0 0.0
  %239 = vmatprep.subr.mxu0 0.0
  %240 = vmatpush2.msra.mxu0 0.0
  %241 = vmatprep.subr.mxu0 0.0
  %242 = vmatpush2.msra.mxu0 0.0
  %243 = vmatprep.subr.mxu0 0.0
  %244 = vmatpush2.msra.mxu0 0.0
  %245 = vmatprep.subr.mxu0 0.0
  %246 = vmatpush2.msra.mxu0 0.0
  %247 = vmatprep.subr.mxu0 0.0
  %248 = vmatpush2.msra.mxu0 0.0
  %249 = vmatprep.subr.mxu0 0.0
  %250 = vmatpush2.msra.mxu0 0.0
  %251 = vmatprep.subr.mxu0 %v106
  %252 = vmatpush2.msra.mxu0 %v105
  %253 = vmatprep.subr.mxu0 %v102
  %254 = vmatpush2.msra.mxu0 %v101
  %255 = vmatprep.mubr.f32.mxu0 %v109
  %256 = vmatmul.mubr.f32.gmra.mxu0 %v31
  %v257 = vpop.f32.mrf.mxu0
  %v258 = vadd.f32 0.0, %v257
  %v259 = vpop.f32.mrf.mxu0
  %v260 = vadd.f32 0.0, %v259
  %261 = vmatprep.mubr.f32.mxu0 %v112
  %262 = vmatmul.mubr.f32.gmra.mxu0 %v33
  %v263 = vpop.f32.mrf.mxu0
  %v264 = vadd.f32 0.0, %v263
  %v265 = vpop.f32.mrf.mxu0
  %v266 = vadd.f32 0.0, %v265
  %267 = vdwg.mxu0
  %v268 = vld [vmem:[%s2] sm:$0xff]
  %v269 = vld [vmem:[%s2 + $0x8] sm:$0xff]
  %271 = vset.pattern.permute.xlu0 0
  %272 = vperm.xlu0 %271, %v268
  %v273 = vpop.permute.xlu0 %272
  %276 = vset.pattern.permute.xlu0 0
  %277 = vperm.xlu0 %276, %v269
  %v278 = vpop.permute.xlu0 %277
  %v280 = vmul.f32 %v181, %v273
  %v281 = vmul.f32 %v183, %v273
  %v282 = vmul.f32 %v258, %v273
  %v283 = vmul.f32 %v260, %v273
  %v284 = vmul.f32 %v187, %v278
  %v285 = vmul.f32 %v189, %v278
  %v286 = vmul.f32 %v264, %v278
  %v287 = vmul.f32 %v266, %v278
  %v288 = vld [vmem:[%s3] sm:$0xff]
  %v289 = vld [vmem:[%s3 + $0x8] sm:$0xff]
  %291 = vset.pattern.permute.xlu0 0
  %292 = vperm.xlu0 %291, %v288
  %v293 = vpop.permute.xlu0 %292
  %296 = vset.pattern.permute.xlu0 0
  %297 = vperm.xlu0 %296, %v289
  %v298 = vpop.permute.xlu0 %297
  %v300 = vadd.f32 %v280, %v293
  %v301 = vadd.f32 %v281, %v293
  %v302 = vadd.f32 %v282, %v293
  %v303 = vadd.f32 %v283, %v293
  %v304 = vadd.f32 %v284, %v298
  %v305 = vadd.f32 %v285, %v298
  %v306 = vadd.f32 %v286, %v298
  %v307 = vadd.f32 %v287, %v298
  %v308 = vmax.f32 %v300, 0.0
  %v309 = vmax.f32 %v301, 0.0
  %v310 = vmax.f32 %v302, 0.0
  %v311 = vmax.f32 %v303, 0.0
  %v312 = vmax.f32 %v304, 0.0
  %v313 = vmax.f32 %v305, 0.0
  %v314 = vmax.f32 %v306, 0.0
  %v315 = vmax.f32 %v307, 0.0
  %316 = vst [vmem:[%s8] sm:$0xff] %v308
  %317 = vst [vmem:[%s8 + $0x8] sm:$0xff] %v309
  %318 = vst [vmem:[%s8 + $0x10] sm:$0xff] %v310
  %319 = vst [vmem:[%s8 + $0x18] sm:$0xff] %v311
  %320 = vst [vmem:[%s8 + $0x20] sm:$0xff] %v312
  %321 = vst [vmem:[%s8 + $0x28] sm:$0xff] %v313
  %322 = vst [vmem:[%s8 + $0x30] sm:$0xff] %v314
  %323 = vst [vmem:[%s8 + $0x38] sm:$0xff] %v315
  %v324 = vld [vmem:[%s5] sm:$0xff]
  %v325 = vld [vmem:[%s5 + $0x8] sm:$0xff]
  %v326 = vld [vmem:[%s5 + $0x10] sm:$0xff]
  %v327 = vld [vmem:[%s5 + $0x18] sm:$0xff]
  %v328 = vld [vmem:[%s5 + $0x20] sm:$0xff]
  %v329 = vld [vmem:[%s5 + $0x28] sm:$0xff]
  %v330 = vld [vmem:[%s5 + $0x30] sm:$0xff]
  %v331 = vld [vmem:[%s5 + $0x38] sm:$0xff]
  %v332 = vld [vmem:[%s5 + $0x40] sm:$0xff]
  %v333 = vld [vmem:[%s5 + $0x48] sm:$0xff]
  %v334 = vld [vmem:[%s5 + $0x50] sm:$0xff]
  %v335 = vld [vmem:[%s5 + $0x58] sm:$0xff]
  %v336 = vld [vmem:[%s4] sm:$0xff]
  %v337 = vld [vmem:[%s4 + $0x8] sm:$0xff]
  %v338 = vld [vmem:[%s4 + $0x10] sm:$0xff]
  %v339 = vld [vmem:[%s4 + $0x18] sm:$0xff]
  %v340 = vld [vmem:[%s4 + $0x20] sm:$0xff]
  %v341 = vld [vmem:[%s4 + $0x28] sm:$0xff]
  %v342 = vld [vmem:[%s4 + $0x30] sm:$0xff]
  %v343 = vld [vmem:[%s4 + $0x38] sm:$0xff]
  %v344 = vld [vmem:[%s4 + $0x40] sm:$0xff]
  %v345 = vld [vmem:[%s4 + $0x48] sm:$0xff]
  %v346 = vld [vmem:[%s4 + $0x50] sm:$0xff]
  %v347 = vld [vmem:[%s4 + $0x58] sm:$0xff]
  %v348 = vld [vmem:[%s4 + $0x60] sm:$0xff]
  %v349 = vld [vmem:[%s4 + $0x68] sm:$0xff]
  %v350 = vld [vmem:[%s4 + $0x70] sm:$0xff]
  %v351 = vld [vmem:[%s4 + $0x78] sm:$0xff]
  %v352 = vld [vmem:[%s4 + $0x80] sm:$0xff]
  %v353 = vld [vmem:[%s4 + $0x88] sm:$0xff]
  %v354 = vld [vmem:[%s4 + $0x90] sm:$0xff]
  %v355 = vld [vmem:[%s4 + $0x98] sm:$0xff]
  %v356 = vld [vmem:[%s4 + $0xa0] sm:$0xff]
  %v357 = vld [vmem:[%s4 + $0xa8] sm:$0xff]
  %v358 = vld [vmem:[%s4 + $0xb0] sm:$0xff]
  %v359 = vld [vmem:[%s4 + $0xb8] sm:$0xff]
  %v360 = vld [vmem:[%s4 + $0xc0] sm:$0xff]
  %v361 = vld [vmem:[%s4 + $0xc8] sm:$0xff]
  %v362 = vld [vmem:[%s4 + $0xd0] sm:$0xff]
  %v363 = vld [vmem:[%s4 + $0xd8] sm:$0xff]
  %v364 = vld [vmem:[%s4 + $0xe0] sm:$0xff]
  %v365 = vld [vmem:[%s4 + $0xe8] sm:$0xff]
  %v366 = vld [vmem:[%s4 + $0xf0] sm:$0xff]
  %v367 = vld [vmem:[%s4 + $0xf8] sm:$0xff]
  %v368 = vld [vmem:[%s4 + $0x100] sm:$0xff]
  %v369 = vld [vmem:[%s4 + $0x108] sm:$0xff]
  %v370 = vld [vmem:[%s4 + $0x110] sm:$0xff]
  %v371 = vld [vmem:[%s4 + $0x118] sm:$0xff]
  %vm372 = vcmask 261120
  %v374 = vsel %vm372, %v326, 0
  %v377 = vsel %vm372, %v329, 0
  %v380 = vsel %vm372, %v332, 0
  %v383 = vsel %vm372, %v335, 0
  %385 = vmatprep.subr.mxu0 0.0
  %386 = vmatpush1.msra.mxu0 %v351
  %387 = vmatprep.subr.mxu0 0.0
  %388 = vmatpush1.msra.mxu0 %v350
  %389 = vmatprep.subr.mxu0 0.0
  %390 = vmatpush1.msra.mxu0 %v349
  %391 = vmatprep.subr.mxu0 0.0
  %392 = vmatpush1.msra.mxu0 %v348
  %393 = vmatprep.subr.mxu0 0.0
  %394 = vmatpush1.msra.mxu0 %v347
  %395 = vmatprep.subr.mxu0 0.0
  %396 = vmatpush1.msra.mxu0 %v346
  %397 = vmatprep.subr.mxu0 0.0
  %398 = vmatpush1.msra.mxu0 %v345
  %399 = vmatprep.subr.mxu0 0.0
  %400 = vmatpush1.msra.mxu0 %v344
  %401 = vmatprep.subr.mxu0 0.0
  %402 = vmatpush1.msra.mxu0 %v343
  %403 = vmatprep.subr.mxu0 0.0
  %404 = vmatpush1.msra.mxu0 %v342
  %405 = vmatprep.subr.mxu0 0.0
  %406 = vmatpush1.msra.mxu0 %v341
  %407 = vmatprep.subr.mxu0 0.0
  %408 = vmatpush1.msra.mxu0 %v340
  %409 = vmatprep.subr.mxu0 0.0
  %410 = vmatpush1.msra.mxu0 %v339
  %411 = vmatprep.subr.mxu0 0.0
  %412 = vmatpush1.msra.mxu0 %v338
  %413 = vmatprep.subr.mxu0 0.0
  %414 = vmatpush1.msra.mxu0 %v337
  %415 = vmatprep.subr.mxu0 0.0
  %416 = vmatpush1.msra.mxu0 %v336
  %417 = vmatprep.subr.mxu0 0.0
  %418 = vmatpush2.msra.mxu0 %v367
  %419 = vmatprep.subr.mxu0 0.0
  %420 = vmatpush2.msra.mxu0 %v366
  %421 = vmatprep.subr.mxu0 0.0
  %422 = vmatpush2.msra.mxu0 %v365
  %423 = vmatprep.subr.mxu0 0.0
  %424 = vmatpush2.msra.mxu0 %v364
  %425 = vmatprep.subr.mxu0 0.0
  %426 = vmatpush2.msra.mxu0 %v363
  %427 = vmatprep.subr.mxu0 0.0
  %428 = vmatpush2.msra.mxu0 %v362
  %429 = vmatprep.subr.mxu0 0.0
  %430 = vmatpush2.msra.mxu0 %v361
  %431 = vmatprep.subr.mxu0 0.0
  %432 = vmatpush2.msra.mxu0 %v360
  %433 = vmatprep.subr.mxu0 0.0
  %434 = vmatpush2.msra.mxu0 %v359
  %435 = vmatprep.subr.mxu0 0.0
  %436 = vmatpush2.msra.mxu0 %v358
  %437 = vmatprep.subr.mxu0 0.0
  %438 = vmatpush2.msra.mxu0 %v357
  %439 = vmatprep.subr.mxu0 0.0
  %440 = vmatpush2.msra.mxu0 %v356
  %441 = vmatprep.subr.mxu0 0.0
  %442 = vmatpush2.msra.mxu0 %v355
  %443 = vmatprep.subr.mxu0 0.0
  %444 = vmatpush2.msra.mxu0 %v354
  %445 = vmatprep.subr.mxu0 0.0
  %446 = vmatpush2.msra.mxu0 %v353
  %447 = vmatprep.subr.mxu0 0.0
  %448 = vmatpush2.msra.mxu0 %v352
  %449 = vmatprep.mubr.f32.mxu0 %v325
  %450 = vmatmul.mubr.f32.gmra.mxu0 %v324
  %v451 = vpop.f32.mrf.mxu0
  %v452 = vadd.f32 0.0, %v451
  %v453 = vpop.f32.mrf.mxu0
  %454 = vmatprep.mubr.f32.mxu0 %v328
  %455 = vmatmul.mubr.f32.gmra.mxu0 %v327
  %v456 = vpop.f32.mrf.mxu0
  %v457 = vadd.f32 0.0, %v456
  %v458 = vpop.f32.mrf.mxu0
  %459 = vmatprep.mubr.f32.mxu0 %v331
  %460 = vmatmul.mubr.f32.gmra.mxu0 %v330
  %v461 = vpop.f32.mrf.mxu0
  %v462 = vadd.f32 0.0, %v461
  %v463 = vpop.f32.mrf.mxu0
  %464 = vmatprep.mubr.f32.mxu0 %v334
  %465 = vmatmul.mubr.f32.gmra.mxu0 %v333
  %v466 = vpop.f32.mrf.mxu0
  %v467 = vadd.f32 0.0, %v466
  %v468 = vpop.f32.mrf.mxu0
  %469 = vdwg.mxu0
  %470 = vmatprep.subr.mxu0 0.0
  %471 = vmatpush1.msra.mxu0 0.0
  %472 = vmatprep.subr.mxu0 0.0
  %473 = vmatpush1.msra.mxu0 0.0
  %474 = vmatprep.subr.mxu0 0.0
  %475 = vmatpush1.msra.mxu0 0.0
  %476 = vmatprep.subr.mxu0 0.0
  %477 = vmatpush1.msra.mxu0 0.0
  %478 = vmatprep.subr.mxu0 0.0
  %479 = vmatpush1.msra.mxu0 0.0
  %480 = vmatprep.subr.mxu0 0.0
  %481 = vmatpush1.msra.mxu0 0.0
  %482 = vmatprep.subr.mxu0 0.0
  %483 = vmatpush1.msra.mxu0 0.0
  %484 = vmatprep.subr.mxu0 0.0
  %485 = vmatpush1.msra.mxu0 0.0
  %486 = vmatprep.subr.mxu0 0.0
  %487 = vmatpush1.msra.mxu0 0.0
  %488 = vmatprep.subr.mxu0 0.0
  %489 = vmatpush1.msra.mxu0 0.0
  %490 = vmatprep.subr.mxu0 0.0
  %491 = vmatpush1.msra.mxu0 0.0
  %492 = vmatprep.subr.mxu0 0.0
  %493 = vmatpush1.msra.mxu0 0.0
  %494 = vmatprep.subr.mxu0 0.0
  %495 = vmatpush1.msra.mxu0 %v371
  %496 = vmatprep.subr.mxu0 0.0
  %497 = vmatpush1.msra.mxu0 %v370
  %498 = vmatprep.subr.mxu0 0.0
  %499 = vmatpush1.msra.mxu0 %v369
  %500 = vmatprep.subr.mxu0 0.0
  %501 = vmatpush1.msra.mxu0 %v368
  %502 = vmatprep.subr.mxu0 0.0
  %503 = vmatpush2.msra.mxu0 0.0
  %504 = vmatprep.subr.mxu0 0.0
  %505 = vmatpush2.msra.mxu0 0.0
  %506 = vmatprep.subr.mxu0 0.0
  %507 = vmatpush2.msra.mxu0 0.0
  %508 = vmatprep.subr.mxu0 0.0
  %509 = vmatpush2.msra.mxu0 0.0
  %510 = vmatprep.subr.mxu0 0.0
  %511 = vmatpush2.msra.mxu0 0.0
  %512 = vmatprep.subr.mxu0 0.0
  %513 = vmatpush2.msra.mxu0 0.0
  %514 = vmatprep.subr.mxu0 0.0
  %515 = vmatpush2.msra.mxu0 0.0
  %516 = vmatprep.subr.mxu0 0.0
  %517 = vmatpush2.msra.mxu0 0.0
  %518 = vmatprep.subr.mxu0 0.0
  %519 = vmatpush2.msra.mxu0 0.0
  %520 = vmatprep.subr.mxu0 0.0
  %521 = vmatpush2.msra.mxu0 0.0
  %522 = vmatprep.subr.mxu0 0.0
  %523 = vmatpush2.msra.mxu0 0.0
  %524 = vmatprep.subr.mxu0 0.0
  %525 = vmatpush2.msra.mxu0 0.0
  %526 = vmatprep.subr.mxu0 0.0
  %527 = vmatpush2.msra.mxu0 0.0
  %528 = vmatprep.subr.mxu0 0.0
  %529 = vmatpush2.msra.mxu0 0.0
  %530 = vmatprep.subr.mxu0 0.0
  %531 = vmatpush2.msra.mxu0 0.0
  %532 = vmatprep.subr.mxu0 0.0
  %533 = vmatpush2.msra.mxu0 0.0
  %534 = vmatprep.mubr.f32.mxu0 0.0
  %535 = vmatmul.mubr.f32.gmra.mxu0 %v374
  %v536 = vpop.f32.mrf.mxu0
  %v537 = vadd.f32 %v452, %v536
  %v538 = vpop.f32.mrf.mxu0
  %539 = vmatprep.mubr.f32.mxu0 0.0
  %540 = vmatmul.mubr.f32.gmra.mxu0 %v377
  %v541 = vpop.f32.mrf.mxu0
  %v542 = vadd.f32 %v457, %v541
  %v543 = vpop.f32.mrf.mxu0
  %544 = vmatprep.mubr.f32.mxu0 0.0
  %545 = vmatmul.mubr.f32.gmra.mxu0 %v380
  %v546 = vpop.f32.mrf.mxu0
  %v547 = vadd.f32 %v462, %v546
  %v548 = vpop.f32.mrf.mxu0
  %549 = vmatprep.mubr.f32.mxu0 0.0
  %550 = vmatmul.mubr.f32.gmra.mxu0 %v383
  %v551 = vpop.f32.mrf.mxu0
  %v552 = vadd.f32 %v467, %v551
  %v553 = vpop.f32.mrf.mxu0
  %554 = vdwg.mxu0
  %v555 = vld [vmem:[%s6] sm:$0xff]
  %v556 = vld [vmem:[%s6 + $0x8] sm:$0xff]
  %v557 = vld [vmem:[%s6 + $0x10] sm:$0xff]
  %v558 = vld [vmem:[%s6 + $0x18] sm:$0xff]
  %560 = vset.pattern.permute.xlu0 0
  %561 = vperm.xlu0 %560, %v555
  %v562 = vpop.permute.xlu0 %561
  %565 = vset.pattern.permute.xlu0 0
  %566 = vperm.xlu0 %565, %v556
  %v567 = vpop.permute.xlu0 %566
  %570 = vset.pattern.permute.xlu0 0
  %571 = vperm.xlu0 %570, %v557
  %v572 = vpop.permute.xlu0 %571
  %575 = vset.pattern.permute.xlu0 0
  %576 = vperm.xlu0 %575, %v558
  %v577 = vpop.permute.xlu0 %576
  %v579 = vmul.f32 %v537, %v562
  %v580 = vmul.f32 %v542, %v567
  %v581 = vmul.f32 %v547, %v572
  %v582 = vmul.f32 %v552, %v577
  %v583 = vld [vmem:[%s7] sm:$0xff]
  %v584 = vld [vmem:[%s7 + $0x8] sm:$0xff]
  %v585 = vld [vmem:[%s7 + $0x10] sm:$0xff]
  %v586 = vld [vmem:[%s7 + $0x18] sm:$0xff]
  %588 = vset.pattern.permute.xlu0 0
  %589 = vperm.xlu0 %588, %v583
  %v590 = vpop.permute.xlu0 %589
  %593 = vset.pattern.permute.xlu0 0
  %594 = vperm.xlu0 %593, %v584
  %v595 = vpop.permute.xlu0 %594
  %598 = vset.pattern.permute.xlu0 0
  %599 = vperm.xlu0 %598, %v585
  %v600 = vpop.permute.xlu0 %599
  %603 = vset.pattern.permute.xlu0 0
  %604 = vperm.xlu0 %603, %v586
  %v605 = vpop.permute.xlu0 %604
  %v607 = vadd.f32 %v579, %v590
  %v608 = vadd.f32 %v580, %v595
  %v609 = vadd.f32 %v581, %v600
  %v610 = vadd.f32 %v582, %v605
  %v611 = vmax.f32 %v607, 0.0
  %v612 = vmax.f32 %v608, 0.0
  %v613 = vmax.f32 %v609, 0.0
  %v614 = vmax.f32 %v610, 0.0
  %615 = vst [vmem:[%s9] sm:$0xff] %v611
  %616 = vst [vmem:[%s9 + $0x8] sm:$0xff] %v612
  %617 = vst [vmem:[%s9 + $0x10] sm:$0xff] %v613
  %618 = vst [vmem:[%s9 + $0x18] sm:$0xff] %v614
  // Predicated region
  $region34: #{hrmodule_m2mrf_forward.4} parent=0 // pred_check
    _
  $region35: #{hrmodule_m2mrf_forward.4} parent=0 // pred_check_branch
    %620 = sbr.rel (0) target = $region37
  $region36: #{hrmodule_m2mrf_forward.4} parent=0 // pred_region
    _
  $region37: #{hrmodule_m2mrf_forward.4} parent=0 // pred_fallthru
    _
  // Predicated region
  $region38: #{hrmodule_m2mrf_forward.4} parent=0 // pred_check
    _
  $region39: #{hrmodule_m2mrf_forward.4} parent=0 // pred_check_branch
    %622 = sbr.rel (0) target = $region41
  $region40: #{hrmodule_m2mrf_forward.4} parent=0 // pred_region
    _
  $region41: #{hrmodule_m2mrf_forward.4} parent=0 // pred_fallthru
    _
  // Predicated region
  $region42: #{hrmodule_m2mrf_forward.4} parent=0 // pred_check
    _
  $region43: #{hrmodule_m2mrf_forward.4} parent=0 // pred_check_branch
    %624 = sbr.rel (0) target = $region45
  $region44: #{hrmodule_m2mrf_forward.4} parent=0 // pred_region
    _
  $region45: #{hrmodule_m2mrf_forward.4} parent=0 // pred_fallthru
    _
  // Predicated region
  $region46: #{hrmodule_m2mrf_forward.4} parent=0 // pred_check
    _
  $region47: #{hrmodule_m2mrf_forward.4} parent=0 // pred_check_branch
    %626 = sbr.rel (0) target = $region49
  $region48: #{hrmodule_m2mrf_forward.4} parent=0 // pred_region
    _
  $region49: #{hrmodule_m2mrf_forward.4} parent=0 // pred_fallthru
    _

// kernel: hrmodule_m2mrf_forward.5
$region0: #{hrmodule_m2mrf_forward.5}
  #allocation0 [shape = 'u32[]', space=smem, size = 0x4, offset = 0x4, fixed_abs, tag = 'smem constant byte address 0x4 - core index']
  #allocation1 [shape = 'u32[144,128]{1,0:T(1,128)}', space=vmem, size = 0x12000, scoped, tag = 'internal scratch']
  %s0 = inlined_call_operand.vmem [shape: f32[144,512], index: 0, kind: input, shape index: {}]
  %s1 = inlined_call_operand.vmem [shape: f32[16,144], index: 1, kind: input, shape index: {}]
  %s2 = inlined_call_operand.vmem [shape: f32[16,1], index: 2, kind: input, shape index: {}]
  %s3 = inlined_call_operand.vmem [shape: f32[16,1], index: 3, kind: input, shape index: {}]
  %s4 = inlined_call_operand.vmem [shape: f32[16,512], index: 4, kind: input, shape index: {}]
  %s5 = inlined_call_operand.vmem [shape: f32[288,128], index: 5, kind: input, shape index: {}]
  %s6 = inlined_call_operand.vmem [shape: f32[32,288], index: 6, kind: input, shape index: {}]
  %s7 = inlined_call_operand.vmem [shape: f32[32,1], index: 7, kind: input, shape index: {}]
  %s8 = inlined_call_operand.vmem [shape: f32[32,1], index: 8, kind: input, shape index: {}]
  %s9 = inlined_call_operand.vmem [shape: f32[32,128], index: 9, kind: input, shape index: {}]
  %s10 = inlined_call_operand.vmem [shape: f32[16,32], index: 10, kind: input, shape index: {}]
  %s11 = inlined_call_operand.vmem [shape: f32[16,1], index: 11, kind: input, shape index: {}]
  %s12 = inlined_call_operand.vmem [shape: f32[16,1], index: 12, kind: input, shape index: {}]
  %s13 = inlined_call_operand.vmem [shape: f32[8,16], index: 13, kind: input, shape index: {}]
  %s14 = inlined_call_operand.vmem [shape: f32[8,1], index: 14, kind: input, shape index: {}]
  %s15 = inlined_call_operand.vmem [shape: f32[8,16], index: 15, kind: input, shape index: {}]
  %s16 = inlined_call_operand.vmem [shape: f32[8,1], index: 16, kind: input, shape index: {}]
  %s17 = inlined_call_operand.vmem [shape: f32[16,512], index: 17, kind: output, shape index: {0}]
  %s18 = inlined_call_operand.vmem [shape: f32[32,128], index: 18, kind: output, shape index: {1}]
  %s19 = inlined_call_operand.vmem [shape: f32[8,128], index: 19, kind: output, shape index: {2}]
  %s20 = inlined_call_operand.vmem [shape: f32[8,512], index: 20, kind: output, shape index: {3}]
  %21 = xla_tuple %s17, %s18, %s19, %s20
  %s22 = sld [smem:[#allocation0]]
  $region102: #{hrmodule_m2mrf_forward.5} parent=0
    _
  %s24 = ssub.s32 1, %s22
  %s25 = scalar_select 0, %s24, %s22
  // Predicated region
  $region2: #{hrmodule_m2mrf_forward.5} parent=0 // pred_check
    _
  $region3: #{hrmodule_m2mrf_forward.5} parent=0 // pred_check_branch
    %27 = sbr.rel (0) target = $region5
  $region4: #{hrmodule_m2mrf_forward.5} parent=0 // pred_region
    _
  $region5: #{hrmodule_m2mrf_forward.5} parent=0 // pred_fallthru
    _
  // Predicated region
  $region6: #{hrmodule_m2mrf_forward.5} parent=0 // pred_check
    _
  $region7: #{hrmodule_m2mrf_forward.5} parent=0 // pred_check_branch
    %29 = sbr.rel (0) target = $region9
  $region8: #{hrmodule_m2mrf_forward.5} parent=0 // pred_region
    _
  $region9: #{hrmodule_m2mrf_forward.5} parent=0 // pred_fallthru
    _
  // Predicated region
  $region10: #{hrmodule_m2mrf_forward.5} parent=0 // pred_check
    _
  $region11: #{hrmodule_m2mrf_forward.5} parent=0 // pred_check_branch
    %31 = sbr.rel (0) target = $region13
  $region12: #{hrmodule_m2mrf_forward.5} parent=0 // pred_region
    _
  $region13: #{hrmodule_m2mrf_forward.5} parent=0 // pred_fallthru
    _
  // Predicated region
  $region14: #{hrmodule_m2mrf_forward.5} parent=0 // pred_check
    _
  $region15: #{hrmodule_m2mrf_forward.5} parent=0 // pred_check_branch
    %33 = sbr.rel (0) target = $region17
  $region16: #{hrmodule_m2mrf_forward.5} parent=0 // pred_region
    _
  $region17: #{hrmodule_m2mrf_forward.5} parent=0 // pred_fallthru
    _
  // Predicated region
  $region18: #{hrmodule_m2mrf_forward.5} parent=0 // pred_check
    _
  $region19: #{hrmodule_m2mrf_forward.5} parent=0 // pred_check_branch
    %35 = sbr.rel (0) target = $region21
  $region20: #{hrmodule_m2mrf_forward.5} parent=0 // pred_region
    _
  $region21: #{hrmodule_m2mrf_forward.5} parent=0 // pred_fallthru
    _
  // Predicated region
  $region22: #{hrmodule_m2mrf_forward.5} parent=0 // pred_check
    _
  $region23: #{hrmodule_m2mrf_forward.5} parent=0 // pred_check_branch
    %37 = sbr.rel (0) target = $region25
  $region24: #{hrmodule_m2mrf_forward.5} parent=0 // pred_region
    _
  $region25: #{hrmodule_m2mrf_forward.5} parent=0 // pred_fallthru
    _
  // Predicated region
  $region26: #{hrmodule_m2mrf_forward.5} parent=0 // pred_check
    _
  $region27: #{hrmodule_m2mrf_forward.5} parent=0 // pred_check_branch
    %39 = sbr.rel (0) target = $region29
  $region28: #{hrmodule_m2mrf_forward.5} parent=0 // pred_region
    _
  $region29: #{hrmodule_m2mrf_forward.5} parent=0 // pred_fallthru
    _
  // Predicated region
  $region30: #{hrmodule_m2mrf_forward.5} parent=0 // pred_check
    _
  $region31: #{hrmodule_m2mrf_forward.5} parent=0 // pred_check_branch
    %41 = sbr.rel (0) target = $region33
  $region32: #{hrmodule_m2mrf_forward.5} parent=0 // pred_region
    _
  $region33: #{hrmodule_m2mrf_forward.5} parent=0 // pred_fallthru
    _
  // Predicated region
  $region34: #{hrmodule_m2mrf_forward.5} parent=0 // pred_check
    _
  $region35: #{hrmodule_m2mrf_forward.5} parent=0 // pred_check_branch
    %43 = sbr.rel (0) target = $region37
  $region36: #{hrmodule_m2mrf_forward.5} parent=0 // pred_region
    _
  $region37: #{hrmodule_m2mrf_forward.5} parent=0 // pred_fallthru
    _
  // Predicated region
  $region38: #{hrmodule_m2mrf_forward.5} parent=0 // pred_check
    _
  $region39: #{hrmodule_m2mrf_forward.5} parent=0 // pred_check_branch
    %45 = sbr.rel (0) target = $region41
  $region40: #{hrmodule_m2mrf_forward.5} parent=0 // pred_region
    _
  $region41: #{hrmodule_m2mrf_forward.5} parent=0 // pred_fallthru
    _
  // Predicated region
  $region42: #{hrmodule_m2mrf_forward.5} parent=0 // pred_check
    _
  $region43: #{hrmodule_m2mrf_forward.5} parent=0 // pred_check_branch
    %47 = sbr.rel (0) target = $region45
  $region44: #{hrmodule_m2mrf_forward.5} parent=0 // pred_region
    _
  $region45: #{hrmodule_m2mrf_forward.5} parent=0 // pred_fallthru
    _
  // Predicated region
  $region46: #{hrmodule_m2mrf_forward.5} parent=0 // pred_check
    _
  $region47: #{hrmodule_m2mrf_forward.5} parent=0 // pred_check_branch
    %49 = sbr.rel (0) target = $region49
  $region48: #{hrmodule_m2mrf_forward.5} parent=0 // pred_region
    _
  $region49: #{hrmodule_m2mrf_forward.5} parent=0 // pred_fallthru
    _
  // Predicated region
  $region50: #{hrmodule_m2mrf_forward.5} parent=0 // pred_check
    _
  $region51: #{hrmodule_m2mrf_forward.5} parent=0 // pred_check_branch
    %51 = sbr.rel (0) target = $region53
  $region52: #{hrmodule_m2mrf_forward.5} parent=0 // pred_region
    _
  $region53: #{hrmodule_m2mrf_forward.5} parent=0 // pred_fallthru
    _
  // Predicated region
  $region54: #{hrmodule_m2mrf_forward.5} parent=0 // pred_check
    _
  $region55: #{hrmodule_m2mrf_forward.5} parent=0 // pred_check_branch
    %53 = sbr.rel (0) target = $region57
  $region56: #{hrmodule_m2mrf_forward.5} parent=0 // pred_region
    _
  $region57: #{hrmodule_m2mrf_forward.5} parent=0 // pred_fallthru
    _
  // Predicated region
  $region58: #{hrmodule_m2mrf_forward.5} parent=0 // pred_check
    _
  $region59: #{hrmodule_m2mrf_forward.5} parent=0 // pred_check_branch
    %55 = sbr.rel (0) target = $region61
  $region60: #{hrmodule_m2mrf_forward.5} parent=0 // pred_region
    _
  $region61: #{hrmodule_m2mrf_forward.5} parent=0 // pred_fallthru
    _
  // Predicated region
  $region62: #{hrmodule_m2mrf_forward.5} parent=0 // pred_check
    _
  $region63: #{hrmodule_m2mrf_forward.5} parent=0 // pred_check_branch
    %57 = sbr.rel (0) target = $region65
  $region64: #{hrmodule_m2mrf_forward.5} parent=0 // pred_region
    _
  $region65: #{hrmodule_m2mrf_forward.5} parent=0 // pred_fallthru
    _
  // Predicated region
  $region66: #{hrmodule_m2mrf_forward.5} parent=0 // pred_check
    _
  $region67: #{hrmodule_m2mrf_forward.5} parent=0 // pred_check_branch
    %59 = sbr.rel (0) target = $region69
  $region68: #{hrmodule_m2mrf_forward.5} parent=0 // pred_region
    _
  $region69: #{hrmodule_m2mrf_forward.5} parent=0 // pred_fallthru
    _
  %v60 = vld [vmem:[%s1] sm:$0xff]
  %v61 = vld [vmem:[%s1 + $0x8] sm:$0xff]
  %v62 = vld [vmem:[%s1 + $0x10] sm:$0xff]
  %v63 = vld [vmem:[%s1 + $0x18] sm:$0xff]
  %v64 = vld [vmem:[%s0] sm:$0xff]
  %v65 = vld [vmem:[%s0 + $0x8] sm:$0xff]
  %v66 = vld [vmem:[%s0 + $0x10] sm:$0xff]
  %v67 = vld [vmem:[%s0 + $0x18] sm:$0xff]
  %v68 = vld [vmem:[%s0 + $0x20] sm:$0xff]
  %v69 = vld [vmem:[%s0 + $0x28] sm:$0xff]
  %v70 = vld [vmem:[%s0 + $0x30] sm:$0xff]
  %v71 = vld [vmem:[%s0 + $0x38] sm:$0xff]
  %v72 = vld [vmem:[%s0 + $0x40] sm:$0xff]
  %v73 = vld [vmem:[%s0 + $0x48] sm:$0xff]
  %v74 = vld [vmem:[%s0 + $0x50] sm:$0xff]
  %v75 = vld [vmem:[%s0 + $0x58] sm:$0xff]
  %v76 = vld [vmem:[%s0 + $0x60] sm:$0xff]
  %v77 = vld [vmem:[%s0 + $0x68] sm:$0xff]
  %v78 = vld [vmem:[%s0 + $0x70] sm:$0xff]
  %v79 = vld [vmem:[%s0 + $0x78] sm:$0xff]
  %v80 = vld [vmem:[%s0 + $0x80] sm:$0xff]
  %v81 = vld [vmem:[%s0 + $0x88] sm:$0xff]
  %v82 = vld [vmem:[%s0 + $0x90] sm:$0xff]
  %v83 = vld [vmem:[%s0 + $0x98] sm:$0xff]
  %v84 = vld [vmem:[%s0 + $0xa0] sm:$0xff]
  %v85 = vld [vmem:[%s0 + $0xa8] sm:$0xff]
  %v86 = vld [vmem:[%s0 + $0xb0] sm:$0xff]
  %v87 = vld [vmem:[%s0 + $0xb8] sm:$0xff]
  %v88 = vld [vmem:[%s0 + $0xc0] sm:$0xff]
  %v89 = vld [vmem:[%s0 + $0xc8] sm:$0xff]
  %v90 = vld [vmem:[%s0 + $0xd0] sm:$0xff]
  %v91 = vld [vmem:[%s0 + $0xd8] sm:$0xff]
  %v92 = vld [vmem:[%s0 + $0xe0] sm:$0xff]
  %v93 = vld [vmem:[%s0 + $0xe8] sm:$0xff]
  %v94 = vld [vmem:[%s0 + $0xf0] sm:$0xff]
  %v95 = vld [vmem:[%s0 + $0xf8] sm:$0xff]
  %v96 = vld [vmem:[%s0 + $0x100] sm:$0xff]
  %v97 = vld [vmem:[%s0 + $0x108] sm:$0xff]
  %v98 = vld [vmem:[%s0 + $0x110] sm:$0xff]
  %v99 = vld [vmem:[%s0 + $0x118] sm:$0xff]
  %v100 = vld [vmem:[%s0 + $0x120] sm:$0xff]
  %v101 = vld [vmem:[%s0 + $0x128] sm:$0xff]
  %v102 = vld [vmem:[%s0 + $0x130] sm:$0xff]
  %v103 = vld [vmem:[%s0 + $0x138] sm:$0xff]
  %v104 = vld [vmem:[%s0 + $0x140] sm:$0xff]
  %v105 = vld [vmem:[%s0 + $0x148] sm:$0xff]
  %v106 = vld [vmem:[%s0 + $0x150] sm:$0xff]
  %v107 = vld [vmem:[%s0 + $0x158] sm:$0xff]
  %v108 = vld [vmem:[%s0 + $0x160] sm:$0xff]
  %v109 = vld [vmem:[%s0 + $0x168] sm:$0xff]
  %v110 = vld [vmem:[%s0 + $0x170] sm:$0xff]
  %v111 = vld [vmem:[%s0 + $0x178] sm:$0xff]
  %v112 = vld [vmem:[%s0 + $0x180] sm:$0xff]
  %v113 = vld [vmem:[%s0 + $0x188] sm:$0xff]
  %v114 = vld [vmem:[%s0 + $0x190] sm:$0xff]
  %v115 = vld [vmem:[%s0 + $0x198] sm:$0xff]
  %v116 = vld [vmem:[%s0 + $0x1a0] sm:$0xff]
  %v117 = vld [vmem:[%s0 + $0x1a8] sm:$0xff]
  %v118 = vld [vmem:[%s0 + $0x1b0] sm:$0xff]
  %v119 = vld [vmem:[%s0 + $0x1b8] sm:$0xff]
  %v120 = vld [vmem:[%s0 + $0x1c0] sm:$0xff]
  %v121 = vld [vmem:[%s0 + $0x1c8] sm:$0xff]
  %v122 = vld [vmem:[%s0 + $0x1d0] sm:$0xff]
  %v123 = vld [vmem:[%s0 + $0x1d8] sm:$0xff]
  %v124 = vld [vmem:[%s0 + $0x1e0] sm:$0xff]
  %v125 = vld [vmem:[%s0 + $0x1e8] sm:$0xff]
  %v126 = vld [vmem:[%s0 + $0x1f0] sm:$0xff]
  %v127 = vld [vmem:[%s0 + $0x1f8] sm:$0xff]
  %v128 = vld [vmem:[%s0 + $0x200] sm:$0xff]
  %v129 = vld [vmem:[%s0 + $0x208] sm:$0xff]
  %v130 = vld [vmem:[%s0 + $0x210] sm:$0xff]
  %v131 = vld [vmem:[%s0 + $0x218] sm:$0xff]
  %v132 = vld [vmem:[%s0 + $0x220] sm:$0xff]
  %v133 = vld [vmem:[%s0 + $0x228] sm:$0xff]
  %v134 = vld [vmem:[%s0 + $0x230] sm:$0xff]
  %v135 = vld [vmem:[%s0 + $0x238] sm:$0xff]
  %vm136 = vcmask 130048
  %v138 = vsel %vm136, %v61, 0
  %v141 = vsel %vm136, %v63, 0
  %143 = vmatprep.subr.mxu0 %v125
  %144 = vmatpush1.msra.mxu0 %v124
  %145 = vmatprep.subr.mxu0 %v121
  %146 = vmatpush1.msra.mxu0 %v120
  %147 = vmatprep.subr.mxu0 %v117
  %148 = vmatpush1.msra.mxu0 %v116
  %149 = vmatprep.subr.mxu0 %v113
  %150 = vmatpush1.msra.mxu0 %v112
  %151 = vmatprep.subr.mxu0 %v109
  %152 = vmatpush1.msra.mxu0 %v108
  %153 = vmatprep.subr.mxu0 %v105
  %154 = vmatpush1.msra.mxu0 %v104
  %155 = vmatprep.subr.mxu0 %v101
  %156 = vmatpush1.msra.mxu0 %v100
  %157 = vmatprep.subr.mxu0 %v97
  %158 = vmatpush1.msra.mxu0 %v96
  %159 = vmatprep.subr.mxu0 %v93
  %160 = vmatpush1.msra.mxu0 %v92
  %161 = vmatprep.subr.mxu0 %v89
  %162 = vmatpush1.msra.mxu0 %v88
  %163 = vmatprep.subr.mxu0 %v85
  %164 = vmatpush1.msra.mxu0 %v84
  %165 = vmatprep.subr.mxu0 %v81
  %166 = vmatpush1.msra.mxu0 %v80
  %167 = vmatprep.subr.mxu0 %v77
  %168 = vmatpush1.msra.mxu0 %v76
  %169 = vmatprep.subr.mxu0 %v73
  %170 = vmatpush1.msra.mxu0 %v72
  %171 = vmatprep.subr.mxu0 %v69
  %172 = vmatpush1.msra.mxu0 %v68
  %173 = vmatprep.subr.mxu0 %v65
  %174 = vmatpush1.msra.mxu0 %v64
  %175 = vmatprep.subr.mxu0 0.0
  %176 = vmatpush2.msra.mxu0 0.0
  %177 = vmatprep.subr.mxu0 0.0
  %178 = vmatpush2.msra.mxu0 0.0
  %179 = vmatprep.subr.mxu0 0.0
  %180 = vmatpush2.msra.mxu0 0.0
  %181 = vmatprep.subr.mxu0 0.0
  %182 = vmatpush2.msra.mxu0 0.0
  %183 = vmatprep.subr.mxu0 0.0
  %184 = vmatpush2.msra.mxu0 0.0
  %185 = vmatprep.subr.mxu0 0.0
  %186 = vmatpush2.msra.mxu0 0.0
  %187 = vmatprep.subr.mxu0 0.0
  %188 = vmatpush2.msra.mxu0 0.0
  %189 = vmatprep.subr.mxu0 0.0
  %190 = vmatpush2.msra.mxu0 0.0
  %191 = vmatprep.subr.mxu0 0.0
  %192 = vmatpush2.msra.mxu0 0.0
  %193 = vmatprep.subr.mxu0 0.0
  %194 = vmatpush2.msra.mxu0 0.0
  %195 = vmatprep.subr.mxu0 0.0
  %196 = vmatpush2.msra.mxu0 0.0
  %197 = vmatprep.subr.mxu0 0.0
  %198 = vmatpush2.msra.mxu0 0.0
  %199 = vmatprep.subr.mxu0 0.0
  %200 = vmatpush2.msra.mxu0 0.0
  %201 = vmatprep.subr.mxu0 0.0
  %202 = vmatpush2.msra.mxu0 0.0
  %203 = vmatprep.subr.mxu0 %v133
  %204 = vmatpush2.msra.mxu0 %v132
  %205 = vmatprep.subr.mxu0 %v129
  %206 = vmatpush2.msra.mxu0 %v128
  %207 = vmatprep.mubr.f32.mxu0 %v138
  %208 = vmatmul.mubr.f32.gmra.mxu0 %v60
  %v209 = vpop.f32.mrf.mxu0
  %v210 = vadd.f32 0.0, %v209
  %v211 = vpop.f32.mrf.mxu0
  %v212 = vadd.f32 0.0, %v211
  %213 = vmatprep.mubr.f32.mxu0 %v141
  %214 = vmatmul.mubr.f32.gmra.mxu0 %v62
  %v215 = vpop.f32.mrf.mxu0
  %v216 = vadd.f32 0.0, %v215
  %v217 = vpop.f32.mrf.mxu0
  %v218 = vadd.f32 0.0, %v217
  %219 = vdwg.mxu0
  %220 = vmatprep.subr.mxu0 %v127
  %221 = vmatpush1.msra.mxu0 %v126
  %222 = vmatprep.subr.mxu0 %v123
  %223 = vmatpush1.msra.mxu0 %v122
  %224 = vmatprep.subr.mxu0 %v119
  %225 = vmatpush1.msra.mxu0 %v118
  %226 = vmatprep.subr.mxu0 %v115
  %227 = vmatpush1.msra.mxu0 %v114
  %228 = vmatprep.subr.mxu0 %v111
  %229 = vmatpush1.msra.mxu0 %v110
  %230 = vmatprep.subr.mxu0 %v107
  %231 = vmatpush1.msra.mxu0 %v106
  %232 = vmatprep.subr.mxu0 %v103
  %233 = vmatpush1.msra.mxu0 %v102
  %234 = vmatprep.subr.mxu0 %v99
  %235 = vmatpush1.msra.mxu0 %v98
  %236 = vmatprep.subr.mxu0 %v95
  %237 = vmatpush1.msra.mxu0 %v94
  %238 = vmatprep.subr.mxu0 %v91
  %239 = vmatpush1.msra.mxu0 %v90
  %240 = vmatprep.subr.mxu0 %v87
  %241 = vmatpush1.msra.mxu0 %v86
  %242 = vmatprep.subr.mxu0 %v83
  %243 = vmatpush1.msra.mxu0 %v82
  %244 = vmatprep.subr.mxu0 %v79
  %245 = vmatpush1.msra.mxu0 %v78
  %246 = vmatprep.subr.mxu0 %v75
  %247 = vmatpush1.msra.mxu0 %v74
  %248 = vmatprep.subr.mxu0 %v71
  %249 = vmatpush1.msra.mxu0 %v70
  %250 = vmatprep.subr.mxu0 %v67
  %251 = vmatpush1.msra.mxu0 %v66
  %252 = vmatprep.subr.mxu0 0.0
  %253 = vmatpush2.msra.mxu0 0.0
  %254 = vmatprep.subr.mxu0 0.0
  %255 = vmatpush2.msra.mxu0 0.0
  %256 = vmatprep.subr.mxu0 0.0
  %257 = vmatpush2.msra.mxu0 0.0
  %258 = vmatprep.subr.mxu0 0.0
  %259 = vmatpush2.msra.mxu0 0.0
  %260 = vmatprep.subr.mxu0 0.0
  %261 = vmatpush2.msra.mxu0 0.0
  %262 = vmatprep.subr.mxu0 0.0
  %263 = vmatpush2.msra.mxu0 0.0
  %264 = vmatprep.subr.mxu0 0.0
  %265 = vmatpush2.msra.mxu0 0.0
  %266 = vmatprep.subr.mxu0 0.0
  %267 = vmatpush2.msra.mxu0 0.0
  %268 = vmatprep.subr.mxu0 0.0
  %269 = vmatpush2.msra.mxu0 0.0
  %270 = vmatprep.subr.mxu0 0.0
  %271 = vmatpush2.msra.mxu0 0.0
  %272 = vmatprep.subr.mxu0 0.0
  %273 = vmatpush2.msra.mxu0 0.0
  %274 = vmatprep.subr.mxu0 0.0
  %275 = vmatpush2.msra.mxu0 0.0
  %276 = vmatprep.subr.mxu0 0.0
  %277 = vmatpush2.msra.mxu0 0.0
  %278 = vmatprep.subr.mxu0 0.0
  %279 = vmatpush2.msra.mxu0 0.0
  %280 = vmatprep.subr.mxu0 %v135
  %281 = vmatpush2.msra.mxu0 %v134
  %282 = vmatprep.subr.mxu0 %v131
  %283 = vmatpush2.msra.mxu0 %v130
  %284 = vmatprep.mubr.f32.mxu0 %v138
  %285 = vmatmul.mubr.f32.gmra.mxu0 %v60
  %v286 = vpop.f32.mrf.mxu0
  %v287 = vadd.f32 0.0, %v286
  %v288 = vpop.f32.mrf.mxu0
  %v289 = vadd.f32 0.0, %v288
  %290 = vmatprep.mubr.f32.mxu0 %v141
  %291 = vmatmul.mubr.f32.gmra.mxu0 %v62
  %v292 = vpop.f32.mrf.mxu0
  %v293 = vadd.f32 0.0, %v292
  %v294 = vpop.f32.mrf.mxu0
  %v295 = vadd.f32 0.0, %v294
  %296 = vdwg.mxu0
  %v297 = vld [vmem:[%s2] sm:$0xff]
  %v298 = vld [vmem:[%s2 + $0x8] sm:$0xff]
  %300 = vset.pattern.permute.xlu0 0
  %301 = vperm.xlu0 %300, %v297
  %v302 = vpop.permute.xlu0 %301
  %305 = vset.pattern.permute.xlu0 0
  %306 = vperm.xlu0 %305, %v298
  %v307 = vpop.permute.xlu0 %306
  %v309 = vmul.f32 %v210, %v302
  %v310 = vmul.f32 %v212, %v302
  %v311 = vmul.f32 %v287, %v302
  %v312 = vmul.f32 %v289, %v302
  %v313 = vmul.f32 %v216, %v307
  %v314 = vmul.f32 %v218, %v307
  %v315 = vmul.f32 %v293, %v307
  %v316 = vmul.f32 %v295, %v307
  %v317 = vld [vmem:[%s3] sm:$0xff]
  %v318 = vld [vmem:[%s3 + $0x8] sm:$0xff]
  %320 = vset.pattern.permute.xlu0 0
  %321 = vperm.xlu0 %320, %v317
  %v322 = vpop.permute.xlu0 %321
  %325 = vset.pattern.permute.xlu0 0
  %326 = vperm.xlu0 %325, %v318
  %v327 = vpop.permute.xlu0 %326
  %v329 = vadd.f32 %v309, %v322
  %v330 = vadd.f32 %v310, %v322
  %v331 = vadd.f32 %v311, %v322
  %v332 = vadd.f32 %v312, %v322
  %v333 = vadd.f32 %v313, %v327
  %v334 = vadd.f32 %v314, %v327
  %v335 = vadd.f32 %v315, %v327
  %v336 = vadd.f32 %v316, %v327
  %v337 = vld [vmem:[%s4] sm:$0xff]
  %v338 = vld [vmem:[%s4 + $0x8] sm:$0xff]
  %v339 = vld [vmem:[%s4 + $0x10] sm:$0xff]
  %v340 = vld [vmem:[%s4 + $0x18] sm:$0xff]
  %v341 = vld [vmem:[%s4 + $0x20] sm:$0xff]
  %v342 = vld [vmem:[%s4 + $0x28] sm:$0xff]
  %v343 = vld [vmem:[%s4 + $0x30] sm:$0xff]
  %v344 = vld [vmem:[%s4 + $0x38] sm:$0xff]
  %v345 = vadd.f32 %v329, %v337
  %v346 = vadd.f32 %v330, %v338
  %v347 = vadd.f32 %v331, %v339
  %v348 = vadd.f32 %v332, %v340
  %v349 = vadd.f32 %v333, %v341
  %v350 = vadd.f32 %v334, %v342
  %v351 = vadd.f32 %v335, %v343
  %v352 = vadd.f32 %v336, %v344
  %v353 = vmax.f32 %v345, 0.0
  %v354 = vmax.f32 %v346, 0.0
  %v355 = vmax.f32 %v347, 0.0
  %v356 = vmax.f32 %v348, 0.0
  %v357 = vmax.f32 %v349, 0.0
  %v358 = vmax.f32 %v350, 0.0
  %v359 = vmax.f32 %v351, 0.0
  %v360 = vmax.f32 %v352, 0.0
  %361 = vst [vmem:[%s17] sm:$0xff] %v353
  %362 = vst [vmem:[%s17 + $0x8] sm:$0xff] %v354
  %363 = vst [vmem:[%s17 + $0x10] sm:$0xff] %v355
  %364 = vst [vmem:[%s17 + $0x18] sm:$0xff] %v356
  %365 = vst [vmem:[%s17 + $0x20] sm:$0xff] %v357
  %366 = vst [vmem:[%s17 + $0x28] sm:$0xff] %v358
  %367 = vst [vmem:[%s17 + $0x30] sm:$0xff] %v359
  %368 = vst [vmem:[%s17 + $0x38] sm:$0xff] %v360
  %v369 = vld [vmem:[%s6] sm:$0xff]
  %v370 = vld [vmem:[%s6 + $0x8] sm:$0xff]
  %v371 = vld [vmem:[%s6 + $0x10] sm:$0xff]
  %v372 = vld [vmem:[%s6 + $0x18] sm:$0xff]
  %v373 = vld [vmem:[%s6 + $0x20] sm:$0xff]
  %v374 = vld [vmem:[%s6 + $0x28] sm:$0xff]
  %v375 = vld [vmem:[%s6 + $0x30] sm:$0xff]
  %v376 = vld [vmem:[%s6 + $0x38] sm:$0xff]
  %v377 = vld [vmem:[%s6 + $0x40] sm:$0xff]
  %v378 = vld [vmem:[%s6 + $0x48] sm:$0xff]
  %v379 = vld [vmem:[%s6 + $0x50] sm:$0xff]
  %v380 = vld [vmem:[%s6 + $0x58] sm:$0xff]
  %v381 = vld [vmem:[%s5] sm:$0xff]
  %v382 = vld [vmem:[%s5 + $0x8] sm:$0xff]
  %v383 = vld [vmem:[%s5 + $0x10] sm:$0xff]
  %v384 = vld [vmem:[%s5 + $0x18] sm:$0xff]
  %v385 = vld [vmem:[%s5 + $0x20] sm:$0xff]
  %v386 = vld [vmem:[%s5 + $0x28] sm:$0xff]
  %v387 = vld [vmem:[%s5 + $0x30] sm:$0xff]
  %v388 = vld [vmem:[%s5 + $0x38] sm:$0xff]
  %v389 = vld [vmem:[%s5 + $0x40] sm:$0xff]
  %v390 = vld [vmem:[%s5 + $0x48] sm:$0xff]
  %v391 = vld [vmem:[%s5 + $0x50] sm:$0xff]
  %v392 = vld [vmem:[%s5 + $0x58] sm:$0xff]
  %v393 = vld [vmem:[%s5 + $0x60] sm:$0xff]
  %v394 = vld [vmem:[%s5 + $0x68] sm:$0xff]
  %v395 = vld [vmem:[%s5 + $0x70] sm:$0xff]
  %v396 = vld [vmem:[%s5 + $0x78] sm:$0xff]
  %v397 = vld [vmem:[%s5 + $0x80] sm:$0xff]
  %v398 = vld [vmem:[%s5 + $0x88] sm:$0xff]
  %v399 = vld [vmem:[%s5 + $0x90] sm:$0xff]
  %v400 = vld [vmem:[%s5 + $0x98] sm:$0xff]
  %v401 = vld [vmem:[%s5 + $0xa0] sm:$0xff]
  %v402 = vld [vmem:[%s5 + $0xa8] sm:$0xff]
  %v403 = vld [vmem:[%s5 + $0xb0] sm:$0xff]
  %v404 = vld [vmem:[%s5 + $0xb8] sm:$0xff]
  %v405 = vld [vmem:[%s5 + $0xc0] sm:$0xff]
  %v406 = vld [vmem:[%s5 + $0xc8] sm:$0xff]
  %v407 = vld [vmem:[%s5 + $0xd0] sm:$0xff]
  %v408 = vld [vmem:[%s5 + $0xd8] sm:$0xff]
  %v409 = vld [vmem:[%s5 + $0xe0] sm:$0xff]
  %v410 = vld [vmem:[%s5 + $0xe8] sm:$0xff]
  %v411 = vld [vmem:[%s5 + $0xf0] sm:$0xff]
  %v412 = vld [vmem:[%s5 + $0xf8] sm:$0xff]
  %v413 = vld [vmem:[%s5 + $0x100] sm:$0xff]
  %v414 = vld [vmem:[%s5 + $0x108] sm:$0xff]
  %v415 = vld [vmem:[%s5 + $0x110] sm:$0xff]
  %v416 = vld [vmem:[%s5 + $0x118] sm:$0xff]
  %vm417 = vcmask 261120
  %v419 = vsel %vm417, %v371, 0
  %v422 = vsel %vm417, %v374, 0
  %v425 = vsel %vm417, %v377, 0
  %v428 = vsel %vm417, %v380, 0
  %430 = vmatprep.subr.mxu0 0.0
  %431 = vmatpush1.msra.mxu0 %v396
  %432 = vmatprep.subr.mxu0 0.0
  %433 = vmatpush1.msra.mxu0 %v395
  %434 = vmatprep.subr.mxu0 0.0
  %435 = vmatpush1.msra.mxu0 %v394
  %436 = vmatprep.subr.mxu0 0.0
  %437 = vmatpush1.msra.mxu0 %v393
  %438 = vmatprep.subr.mxu0 0.0
  %439 = vmatpush1.msra.mxu0 %v392
  %440 = vmatprep.subr.mxu0 0.0
  %441 = vmatpush1.msra.mxu0 %v391
  %442 = vmatprep.subr.mxu0 0.0
  %443 = vmatpush1.msra.mxu0 %v390
  %444 = vmatprep.subr.mxu0 0.0
  %445 = vmatpush1.msra.mxu0 %v389
  %446 = vmatprep.subr.mxu0 0.0
  %447 = vmatpush1.msra.mxu0 %v388
  %448 = vmatprep.subr.mxu0 0.0
  %449 = vmatpush1.msra.mxu0 %v387
  %450 = vmatprep.subr.mxu0 0.0
  %451 = vmatpush1.msra.mxu0 %v386
  %452 = vmatprep.subr.mxu0 0.0
  %453 = vmatpush1.msra.mxu0 %v385
  %454 = vmatprep.subr.mxu0 0.0
  %455 = vmatpush1.msra.mxu0 %v384
  %456 = vmatprep.subr.mxu0 0.0
  %457 = vmatpush1.msra.mxu0 %v383
  %458 = vmatprep.subr.mxu0 0.0
  %459 = vmatpush1.msra.mxu0 %v382
  %460 = vmatprep.subr.mxu0 0.0
  %461 = vmatpush1.msra.mxu0 %v381
  %462 = vmatprep.subr.mxu0 0.0
  %463 = vmatpush2.msra.mxu0 %v412
  %464 = vmatprep.subr.mxu0 0.0
  %465 = vmatpush2.msra.mxu0 %v411
  %466 = vmatprep.subr.mxu0 0.0
  %467 = vmatpush2.msra.mxu0 %v410
  %468 = vmatprep.subr.mxu0 0.0
  %469 = vmatpush2.msra.mxu0 %v409
  %470 = vmatprep.subr.mxu0 0.0
  %471 = vmatpush2.msra.mxu0 %v408
  %472 = vmatprep.subr.mxu0 0.0
  %473 = vmatpush2.msra.mxu0 %v407
  %474 = vmatprep.subr.mxu0 0.0
  %475 = vmatpush2.msra.mxu0 %v406
  %476 = vmatprep.subr.mxu0 0.0
  %477 = vmatpush2.msra.mxu0 %v405
  %478 = vmatprep.subr.mxu0 0.0
  %479 = vmatpush2.msra.mxu0 %v404
  %480 = vmatprep.subr.mxu0 0.0
  %481 = vmatpush2.msra.mxu0 %v403
  %482 = vmatprep.subr.mxu0 0.0
  %483 = vmatpush2.msra.mxu0 %v402
  %484 = vmatprep.subr.mxu0 0.0
  %485 = vmatpush2.msra.mxu0 %v401
  %486 = vmatprep.subr.mxu0 0.0
  %487 = vmatpush2.msra.mxu0 %v400
  %488 = vmatprep.subr.mxu0 0.0
  %489 = vmatpush2.msra.mxu0 %v399
  %490 = vmatprep.subr.mxu0 0.0
  %491 = vmatpush2.msra.mxu0 %v398
  %492 = vmatprep.subr.mxu0 0.0
  %493 = vmatpush2.msra.mxu0 %v397
  %494 = vmatprep.mubr.f32.mxu0 %v370
  %495 = vmatmul.mubr.f32.gmra.mxu0 %v369
  %v496 = vpop.f32.mrf.mxu0
  %v497 = vadd.f32 0.0, %v496
  %v498 = vpop.f32.mrf.mxu0
  %499 = vmatprep.mubr.f32.mxu0 %v373
  %500 = vmatmul.mubr.f32.gmra.mxu0 %v372
  %v501 = vpop.f32.mrf.mxu0
  %v502 = vadd.f32 0.0, %v501
  %v503 = vpop.f32.mrf.mxu0
  %504 = vmatprep.mubr.f32.mxu0 %v376
  %505 = vmatmul.mubr.f32.gmra.mxu0 %v375
  %v506 = vpop.f32.mrf.mxu0
  %v507 = vadd.f32 0.0, %v506
  %v508 = vpop.f32.mrf.mxu0
  %509 = vmatprep.mubr.f32.mxu0 %v379
  %510 = vmatmul.mubr.f32.gmra.mxu0 %v378
  %v511 = vpop.f32.mrf.mxu0
  %v512 = vadd.f32 0.0, %v511
  %v513 = vpop.f32.mrf.mxu0
  %514 = vdwg.mxu0
  %515 = vmatprep.subr.mxu0 0.0
  %516 = vmatpush1.msra.mxu0 0.0
  %517 = vmatprep.subr.mxu0 0.0
  %518 = vmatpush1.msra.mxu0 0.0
  %519 = vmatprep.subr.mxu0 0.0
  %520 = vmatpush1.msra.mxu0 0.0
  %521 = vmatprep.subr.mxu0 0.0
  %522 = vmatpush1.msra.mxu0 0.0
  %523 = vmatprep.subr.mxu0 0.0
  %524 = vmatpush1.msra.mxu0 0.0
  %525 = vmatprep.subr.mxu0 0.0
  %526 = vmatpush1.msra.mxu0 0.0
  %527 = vmatprep.subr.mxu0 0.0
  %528 = vmatpush1.msra.mxu0 0.0
  %529 = vmatprep.subr.mxu0 0.0
  %530 = vmatpush1.msra.mxu0 0.0
  %531 = vmatprep.subr.mxu0 0.0
  %532 = vmatpush1.msra.mxu0 0.0
  %533 = vmatprep.subr.mxu0 0.0
  %534 = vmatpush1.msra.mxu0 0.0
  %535 = vmatprep.subr.mxu0 0.0
  %536 = vmatpush1.msra.mxu0 0.0
  %537 = vmatprep.subr.mxu0 0.0
  %538 = vmatpush1.msra.mxu0 0.0
  %539 = vmatprep.subr.mxu0 0.0
  %540 = vmatpush1.msra.mxu0 %v416
  %541 = vmatprep.subr.mxu0 0.0
  %542 = vmatpush1.msra.mxu0 %v415
  %543 = vmatprep.subr.mxu0 0.0
  %544 = vmatpush1.msra.mxu0 %v414
  %545 = vmatprep.subr.mxu0 0.0
  %546 = vmatpush1.msra.mxu0 %v413
  %547 = vmatprep.subr.mxu0 0.0
  %548 = vmatpush2.msra.mxu0 0.0
  %549 = vmatprep.subr.mxu0 0.0
  %550 = vmatpush2.msra.mxu0 0.0
  %551 = vmatprep.subr.mxu0 0.0
  %552 = vmatpush2.msra.mxu0 0.0
  %553 = vmatprep.subr.mxu0 0.0
  %554 = vmatpush2.msra.mxu0 0.0
  %555 = vmatprep.subr.mxu0 0.0
  %556 = vmatpush2.msra.mxu0 0.0
  %557 = vmatprep.subr.mxu0 0.0
  %558 = vmatpush2.msra.mxu0 0.0
  %559 = vmatprep.subr.mxu0 0.0
  %560 = vmatpush2.msra.mxu0 0.0
  %561 = vmatprep.subr.mxu0 0.0
  %562 = vmatpush2.msra.mxu0 0.0
  %563 = vmatprep.subr.mxu0 0.0
  %564 = vmatpush2.msra.mxu0 0.0
  %565 = vmatprep.subr.mxu0 0.0
  %566 = vmatpush2.msra.mxu0 0.0
  %567 = vmatprep.subr.mxu0 0.0
  %568 = vmatpush2.msra.mxu0 0.0
  %569 = vmatprep.subr.mxu0 0.0
  %570 = vmatpush2.msra.mxu0 0.0
  %571 = vmatprep.subr.mxu0 0.0
  %572 = vmatpush2.msra.mxu0 0.0
  %573 = vmatprep.subr.mxu0 0.0
  %574 = vmatpush2.msra.mxu0 0.0
  %575 = vmatprep.subr.mxu0 0.0
  %576 = vmatpush2.msra.mxu0 0.0
  %577 = vmatprep.subr.mxu0 0.0
  %578 = vmatpush2.msra.mxu0 0.0
  %579 = vmatprep.mubr.f32.mxu0 0.0
  %580 = vmatmul.mubr.f32.gmra.mxu0 %v419
  %v581 = vpop.f32.mrf.mxu0
  %v582 = vadd.f32 %v497, %v581
  %v583 = vpop.f32.mrf.mxu0
  %584 = vmatprep.mubr.f32.mxu0 0.0
  %585 = vmatmul.mubr.f32.gmra.mxu0 %v422
  %v586 = vpop.f32.mrf.mxu0
  %v587 = vadd.f32 %v502, %v586
  %v588 = vpop.f32.mrf.mxu0
  %589 = vmatprep.mubr.f32.mxu0 0.0
  %590 = vmatmul.mubr.f32.gmra.mxu0 %v425
  %v591 = vpop.f32.mrf.mxu0
  %v592 = vadd.f32 %v507, %v591
  %v593 = vpop.f32.mrf.mxu0
  %594 = vmatprep.mubr.f32.mxu0 0.0
  %595 = vmatmul.mubr.f32.gmra.mxu0 %v428
  %v596 = vpop.f32.mrf.mxu0
  %v597 = vadd.f32 %v512, %v596
  %v598 = vpop.f32.mrf.mxu0
  %599 = vdwg.mxu0
  %v600 = vld [vmem:[%s7] sm:$0xff]
  %v601 = vld [vmem:[%s7 + $0x8] sm:$0xff]
  %v602 = vld [vmem:[%s7 + $0x10] sm:$0xff]
  %v603 = vld [vmem:[%s7 + $0x18] sm:$0xff]
  %605 = vset.pattern.permute.xlu0 0
  %606 = vperm.xlu0 %605, %v600
  %v607 = vpop.permute.xlu0 %606
  %610 = vset.pattern.permute.xlu0 0
  %611 = vperm.xlu0 %610, %v601
  %v612 = vpop.permute.xlu0 %611
  %615 = vset.pattern.permute.xlu0 0
  %616 = vperm.xlu0 %615, %v602
  %v617 = vpop.permute.xlu0 %616
  %620 = vset.pattern.permute.xlu0 0
  %621 = vperm.xlu0 %620, %v603
  %v622 = vpop.permute.xlu0 %621
  %v624 = vmul.f32 %v582, %v607
  %v625 = vmul.f32 %v587, %v612
  %v626 = vmul.f32 %v592, %v617
  %v627 = vmul.f32 %v597, %v622
  %v628 = vld [vmem:[%s8] sm:$0xff]
  %v629 = vld [vmem:[%s8 + $0x8] sm:$0xff]
  %v630 = vld [vmem:[%s8 + $0x10] sm:$0xff]
  %v631 = vld [vmem:[%s8 + $0x18] sm:$0xff]
  %633 = vset.pattern.permute.xlu0 0
  %634 = vperm.xlu0 %633, %v628
  %v635 = vpop.permute.xlu0 %634
  %638 = vset.pattern.permute.xlu0 0
  %639 = vperm.xlu0 %638, %v629
  %v640 = vpop.permute.xlu0 %639
  %643 = vset.pattern.permute.xlu0 0
  %644 = vperm.xlu0 %643, %v630
  %v645 = vpop.permute.xlu0 %644
  %648 = vset.pattern.permute.xlu0 0
  %649 = vperm.xlu0 %648, %v631
  %v650 = vpop.permute.xlu0 %649
  %v652 = vadd.f32 %v624, %v635
  %v653 = vadd.f32 %v625, %v640
  %v654 = vadd.f32 %v626, %v645
  %v655 = vadd.f32 %v627, %v650
  %v656 = vld [vmem:[%s9] sm:$0xff]
  %v657 = vld [vmem:[%s9 + $0x8] sm:$0xff]
  %v658 = vld [vmem:[%s9 + $0x10] sm:$0xff]
  %v659 = vld [vmem:[%s9 + $0x18] sm:$0xff]
  %v660 = vadd.f32 %v652, %v656
  %v661 = vadd.f32 %v653, %v657
  %v662 = vadd.f32 %v654, %v658
  %v663 = vadd.f32 %v655, %v659
  %v664 = vmax.f32 %v660, 0.0
  %v665 = vmax.f32 %v661, 0.0
  %v666 = vmax.f32 %v662, 0.0
  %v667 = vmax.f32 %v663, 0.0
  %668 = vst [vmem:[%s18] sm:$0xff] %v664
  %669 = vst [vmem:[%s18 + $0x8] sm:$0xff] %v665
  %670 = vst [vmem:[%s18 + $0x10] sm:$0xff] %v666
  %671 = vst [vmem:[%s18 + $0x18] sm:$0xff] %v667
  %v672 = vld [vmem:[%s10] sm:$0xff]
  %v673 = vld [vmem:[%s10 + $0x8] sm:$0xff]
  %v675 = vsel %vm417, %v672, 0
  %v678 = vsel %vm417, %v673, 0
  %680 = vmatprep.subr.mxu0 0.0
  %681 = vmatpush1.msra.mxu0 0.0
  %682 = vmatprep.subr.mxu0 0.0
  %683 = vmatpush1.msra.mxu0 0.0
  %684 = vmatprep.subr.mxu0 0.0
  %685 = vmatpush1.msra.mxu0 0.0
  %686 = vmatprep.subr.mxu0 0.0
  %687 = vmatpush1.msra.mxu0 0.0
  %688 = vmatprep.subr.mxu0 0.0
  %689 = vmatpush1.msra.mxu0 0.0
  %690 = vmatprep.subr.mxu0 0.0
  %691 = vmatpush1.msra.mxu0 0.0
  %692 = vmatprep.subr.mxu0 0.0
  %693 = vmatpush1.msra.mxu0 0.0
  %694 = vmatprep.subr.mxu0 0.0
  %695 = vmatpush1.msra.mxu0 0.0
  %696 = vmatprep.subr.mxu0 0.0
  %697 = vmatpush1.msra.mxu0 0.0
  %698 = vmatprep.subr.mxu0 0.0
  %699 = vmatpush1.msra.mxu0 0.0
  %700 = vmatprep.subr.mxu0 0.0
  %701 = vmatpush1.msra.mxu0 0.0
  %702 = vmatprep.subr.mxu0 0.0
  %703 = vmatpush1.msra.mxu0 0.0
  %704 = vmatprep.subr.mxu0 0.0
  %705 = vmatpush1.msra.mxu0 %v667
  %706 = vmatprep.subr.mxu0 0.0
  %707 = vmatpush1.msra.mxu0 %v666
  %708 = vmatprep.subr.mxu0 0.0
  %709 = vmatpush1.msra.mxu0 %v665
  %710 = vmatprep.subr.mxu0 0.0
  %711 = vmatpush1.msra.mxu0 %v664
  %712 = vmatprep.subr.mxu0 0.0
  %713 = vmatpush2.msra.mxu0 0.0
  %714 = vmatprep.subr.mxu0 0.0
  %715 = vmatpush2.msra.mxu0 0.0
  %716 = vmatprep.subr.mxu0 0.0
  %717 = vmatpush2.msra.mxu0 0.0
  %718 = vmatprep.subr.mxu0 0.0
  %719 = vmatpush2.msra.mxu0 0.0
  %720 = vmatprep.subr.mxu0 0.0
  %721 = vmatpush2.msra.mxu0 0.0
  %722 = vmatprep.subr.mxu0 0.0
  %723 = vmatpush2.msra.mxu0 0.0
  %724 = vmatprep.subr.mxu0 0.0
  %725 = vmatpush2.msra.mxu0 0.0
  %726 = vmatprep.subr.mxu0 0.0
  %727 = vmatpush2.msra.mxu0 0.0
  %728 = vmatprep.subr.mxu0 0.0
  %729 = vmatpush2.msra.mxu0 0.0
  %730 = vmatprep.subr.mxu0 0.0
  %731 = vmatpush2.msra.mxu0 0.0
  %732 = vmatprep.subr.mxu0 0.0
  %733 = vmatpush2.msra.mxu0 0.0
  %734 = vmatprep.subr.mxu0 0.0
  %735 = vmatpush2.msra.mxu0 0.0
  %736 = vmatprep.subr.mxu0 0.0
  %737 = vmatpush2.msra.mxu0 0.0
  %738 = vmatprep.subr.mxu0 0.0
  %739 = vmatpush2.msra.mxu0 0.0
  %740 = vmatprep.subr.mxu0 0.0
  %741 = vmatpush2.msra.mxu0 0.0
  %742 = vmatprep.subr.mxu0 0.0
  %743 = vmatpush2.msra.mxu0 0.0
  %744 = vmatprep.mubr.f32.mxu0 0.0
  %745 = vmatmul.mubr.f32.gmra.mxu0 %v675
  %v746 = vpop.f32.mrf.mxu0
  %v747 = vadd.f32 0.0, %v746
  %v748 = vpop.f32.mrf.mxu0
  %749 = vmatprep.mubr.f32.mxu0 0.0
  %750 = vmatmul.mubr.f32.gmra.mxu0 %v678
  %v751 = vpop.f32.mrf.mxu0
  %v752 = vadd.f32 0.0, %v751
  %v753 = vpop.f32.mrf.mxu0
  %754 = vdwg.mxu0
  %v755 = vld [vmem:[%s11] sm:$0xff]
  %v756 = vld [vmem:[%s11 + $0x8] sm:$0xff]
  %758 = vset.pattern.permute.xlu0 0
  %759 = vperm.xlu0 %758, %v755
  %v760 = vpop.permute.xlu0 %759
  %763 = vset.pattern.permute.xlu0 0
  %764 = vperm.xlu0 %763, %v756
  %v765 = vpop.permute.xlu0 %764
  %v767 = vmul.f32 %v747, %v760
  %v768 = vmul.f32 %v752, %v765
  %v769 = vld [vmem:[%s12] sm:$0xff]
  %v770 = vld [vmem:[%s12 + $0x8] sm:$0xff]
  %772 = vset.pattern.permute.xlu0 0
  %773 = vperm.xlu0 %772, %v769
  %v774 = vpop.permute.xlu0 %773
  %777 = vset.pattern.permute.xlu0 0
  %778 = vperm.xlu0 %777, %v770
  %v779 = vpop.permute.xlu0 %778
  %v781 = vadd.f32 %v767, %v774
  %v782 = vadd.f32 %v768, %v779
  %v783 = vld [vmem:[%s13] sm:$0xff]
  %v784 = vld [vmem:[%s14] sm:$0xff]
  %786 = vset.pattern.permute.xlu0 0
  %787 = vperm.xlu0 %786, %v784
  %v788 = vpop.permute.xlu0 %787
  %v791 = vsel %vm136, %v783, 0
  %793 = vmatprep.subr.mxu0 0.0
  %794 = vmatpush1.msra.mxu0 0.0
  %795 = vmatprep.subr.mxu0 0.0
  %796 = vmatpush1.msra.mxu0 0.0
  %797 = vmatprep.subr.mxu0 0.0
  %798 = vmatpush1.msra.mxu0 0.0
  %799 = vmatprep.subr.mxu0 0.0
  %800 = vmatpush1.msra.mxu0 0.0
  %801 = vmatprep.subr.mxu0 0.0
  %802 = vmatpush1.msra.mxu0 0.0
  %803 = vmatprep.subr.mxu0 0.0
  %804 = vmatpush1.msra.mxu0 0.0
  %805 = vmatprep.subr.mxu0 0.0
  %806 = vmatpush1.msra.mxu0 0.0
  %807 = vmatprep.subr.mxu0 0.0
  %808 = vmatpush1.msra.mxu0 0.0
  %809 = vmatprep.subr.mxu0 0.0
  %810 = vmatpush1.msra.mxu0 0.0
  %811 = vmatprep.subr.mxu0 0.0
  %812 = vmatpush1.msra.mxu0 0.0
  %813 = vmatprep.subr.mxu0 0.0
  %814 = vmatpush1.msra.mxu0 0.0
  %815 = vmatprep.subr.mxu0 0.0
  %816 = vmatpush1.msra.mxu0 0.0
  %817 = vmatprep.subr.mxu0 0.0
  %818 = vmatpush1.msra.mxu0 0.0
  %819 = vmatprep.subr.mxu0 0.0
  %820 = vmatpush1.msra.mxu0 0.0
  %821 = vmatprep.subr.mxu0 0.0
  %822 = vmatpush1.msra.mxu0 %v782
  %823 = vmatprep.subr.mxu0 0.0
  %824 = vmatpush1.msra.mxu0 %v781
  %825 = vmatprep.subr.mxu0 0.0
  %826 = vmatpush2.msra.mxu0 0.0
  %827 = vmatprep.subr.mxu0 0.0
  %828 = vmatpush2.msra.mxu0 0.0
  %829 = vmatprep.subr.mxu0 0.0
  %830 = vmatpush2.msra.mxu0 0.0
  %831 = vmatprep.subr.mxu0 0.0
  %832 = vmatpush2.msra.mxu0 0.0
  %833 = vmatprep.subr.mxu0 0.0
  %834 = vmatpush2.msra.mxu0 0.0
  %835 = vmatprep.subr.mxu0 0.0
  %836 = vmatpush2.msra.mxu0 0.0
  %837 = vmatprep.subr.mxu0 0.0
  %838 = vmatpush2.msra.mxu0 0.0
  %839 = vmatprep.subr.mxu0 0.0
  %840 = vmatpush2.msra.mxu0 0.0
  %841 = vmatprep.subr.mxu0 0.0
  %842 = vmatpush2.msra.mxu0 0.0
  %843 = vmatprep.subr.mxu0 0.0
  %844 = vmatpush2.msra.mxu0 0.0
  %845 = vmatprep.subr.mxu0 0.0
  %846 = vmatpush2.msra.mxu0 0.0
  %847 = vmatprep.subr.mxu0 0.0
  %848 = vmatpush2.msra.mxu0 0.0
  %849 = vmatprep.subr.mxu0 0.0
  %850 = vmatpush2.msra.mxu0 0.0
  %851 = vmatprep.subr.mxu0 0.0
  %852 = vmatpush2.msra.mxu0 0.0
  %853 = vmatprep.subr.mxu0 0.0
  %854 = vmatpush2.msra.mxu0 0.0
  %855 = vmatprep.subr.mxu0 0.0
  %856 = vmatpush2.msra.mxu0 0.0
  %857 = vmatprep.mubr.f32.mxu0 0.0
  %858 = vmatmul.mubr.f32.gmra.mxu0 %v791
  %v859 = vpop.f32.mrf.mxu0
  %v860 = vadd.f32 %v788, %v859
  %v861 = vpop.f32.mrf.mxu0
  %862 = vdwg.mxu0
  %863 = vst [vmem:[%s19] sm:$0xff] %v860
  %v864 = vld [vmem:[%s15] sm:$0xff]
  %v865 = vld [vmem:[%s16] sm:$0xff]
  %867 = vset.pattern.permute.xlu0 0
  %868 = vperm.xlu0 %867, %v865
  %v869 = vpop.permute.xlu0 %868
  %v872 = vsel %vm136, %v864, 0
  %874 = vmatprep.subr.mxu0 0.0
  %875 = vmatpush1.msra.mxu0 0.0
  %876 = vmatprep.subr.mxu0 0.0
  %877 = vmatpush1.msra.mxu0 0.0
  %878 = vmatprep.subr.mxu0 0.0
  %879 = vmatpush1.msra.mxu0 0.0
  %880 = vmatprep.subr.mxu0 0.0
  %881 = vmatpush1.msra.mxu0 0.0
  %882 = vmatprep.subr.mxu0 0.0
  %883 = vmatpush1.msra.mxu0 0.0
  %884 = vmatprep.subr.mxu0 0.0
  %885 = vmatpush1.msra.mxu0 0.0
  %886 = vmatprep.subr.mxu0 0.0
  %887 = vmatpush1.msra.mxu0 0.0
  %888 = vmatprep.subr.mxu0 0.0
  %889 = vmatpush1.msra.mxu0 0.0
  %890 = vmatprep.subr.mxu0 0.0
  %891 = vmatpush1.msra.mxu0 0.0
  %892 = vmatprep.subr.mxu0 0.0
  %893 = vmatpush1.msra.mxu0 0.0
  %894 = vmatprep.subr.mxu0 0.0
  %895 = vmatpush1.msra.mxu0 0.0
  %896 = vmatprep.subr.mxu0 0.0
  %897 = vmatpush1.msra.mxu0 0.0
  %898 = vmatprep.subr.mxu0 0.0
  %899 = vmatpush1.msra.mxu0 0.0
  %900 = vmatprep.subr.mxu0 0.0
  %901 = vmatpush1.msra.mxu0 0.0
  %902 = vmatprep.subr.mxu0 %v358
  %903 = vmatpush1.msra.mxu0 %v357
  %904 = vmatprep.subr.mxu0 %v354
  %905 = vmatpush1.msra.mxu0 %v353
  %906 = vmatprep.subr.mxu0 0.0
  %907 = vmatpush2.msra.mxu0 0.0
  %908 = vmatprep.subr.mxu0 0.0
  %909 = vmatpush2.msra.mxu0 0.0
  %910 = vmatprep.subr.mxu0 0.0
  %911 = vmatpush2.msra.mxu0 0.0
  %912 = vmatprep.subr.mxu0 0.0
  %913 = vmatpush2.msra.mxu0 0.0
  %914 = vmatprep.subr.mxu0 0.0
  %915 = vmatpush2.msra.mxu0 0.0
  %916 = vmatprep.subr.mxu0 0.0
  %917 = vmatpush2.msra.mxu0 0.0
  %918 = vmatprep.subr.mxu0 0.0
  %919 = vmatpush2.msra.mxu0 0.0
  %920 = vmatprep.subr.mxu0 0.0
  %921 = vmatpush2.msra.mxu0 0.0
  %922 = vmatprep.subr.mxu0 0.0
  %923 = vmatpush2.msra.mxu0 0.0
  %924 = vmatprep.subr.mxu0 0.0
  %925 = vmatpush2.msra.mxu0 0.0
  %926 = vmatprep.subr.mxu0 0.0
  %927 = vmatpush2.msra.mxu0 0.0
  %928 = vmatprep.subr.mxu0 0.0
  %929 = vmatpush2.msra.mxu0 0.0
  %930 = vmatprep.subr.mxu0 0.0
  %931 = vmatpush2.msra.mxu0 0.0
  %932 = vmatprep.subr.mxu0 0.0
  %933 = vmatpush2.msra.mxu0 0.0
  %934 = vmatprep.subr.mxu0 0.0
  %935 = vmatpush2.msra.mxu0 0.0
  %936 = vmatprep.subr.mxu0 0.0
  %937 = vmatpush2.msra.mxu0 0.0
  %938 = vmatprep.mubr.f32.mxu0 0.0
  %939 = vmatmul.mubr.f32.gmra.mxu0 %v872
  %v940 = vpop.f32.mrf.mxu0
  %v941 = vadd.f32 %v869, %v940
  %v942 = vpop.f32.mrf.mxu0
  %v943 = vadd.f32 %v869, %v942
  %944 = vdwg.mxu0
  %945 = vmatprep.subr.mxu0 0.0
  %946 = vmatpush1.msra.mxu0 0.0
  %947 = vmatprep.subr.mxu0 0.0
  %948 = vmatpush1.msra.mxu0 0.0
  %949 = vmatprep.subr.mxu0 0.0
  %950 = vmatpush1.msra.mxu0 0.0
  %951 = vmatprep.subr.mxu0 0.0
  %952 = vmatpush1.msra.mxu0 0.0
  %953 = vmatprep.subr.mxu0 0.0
  %954 = vmatpush1.msra.mxu0 0.0
  %955 = vmatprep.subr.mxu0 0.0
  %956 = vmatpush1.msra.mxu0 0.0
  %957 = vmatprep.subr.mxu0 0.0
  %958 = vmatpush1.msra.mxu0 0.0
  %959 = vmatprep.subr.mxu0 0.0
  %960 = vmatpush1.msra.mxu0 0.0
  %961 = vmatprep.subr.mxu0 0.0
  %962 = vmatpush1.msra.mxu0 0.0
  %963 = vmatprep.subr.mxu0 0.0
  %964 = vmatpush1.msra.mxu0 0.0
  %965 = vmatprep.subr.mxu0 0.0
  %966 = vmatpush1.msra.mxu0 0.0
  %967 = vmatprep.subr.mxu0 0.0
  %968 = vmatpush1.msra.mxu0 0.0
  %969 = vmatprep.subr.mxu0 0.0
  %970 = vmatpush1.msra.mxu0 0.0
  %971 = vmatprep.subr.mxu0 0.0
  %972 = vmatpush1.msra.mxu0 0.0
  %973 = vmatprep.subr.mxu0 %v360
  %974 = vmatpush1.msra.mxu0 %v359
  %975 = vmatprep.subr.mxu0 %v356
  %976 = vmatpush1.msra.mxu0 %v355
  %977 = vmatprep.subr.mxu0 0.0
  %978 = vmatpush2.msra.mxu0 0.0
  %979 = vmatprep.subr.mxu0 0.0
  %980 = vmatpush2.msra.mxu0 0.0
  %981 = vmatprep.subr.mxu0 0.0
  %982 = vmatpush2.msra.mxu0 0.0
  %983 = vmatprep.subr.mxu0 0.0
  %984 = vmatpush2.msra.mxu0 0.0
  %985 = vmatprep.subr.mxu0 0.0
  %986 = vmatpush2.msra.mxu0 0.0
  %987 = vmatprep.subr.mxu0 0.0
  %988 = vmatpush2.msra.mxu0 0.0
  %989 = vmatprep.subr.mxu0 0.0
  %990 = vmatpush2.msra.mxu0 0.0
  %991 = vmatprep.subr.mxu0 0.0
  %992 = vmatpush2.msra.mxu0 0.0
  %993 = vmatprep.subr.mxu0 0.0
  %994 = vmatpush2.msra.mxu0 0.0
  %995 = vmatprep.subr.mxu0 0.0
  %996 = vmatpush2.msra.mxu0 0.0
  %997 = vmatprep.subr.mxu0 0.0
  %998 = vmatpush2.msra.mxu0 0.0
  %999 = vmatprep.subr.mxu0 0.0
  %1000 = vmatpush2.msra.mxu0 0.0
  %1001 = vmatprep.subr.mxu0 0.0
  %1002 = vmatpush2.msra.mxu0 0.0
  %1003 = vmatprep.subr.mxu0 0.0
  %1004 = vmatpush2.msra.mxu0 0.0
  %1005 = vmatprep.subr.mxu0 0.0
  %1006 = vmatpush2.msra.mxu0 0.0
  %1007 = vmatprep.subr.mxu0 0.0
  %1008 = vmatpush2.msra.mxu0 0.0
  %1009 = vmatprep.mubr.f32.mxu0 0.0
  %1010 = vmatmul.mubr.f32.gmra.mxu0 %v872
  %v1011 = vpop.f32.mrf.mxu0
  %v1012 = vadd.f32 %v869, %v1011
  %v1013 = vpop.f32.mrf.mxu0
  %v1014 = vadd.f32 %v869, %v1013
  %1015 = vdwg.mxu0
  %1016 = vst [vmem:[%s20] sm:$0xff] %v941
  %1017 = vst [vmem:[%s20 + $0x8] sm:$0xff] %v943
  %1018 = vst [vmem:[%s20 + $0x10] sm:$0xff] %v1012
  %1019 = vst [vmem:[%s20 + $0x18] sm:$0xff] %v1014
  // Predicated region
  $region70: #{hrmodule_m2mrf_forward.5} parent=0 // pred_check
    _
  $region71: #{hrmodule_m2mrf_forward.5} parent=0 // pred_check_branch
    %1021 = sbr.rel (0) target = $region73
  $region72: #{hrmodule_m2mrf_forward.5} parent=0 // pred_region
    _
  $region73: #{hrmodule_m2mrf_forward.5} parent=0 // pred_fallthru
    _
  // Predicated region
  $region74: #{hrmodule_m2mrf_forward.5} parent=0 // pred_check
    _
  $region75: #{hrmodule_m2mrf_forward.5} parent=0 // pred_check_branch
    %1023 = sbr.rel (0) target = $region77
  $region76: #{hrmodule_m2mrf_forward.5} parent=0 // pred_region
    _
  $region77: #{hrmodule_m2mrf_forward.5} parent=0 // pred_fallthru
    _
  // Predicated region
  $region78: #{hrmodule_m2mrf_forward.5} parent=0 // pred_check
    _
  $region79: #{hrmodule_m2mrf_forward.5} parent=0 // pred_check_branch
    %1025 = sbr.rel (0) target = $region81
  $region80: #{hrmodule_m2mrf_forward.5} parent=0 // pred_region
    _
  $region81: #{hrmodule_m2mrf_forward.5} parent=0 // pred_fallthru
    _
  // Predicated region
  $region82: #{hrmodule_m2mrf_forward.5} parent=0 // pred_check
    _
  $region83: #{hrmodule_m2mrf_forward.5} parent=0 // pred_check_branch
    %1027 = sbr.rel (0) target = $region85
  $region84: #{hrmodule_m2mrf_forward.5} parent=0 // pred_region
    _
  $region85: #{hrmodule_m2mrf_forward.5} parent=0 // pred_fallthru
    _
  // Predicated region
  $region86: #{hrmodule_m2mrf_forward.5} parent=0 // pred_check
    _
  $region87: #{hrmodule_m2mrf_forward.5} parent=0 // pred_check_branch
    %1029 = sbr.rel (0) target = $region89
  $region88: #{hrmodule_m2mrf_forward.5} parent=0 // pred_region
    _
  $region89: #{hrmodule_m2mrf_forward.5} parent=0 // pred_fallthru
    _
  // Predicated region
  $region90: #{hrmodule_m2mrf_forward.5} parent=0 // pred_check
    _
  $region91: #{hrmodule_m2mrf_forward.5} parent=0 // pred_check_branch
    %1031 = sbr.rel (0) target = $region93
  $region92: #{hrmodule_m2mrf_forward.5} parent=0 // pred_region
    _
  $region93: #{hrmodule_m2mrf_forward.5} parent=0 // pred_fallthru
    _
  // Predicated region
  $region94: #{hrmodule_m2mrf_forward.5} parent=0 // pred_check
    _
  $region95: #{hrmodule_m2mrf_forward.5} parent=0 // pred_check_branch
    %1033 = sbr.rel (0) target = $region97
  $region96: #{hrmodule_m2mrf_forward.5} parent=0 // pred_region
    _
  $region97: #{hrmodule_m2mrf_forward.5} parent=0 // pred_fallthru
    _
  // Predicated region
  $region98: #{hrmodule_m2mrf_forward.5} parent=0 // pred_check
    _
  $region99: #{hrmodule_m2mrf_forward.5} parent=0 // pred_check_branch
    %1035 = sbr.rel (0) target = $region101
  $region100: #{hrmodule_m2mrf_forward.5} parent=0 // pred_region
    _
  $region101: #{hrmodule_m2mrf_forward.5} parent=0 // pred_fallthru
    _

// kernel: hrmodule_m2mrf_forward.6
$region0: #{hrmodule_m2mrf_forward.6}
  #allocation0 [shape = 'u32[]', space=smem, size = 0x4, offset = 0x4, fixed_abs, tag = 'smem constant byte address 0x4 - core index']
  #allocation1 [shape = 'u32[144,128]{1,0:T(1,128)}', space=vmem, size = 0x12000, scoped, tag = 'internal scratch']
  %s0 = inlined_call_operand.vmem [shape: f32[8,256], index: 0, kind: input, shape index: {}]
  %s1 = inlined_call_operand.vmem [shape: f32[256,16], index: 1, kind: input, shape index: {}]
  %s2 = inlined_call_operand.vmem [shape: f32[1,16], index: 2, kind: input, shape index: {}]
  %s3 = inlined_call_operand.vmem [shape: f32[16,1024], index: 3, kind: input, shape index: {}]
  %s4 = inlined_call_operand.vmem [shape: f32[1,1024], index: 4, kind: input, shape index: {}]
  %s5 = inlined_call_operand.vmem [shape: f32[8,256], index: 5, kind: input, shape index: {}]
  %s6 = inlined_call_operand.vmem [shape: f32[256,16], index: 6, kind: input, shape index: {}]
  %s7 = inlined_call_operand.vmem [shape: f32[1,16], index: 7, kind: input, shape index: {}]
  %s8 = inlined_call_operand.vmem [shape: f32[16,64], index: 8, kind: input, shape index: {}]
  %s9 = inlined_call_operand.vmem [shape: f32[1,64], index: 9, kind: input, shape index: {}]
  %s10 = inlined_call_operand.vmem [shape: f32[8,1024], index: 10, kind: output, shape index: {0}]
  %s11 = inlined_call_operand.vmem [shape: f32[8,64], index: 11, kind: output, shape index: {1}]
  %12 = xla_tuple %s10, %s11
  %s13 = sld [smem:[#allocation0]]
  $region58: #{hrmodule_m2mrf_forward.6} parent=0
    _
  %s15 = ssub.s32 1, %s13
  %s16 = scalar_select 0, %s15, %s13
  // Predicated region
  $region2: #{hrmodule_m2mrf_forward.6} parent=0 // pred_check
    _
  $region3: #{hrmodule_m2mrf_forward.6} parent=0 // pred_check_branch
    %18 = sbr.rel (0) target = $region5
  $region4: #{hrmodule_m2mrf_forward.6} parent=0 // pred_region
    _
  $region5: #{hrmodule_m2mrf_forward.6} parent=0 // pred_fallthru
    _
  // Predicated region
  $region6: #{hrmodule_m2mrf_forward.6} parent=0 // pred_check
    _
  $region7: #{hrmodule_m2mrf_forward.6} parent=0 // pred_check_branch
    %20 = sbr.rel (0) target = $region9
  $region8: #{hrmodule_m2mrf_forward.6} parent=0 // pred_region
    _
  $region9: #{hrmodule_m2mrf_forward.6} parent=0 // pred_fallthru
    _
  // Predicated region
  $region10: #{hrmodule_m2mrf_forward.6} parent=0 // pred_check
    _
  $region11: #{hrmodule_m2mrf_forward.6} parent=0 // pred_check_branch
    %22 = sbr.rel (0) target = $region13
  $region12: #{hrmodule_m2mrf_forward.6} parent=0 // pred_region
    _
  $region13: #{hrmodule_m2mrf_forward.6} parent=0 // pred_fallthru
    _
  // Predicated region
  $region14: #{hrmodule_m2mrf_forward.6} parent=0 // pred_check
    _
  $region15: #{hrmodule_m2mrf_forward.6} parent=0 // pred_check_branch
    %24 = sbr.rel (0) target = $region17
  $region16: #{hrmodule_m2mrf_forward.6} parent=0 // pred_region
    _
  $region17: #{hrmodule_m2mrf_forward.6} parent=0 // pred_fallthru
    _
  // Predicated region
  $region18: #{hrmodule_m2mrf_forward.6} parent=0 // pred_check
    _
  $region19: #{hrmodule_m2mrf_forward.6} parent=0 // pred_check_branch
    %26 = sbr.rel (0) target = $region21
  $region20: #{hrmodule_m2mrf_forward.6} parent=0 // pred_region
    _
  $region21: #{hrmodule_m2mrf_forward.6} parent=0 // pred_fallthru
    _
  // Predicated region
  $region22: #{hrmodule_m2mrf_forward.6} parent=0 // pred_check
    _
  $region23: #{hrmodule_m2mrf_forward.6} parent=0 // pred_check_branch
    %28 = sbr.rel (0) target = $region25
  $region24: #{hrmodule_m2mrf_forward.6} parent=0 // pred_region
    _
  $region25: #{hrmodule_m2mrf_forward.6} parent=0 // pred_fallthru
    _
  // Predicated region
  $region26: #{hrmodule_m2mrf_forward.6} parent=0 // pred_check
    _
  $region27: #{hrmodule_m2mrf_forward.6} parent=0 // pred_check_branch
    %30 = sbr.rel (0) target = $region29
  $region28: #{hrmodule_m2mrf_forward.6} parent=0 // pred_region
    _
  $region29: #{hrmodule_m2mrf_forward.6} parent=0 // pred_fallthru
    _
  // Predicated region
  $region30: #{hrmodule_m2mrf_forward.6} parent=0 // pred_check
    _
  $region31: #{hrmodule_m2mrf_forward.6} parent=0 // pred_check_branch
    %32 = sbr.rel (0) target = $region33
  $region32: #{hrmodule_m2mrf_forward.6} parent=0 // pred_region
    _
  $region33: #{hrmodule_m2mrf_forward.6} parent=0 // pred_fallthru
    _
  // Predicated region
  $region34: #{hrmodule_m2mrf_forward.6} parent=0 // pred_check
    _
  $region35: #{hrmodule_m2mrf_forward.6} parent=0 // pred_check_branch
    %34 = sbr.rel (0) target = $region37
  $region36: #{hrmodule_m2mrf_forward.6} parent=0 // pred_region
    _
  $region37: #{hrmodule_m2mrf_forward.6} parent=0 // pred_fallthru
    _
  // Predicated region
  $region38: #{hrmodule_m2mrf_forward.6} parent=0 // pred_check
    _
  $region39: #{hrmodule_m2mrf_forward.6} parent=0 // pred_check_branch
    %36 = sbr.rel (0) target = $region41
  $region40: #{hrmodule_m2mrf_forward.6} parent=0 // pred_region
    _
  $region41: #{hrmodule_m2mrf_forward.6} parent=0 // pred_fallthru
    _
  %v37 = vld [vmem:[%s0] sm:$0xff]
  %v38 = vld [vmem:[%s0 + $0x8] sm:$0xff]
  %v39 = vld [vmem:[%s1] sm:$0xff]
  %v40 = vld [vmem:[%s1 + $0x8] sm:$0xff]
  %v41 = vld [vmem:[%s1 + $0x10] sm:$0xff]
  %v42 = vld [vmem:[%s1 + $0x18] sm:$0xff]
  %v43 = vld [vmem:[%s1 + $0x20] sm:$0xff]
  %v44 = vld [vmem:[%s1 + $0x28] sm:$0xff]
  %v45 = vld [vmem:[%s1 + $0x30] sm:$0xff]
  %v46 = vld [vmem:[%s1 + $0x38] sm:$0xff]
  %v47 = vld [vmem:[%s1 + $0x40] sm:$0xff]
  %v48 = vld [vmem:[%s1 + $0x48] sm:$0xff]
  %v49 = vld [vmem:[%s1 + $0x50] sm:$0xff]
  %v50 = vld [vmem:[%s1 + $0x58] sm:$0xff]
  %v51 = vld [vmem:[%s1 + $0x60] sm:$0xff]
  %v52 = vld [vmem:[%s1 + $0x68] sm:$0xff]
  %v53 = vld [vmem:[%s1 + $0x70] sm:$0xff]
  %v54 = vld [vmem:[%s1 + $0x78] sm:$0xff]
  %v55 = vld [vmem:[%s1 + $0x80] sm:$0xff]
  %v56 = vld [vmem:[%s1 + $0x88] sm:$0xff]
  %v57 = vld [vmem:[%s1 + $0x90] sm:$0xff]
  %v58 = vld [vmem:[%s1 + $0x98] sm:$0xff]
  %v59 = vld [vmem:[%s1 + $0xa0] sm:$0xff]
  %v60 = vld [vmem:[%s1 + $0xa8] sm:$0xff]
  %v61 = vld [vmem:[%s1 + $0xb0] sm:$0xff]
  %v62 = vld [vmem:[%s1 + $0xb8] sm:$0xff]
  %v63 = vld [vmem:[%s1 + $0xc0] sm:$0xff]
  %v64 = vld [vmem:[%s1 + $0xc8] sm:$0xff]
  %v65 = vld [vmem:[%s1 + $0xd0] sm:$0xff]
  %v66 = vld [vmem:[%s1 + $0xd8] sm:$0xff]
  %v67 = vld [vmem:[%s1 + $0xe0] sm:$0xff]
  %v68 = vld [vmem:[%s1 + $0xe8] sm:$0xff]
  %v69 = vld [vmem:[%s1 + $0xf0] sm:$0xff]
  %v70 = vld [vmem:[%s1 + $0xf8] sm:$0xff]
  %v71 = vld [vmem:[%s2] sm:$0x1]
  %v73 = vlaneseq
  %v74 = vshrl.u32 %v73, 7
  %v75 = vsub.s32 0, %v74
  %v76 = vrot.slane %v71, %v75
  %78 = vmatprep.subr.mxu0 0.0
  %79 = vmatpush1.msra.mxu0 %v54
  %80 = vmatprep.subr.mxu0 0.0
  %81 = vmatpush1.msra.mxu0 %v53
  %82 = vmatprep.subr.mxu0 0.0
  %83 = vmatpush1.msra.mxu0 %v52
  %84 = vmatprep.subr.mxu0 0.0
  %85 = vmatpush1.msra.mxu0 %v51
  %86 = vmatprep.subr.mxu0 0.0
  %87 = vmatpush1.msra.mxu0 %v50
  %88 = vmatprep.subr.mxu0 0.0
  %89 = vmatpush1.msra.mxu0 %v49
  %90 = vmatprep.subr.mxu0 0.0
  %91 = vmatpush1.msra.mxu0 %v48
  %92 = vmatprep.subr.mxu0 0.0
  %93 = vmatpush1.msra.mxu0 %v47
  %94 = vmatprep.subr.mxu0 0.0
  %95 = vmatpush1.msra.mxu0 %v46
  %96 = vmatprep.subr.mxu0 0.0
  %97 = vmatpush1.msra.mxu0 %v45
  %98 = vmatprep.subr.mxu0 0.0
  %99 = vmatpush1.msra.mxu0 %v44
  %100 = vmatprep.subr.mxu0 0.0
  %101 = vmatpush1.msra.mxu0 %v43
  %102 = vmatprep.subr.mxu0 0.0
  %103 = vmatpush1.msra.mxu0 %v42
  %104 = vmatprep.subr.mxu0 0.0
  %105 = vmatpush1.msra.mxu0 %v41
  %106 = vmatprep.subr.mxu0 0.0
  %107 = vmatpush1.msra.mxu0 %v40
  %108 = vmatprep.subr.mxu0 0.0
  %109 = vmatpush1.msra.mxu0 %v39
  %110 = vmatprep.subr.mxu0 0.0
  %111 = vmatpush2.msra.mxu0 %v70
  %112 = vmatprep.subr.mxu0 0.0
  %113 = vmatpush2.msra.mxu0 %v69
  %114 = vmatprep.subr.mxu0 0.0
  %115 = vmatpush2.msra.mxu0 %v68
  %116 = vmatprep.subr.mxu0 0.0
  %117 = vmatpush2.msra.mxu0 %v67
  %118 = vmatprep.subr.mxu0 0.0
  %119 = vmatpush2.msra.mxu0 %v66
  %120 = vmatprep.subr.mxu0 0.0
  %121 = vmatpush2.msra.mxu0 %v65
  %122 = vmatprep.subr.mxu0 0.0
  %123 = vmatpush2.msra.mxu0 %v64
  %124 = vmatprep.subr.mxu0 0.0
  %125 = vmatpush2.msra.mxu0 %v63
  %126 = vmatprep.subr.mxu0 0.0
  %127 = vmatpush2.msra.mxu0 %v62
  %128 = vmatprep.subr.mxu0 0.0
  %129 = vmatpush2.msra.mxu0 %v61
  %130 = vmatprep.subr.mxu0 0.0
  %131 = vmatpush2.msra.mxu0 %v60
  %132 = vmatprep.subr.mxu0 0.0
  %133 = vmatpush2.msra.mxu0 %v59
  %134 = vmatprep.subr.mxu0 0.0
  %135 = vmatpush2.msra.mxu0 %v58
  %136 = vmatprep.subr.mxu0 0.0
  %137 = vmatpush2.msra.mxu0 %v57
  %138 = vmatprep.subr.mxu0 0.0
  %139 = vmatpush2.msra.mxu0 %v56
  %140 = vmatprep.subr.mxu0 0.0
  %141 = vmatpush2.msra.mxu0 %v55
  %142 = vmatprep.mubr.f32.mxu0 %v38
  %143 = vmatmul.mubr.f32.gmra.mxu0 %v37
  %v144 = vpop.f32.mrf.mxu0
  %v145 = vadd.f32 %v76, %v144
  %v146 = vpop.f32.mrf.mxu0
  %147 = vdwg.mxu0
  %v148 = vld [vmem:[%s3] sm:$0xff]
  %v149 = vld [vmem:[%s3 + $0x8] sm:$0xff]
  %v150 = vld [vmem:[%s3 + $0x10] sm:$0xff]
  %v151 = vld [vmem:[%s3 + $0x18] sm:$0xff]
  %v152 = vld [vmem:[%s3 + $0x20] sm:$0xff]
  %v153 = vld [vmem:[%s3 + $0x28] sm:$0xff]
  %v154 = vld [vmem:[%s3 + $0x30] sm:$0xff]
  %v155 = vld [vmem:[%s3 + $0x38] sm:$0xff]
  %v156 = vld [vmem:[%s3 + $0x40] sm:$0xff]
  %v157 = vld [vmem:[%s3 + $0x48] sm:$0xff]
  %v158 = vld [vmem:[%s3 + $0x50] sm:$0xff]
  %v159 = vld [vmem:[%s3 + $0x58] sm:$0xff]
  %v160 = vld [vmem:[%s3 + $0x60] sm:$0xff]
  %v161 = vld [vmem:[%s3 + $0x68] sm:$0xff]
  %v162 = vld [vmem:[%s3 + $0x70] sm:$0xff]
  %v163 = vld [vmem:[%s3 + $0x78] sm:$0xff]
  %v164 = vld [vmem:[%s4] sm:$0xff]
  %v166 = vlaneseq
  %v167 = vshrl.u32 %v166, 7
  %v168 = vsub.s32 0, %v167
  %v169 = vrot.slane %v164, %v168
  %v170 = vlaneseq
  %v171 = vshrl.u32 %v170, 7
  %v172 = vsub.s32 1, %v171
  %v173 = vrot.slane %v164, %v172
  %v174 = vlaneseq
  %v175 = vshrl.u32 %v174, 7
  %v176 = vsub.s32 2, %v175
  %v177 = vrot.slane %v164, %v176
  %v178 = vlaneseq
  %v179 = vshrl.u32 %v178, 7
  %v180 = vsub.s32 3, %v179
  %v181 = vrot.slane %v164, %v180
  %v182 = vlaneseq
  %v183 = vshrl.u32 %v182, 7
  %v184 = vsub.s32 4, %v183
  %v185 = vrot.slane %v164, %v184
  %v186 = vlaneseq
  %v187 = vshrl.u32 %v186, 7
  %v188 = vsub.s32 5, %v187
  %v189 = vrot.slane %v164, %v188
  %v190 = vlaneseq
  %v191 = vshrl.u32 %v190, 7
  %v192 = vsub.s32 6, %v191
  %v193 = vrot.slane %v164, %v192
  %v194 = vlaneseq
  %v195 = vshrl.u32 %v194, 7
  %v196 = vsub.s32 7, %v195
  %v197 = vrot.slane %v164, %v196
  %vm206 = vcmask 130048
  %v208 = vsel %vm206, %v145, 0
  %210 = vmatprep.subr.mxu0 0.0
  %211 = vmatpush1.msra.mxu0 0.0
  %212 = vmatprep.subr.mxu0 0.0
  %213 = vmatpush1.msra.mxu0 0.0
  %214 = vmatprep.subr.mxu0 0.0
  %215 = vmatpush1.msra.mxu0 0.0
  %216 = vmatprep.subr.mxu0 0.0
  %217 = vmatpush1.msra.mxu0 0.0
  %218 = vmatprep.subr.mxu0 0.0
  %219 = vmatpush1.msra.mxu0 0.0
  %220 = vmatprep.subr.mxu0 0.0
  %221 = vmatpush1.msra.mxu0 0.0
  %222 = vmatprep.subr.mxu0 0.0
  %223 = vmatpush1.msra.mxu0 0.0
  %224 = vmatprep.subr.mxu0 0.0
  %225 = vmatpush1.msra.mxu0 0.0
  %226 = vmatprep.subr.mxu0 0.0
  %227 = vmatpush1.msra.mxu0 0.0
  %228 = vmatprep.subr.mxu0 0.0
  %229 = vmatpush1.msra.mxu0 0.0
  %230 = vmatprep.subr.mxu0 0.0
  %231 = vmatpush1.msra.mxu0 0.0
  %232 = vmatprep.subr.mxu0 0.0
  %233 = vmatpush1.msra.mxu0 0.0
  %234 = vmatprep.subr.mxu0 0.0
  %235 = vmatpush1.msra.mxu0 0.0
  %236 = vmatprep.subr.mxu0 0.0
  %237 = vmatpush1.msra.mxu0 0.0
  %238 = vmatprep.subr.mxu0 %v157
  %239 = vmatpush1.msra.mxu0 %v156
  %240 = vmatprep.subr.mxu0 %v149
  %241 = vmatpush1.msra.mxu0 %v148
  %242 = vmatprep.subr.mxu0 0.0
  %243 = vmatpush2.msra.mxu0 0.0
  %244 = vmatprep.subr.mxu0 0.0
  %245 = vmatpush2.msra.mxu0 0.0
  %246 = vmatprep.subr.mxu0 0.0
  %247 = vmatpush2.msra.mxu0 0.0
  %248 = vmatprep.subr.mxu0 0.0
  %249 = vmatpush2.msra.mxu0 0.0
  %250 = vmatprep.subr.mxu0 0.0
  %251 = vmatpush2.msra.mxu0 0.0
  %252 = vmatprep.subr.mxu0 0.0
  %253 = vmatpush2.msra.mxu0 0.0
  %254 = vmatprep.subr.mxu0 0.0
  %255 = vmatpush2.msra.mxu0 0.0
  %256 = vmatprep.subr.mxu0 0.0
  %257 = vmatpush2.msra.mxu0 0.0
  %258 = vmatprep.subr.mxu0 0.0
  %259 = vmatpush2.msra.mxu0 0.0
  %260 = vmatprep.subr.mxu0 0.0
  %261 = vmatpush2.msra.mxu0 0.0
  %262 = vmatprep.subr.mxu0 0.0
  %263 = vmatpush2.msra.mxu0 0.0
  %264 = vmatprep.subr.mxu0 0.0
  %265 = vmatpush2.msra.mxu0 0.0
  %266 = vmatprep.subr.mxu0 0.0
  %267 = vmatpush2.msra.mxu0 0.0
  %268 = vmatprep.subr.mxu0 0.0
  %269 = vmatpush2.msra.mxu0 0.0
  %270 = vmatprep.subr.mxu0 0.0
  %271 = vmatpush2.msra.mxu0 0.0
  %272 = vmatprep.subr.mxu0 0.0
  %273 = vmatpush2.msra.mxu0 0.0
  %274 = vmatprep.mubr.f32.mxu0 0.0
  %275 = vmatmul.mubr.f32.gmra.mxu0 %v208
  %v276 = vpop.f32.mrf.mxu0
  %v277 = vadd.f32 %v169, %v276
  %v278 = vpop.f32.mrf.mxu0
  %v279 = vadd.f32 %v173, %v278
  %280 = vdwg.mxu0
  %281 = vmatprep.subr.mxu0 0.0
  %282 = vmatpush1.msra.mxu0 0.0
  %283 = vmatprep.subr.mxu0 0.0
  %284 = vmatpush1.msra.mxu0 0.0
  %285 = vmatprep.subr.mxu0 0.0
  %286 = vmatpush1.msra.mxu0 0.0
  %287 = vmatprep.subr.mxu0 0.0
  %288 = vmatpush1.msra.mxu0 0.0
  %289 = vmatprep.subr.mxu0 0.0
  %290 = vmatpush1.msra.mxu0 0.0
  %291 = vmatprep.subr.mxu0 0.0
  %292 = vmatpush1.msra.mxu0 0.0
  %293 = vmatprep.subr.mxu0 0.0
  %294 = vmatpush1.msra.mxu0 0.0
  %295 = vmatprep.subr.mxu0 0.0
  %296 = vmatpush1.msra.mxu0 0.0
  %297 = vmatprep.subr.mxu0 0.0
  %298 = vmatpush1.msra.mxu0 0.0
  %299 = vmatprep.subr.mxu0 0.0
  %300 = vmatpush1.msra.mxu0 0.0
  %301 = vmatprep.subr.mxu0 0.0
  %302 = vmatpush1.msra.mxu0 0.0
  %303 = vmatprep.subr.mxu0 0.0
  %304 = vmatpush1.msra.mxu0 0.0
  %305 = vmatprep.subr.mxu0 0.0
  %306 = vmatpush1.msra.mxu0 0.0
  %307 = vmatprep.subr.mxu0 0.0
  %308 = vmatpush1.msra.mxu0 0.0
  %309 = vmatprep.subr.mxu0 %v159
  %310 = vmatpush1.msra.mxu0 %v158
  %311 = vmatprep.subr.mxu0 %v151
  %312 = vmatpush1.msra.mxu0 %v150
  %313 = vmatprep.subr.mxu0 0.0
  %314 = vmatpush2.msra.mxu0 0.0
  %315 = vmatprep.subr.mxu0 0.0
  %316 = vmatpush2.msra.mxu0 0.0
  %317 = vmatprep.subr.mxu0 0.0
  %318 = vmatpush2.msra.mxu0 0.0
  %319 = vmatprep.subr.mxu0 0.0
  %320 = vmatpush2.msra.mxu0 0.0
  %321 = vmatprep.subr.mxu0 0.0
  %322 = vmatpush2.msra.mxu0 0.0
  %323 = vmatprep.subr.mxu0 0.0
  %324 = vmatpush2.msra.mxu0 0.0
  %325 = vmatprep.subr.mxu0 0.0
  %326 = vmatpush2.msra.mxu0 0.0
  %327 = vmatprep.subr.mxu0 0.0
  %328 = vmatpush2.msra.mxu0 0.0
  %329 = vmatprep.subr.mxu0 0.0
  %330 = vmatpush2.msra.mxu0 0.0
  %331 = vmatprep.subr.mxu0 0.0
  %332 = vmatpush2.msra.mxu0 0.0
  %333 = vmatprep.subr.mxu0 0.0
  %334 = vmatpush2.msra.mxu0 0.0
  %335 = vmatprep.subr.mxu0 0.0
  %336 = vmatpush2.msra.mxu0 0.0
  %337 = vmatprep.subr.mxu0 0.0
  %338 = vmatpush2.msra.mxu0 0.0
  %339 = vmatprep.subr.mxu0 0.0
  %340 = vmatpush2.msra.mxu0 0.0
  %341 = vmatprep.subr.mxu0 0.0
  %342 = vmatpush2.msra.mxu0 0.0
  %343 = vmatprep.subr.mxu0 0.0
  %344 = vmatpush2.msra.mxu0 0.0
  %345 = vmatprep.mubr.f32.mxu0 0.0
  %346 = vmatmul.mubr.f32.gmra.mxu0 %v208
  %v347 = vpop.f32.mrf.mxu0
  %v348 = vadd.f32 %v177, %v347
  %v349 = vpop.f32.mrf.mxu0
  %v350 = vadd.f32 %v181, %v349
  %351 = vdwg.mxu0
  %352 = vmatprep.subr.mxu0 0.0
  %353 = vmatpush1.msra.mxu0 0.0
  %354 = vmatprep.subr.mxu0 0.0
  %355 = vmatpush1.msra.mxu0 0.0
  %356 = vmatprep.subr.mxu0 0.0
  %357 = vmatpush1.msra.mxu0 0.0
  %358 = vmatprep.subr.mxu0 0.0
  %359 = vmatpush1.msra.mxu0 0.0
  %360 = vmatprep.subr.mxu0 0.0
  %361 = vmatpush1.msra.mxu0 0.0
  %362 = vmatprep.subr.mxu0 0.0
  %363 = vmatpush1.msra.mxu0 0.0
  %364 = vmatprep.subr.mxu0 0.0
  %365 = vmatpush1.msra.mxu0 0.0
  %366 = vmatprep.subr.mxu0 0.0
  %367 = vmatpush1.msra.mxu0 0.0
  %368 = vmatprep.subr.mxu0 0.0
  %369 = vmatpush1.msra.mxu0 0.0
  %370 = vmatprep.subr.mxu0 0.0
  %371 = vmatpush1.msra.mxu0 0.0
  %372 = vmatprep.subr.mxu0 0.0
  %373 = vmatpush1.msra.mxu0 0.0
  %374 = vmatprep.subr.mxu0 0.0
  %375 = vmatpush1.msra.mxu0 0.0
  %376 = vmatprep.subr.mxu0 0.0
  %377 = vmatpush1.msra.mxu0 0.0
  %378 = vmatprep.subr.mxu0 0.0
  %379 = vmatpush1.msra.mxu0 0.0
  %380 = vmatprep.subr.mxu0 %v161
  %381 = vmatpush1.msra.mxu0 %v160
  %382 = vmatprep.subr.mxu0 %v153
  %383 = vmatpush1.msra.mxu0 %v152
  %384 = vmatprep.subr.mxu0 0.0
  %385 = vmatpush2.msra.mxu0 0.0
  %386 = vmatprep.subr.mxu0 0.0
  %387 = vmatpush2.msra.mxu0 0.0
  %388 = vmatprep.subr.mxu0 0.0
  %389 = vmatpush2.msra.mxu0 0.0
  %390 = vmatprep.subr.mxu0 0.0
  %391 = vmatpush2.msra.mxu0 0.0
  %392 = vmatprep.subr.mxu0 0.0
  %393 = vmatpush2.msra.mxu0 0.0
  %394 = vmatprep.subr.mxu0 0.0
  %395 = vmatpush2.msra.mxu0 0.0
  %396 = vmatprep.subr.mxu0 0.0
  %397 = vmatpush2.msra.mxu0 0.0
  %398 = vmatprep.subr.mxu0 0.0
  %399 = vmatpush2.msra.mxu0 0.0
  %400 = vmatprep.subr.mxu0 0.0
  %401 = vmatpush2.msra.mxu0 0.0
  %402 = vmatprep.subr.mxu0 0.0
  %403 = vmatpush2.msra.mxu0 0.0
  %404 = vmatprep.subr.mxu0 0.0
  %405 = vmatpush2.msra.mxu0 0.0
  %406 = vmatprep.subr.mxu0 0.0
  %407 = vmatpush2.msra.mxu0 0.0
  %408 = vmatprep.subr.mxu0 0.0
  %409 = vmatpush2.msra.mxu0 0.0
  %410 = vmatprep.subr.mxu0 0.0
  %411 = vmatpush2.msra.mxu0 0.0
  %412 = vmatprep.subr.mxu0 0.0
  %413 = vmatpush2.msra.mxu0 0.0
  %414 = vmatprep.subr.mxu0 0.0
  %415 = vmatpush2.msra.mxu0 0.0
  %416 = vmatprep.mubr.f32.mxu0 0.0
  %417 = vmatmul.mubr.f32.gmra.mxu0 %v208
  %v418 = vpop.f32.mrf.mxu0
  %v419 = vadd.f32 %v185, %v418
  %v420 = vpop.f32.mrf.mxu0
  %v421 = vadd.f32 %v189, %v420
  %422 = vdwg.mxu0
  %423 = vmatprep.subr.mxu0 0.0
  %424 = vmatpush1.msra.mxu0 0.0
  %425 = vmatprep.subr.mxu0 0.0
  %426 = vmatpush1.msra.mxu0 0.0
  %427 = vmatprep.subr.mxu0 0.0
  %428 = vmatpush1.msra.mxu0 0.0
  %429 = vmatprep.subr.mxu0 0.0
  %430 = vmatpush1.msra.mxu0 0.0
  %431 = vmatprep.subr.mxu0 0.0
  %432 = vmatpush1.msra.mxu0 0.0
  %433 = vmatprep.subr.mxu0 0.0
  %434 = vmatpush1.msra.mxu0 0.0
  %435 = vmatprep.subr.mxu0 0.0
  %436 = vmatpush1.msra.mxu0 0.0
  %437 = vmatprep.subr.mxu0 0.0
  %438 = vmatpush1.msra.mxu0 0.0
  %439 = vmatprep.subr.mxu0 0.0
  %440 = vmatpush1.msra.mxu0 0.0
  %441 = vmatprep.subr.mxu0 0.0
  %442 = vmatpush1.msra.mxu0 0.0
  %443 = vmatprep.subr.mxu0 0.0
  %444 = vmatpush1.msra.mxu0 0.0
  %445 = vmatprep.subr.mxu0 0.0
  %446 = vmatpush1.msra.mxu0 0.0
  %447 = vmatprep.subr.mxu0 0.0
  %448 = vmatpush1.msra.mxu0 0.0
  %449 = vmatprep.subr.mxu0 0.0
  %450 = vmatpush1.msra.mxu0 0.0
  %451 = vmatprep.subr.mxu0 %v163
  %452 = vmatpush1.msra.mxu0 %v162
  %453 = vmatprep.subr.mxu0 %v155
  %454 = vmatpush1.msra.mxu0 %v154
  %455 = vmatprep.subr.mxu0 0.0
  %456 = vmatpush2.msra.mxu0 0.0
  %457 = vmatprep.subr.mxu0 0.0
  %458 = vmatpush2.msra.mxu0 0.0
  %459 = vmatprep.subr.mxu0 0.0
  %460 = vmatpush2.msra.mxu0 0.0
  %461 = vmatprep.subr.mxu0 0.0
  %462 = vmatpush2.msra.mxu0 0.0
  %463 = vmatprep.subr.mxu0 0.0
  %464 = vmatpush2.msra.mxu0 0.0
  %465 = vmatprep.subr.mxu0 0.0
  %466 = vmatpush2.msra.mxu0 0.0
  %467 = vmatprep.subr.mxu0 0.0
  %468 = vmatpush2.msra.mxu0 0.0
  %469 = vmatprep.subr.mxu0 0.0
  %470 = vmatpush2.msra.mxu0 0.0
  %471 = vmatprep.subr.mxu0 0.0
  %472 = vmatpush2.msra.mxu0 0.0
  %473 = vmatprep.subr.mxu0 0.0
  %474 = vmatpush2.msra.mxu0 0.0
  %475 = vmatprep.subr.mxu0 0.0
  %476 = vmatpush2.msra.mxu0 0.0
  %477 = vmatprep.subr.mxu0 0.0
  %478 = vmatpush2.msra.mxu0 0.0
  %479 = vmatprep.subr.mxu0 0.0
  %480 = vmatpush2.msra.mxu0 0.0
  %481 = vmatprep.subr.mxu0 0.0
  %482 = vmatpush2.msra.mxu0 0.0
  %483 = vmatprep.subr.mxu0 0.0
  %484 = vmatpush2.msra.mxu0 0.0
  %485 = vmatprep.subr.mxu0 0.0
  %486 = vmatpush2.msra.mxu0 0.0
  %487 = vmatprep.mubr.f32.mxu0 0.0
  %488 = vmatmul.mubr.f32.gmra.mxu0 %v208
  %v489 = vpop.f32.mrf.mxu0
  %v490 = vadd.f32 %v193, %v489
  %v491 = vpop.f32.mrf.mxu0
  %v492 = vadd.f32 %v197, %v491
  %493 = vdwg.mxu0
  %494 = vst [vmem:[%s10] sm:$0xff] %v277
  %495 = vst [vmem:[%s10 + $0x8] sm:$0xff] %v279
  %496 = vst [vmem:[%s10 + $0x10] sm:$0xff] %v348
  %497 = vst [vmem:[%s10 + $0x18] sm:$0xff] %v350
  %498 = vst [vmem:[%s10 + $0x20] sm:$0xff] %v419
  %499 = vst [vmem:[%s10 + $0x28] sm:$0xff] %v421
  %500 = vst [vmem:[%s10 + $0x30] sm:$0xff] %v490
  %501 = vst [vmem:[%s10 + $0x38] sm:$0xff] %v492
  %v502 = vld [vmem:[%s5] sm:$0xff]
  %v503 = vld [vmem:[%s5 + $0x8] sm:$0xff]
  %v504 = vld [vmem:[%s6] sm:$0xff]
  %v505 = vld [vmem:[%s6 + $0x8] sm:$0xff]
  %v506 = vld [vmem:[%s6 + $0x10] sm:$0xff]
  %v507 = vld [vmem:[%s6 + $0x18] sm:$0xff]
  %v508 = vld [vmem:[%s6 + $0x20] sm:$0xff]
  %v509 = vld [vmem:[%s6 + $0x28] sm:$0xff]
  %v510 = vld [vmem:[%s6 + $0x30] sm:$0xff]
  %v511 = vld [vmem:[%s6 + $0x38] sm:$0xff]
  %v512 = vld [vmem:[%s6 + $0x40] sm:$0xff]
  %v513 = vld [vmem:[%s6 + $0x48] sm:$0xff]
  %v514 = vld [vmem:[%s6 + $0x50] sm:$0xff]
  %v515 = vld [vmem:[%s6 + $0x58] sm:$0xff]
  %v516 = vld [vmem:[%s6 + $0x60] sm:$0xff]
  %v517 = vld [vmem:[%s6 + $0x68] sm:$0xff]
  %v518 = vld [vmem:[%s6 + $0x70] sm:$0xff]
  %v519 = vld [vmem:[%s6 + $0x78] sm:$0xff]
  %v520 = vld [vmem:[%s6 + $0x80] sm:$0xff]
  %v521 = vld [vmem:[%s6 + $0x88] sm:$0xff]
  %v522 = vld [vmem:[%s6 + $0x90] sm:$0xff]
  %v523 = vld [vmem:[%s6 + $0x98] sm:$0xff]
  %v524 = vld [vmem:[%s6 + $0xa0] sm:$0xff]
  %v525 = vld [vmem:[%s6 + $0xa8] sm:$0xff]
  %v526 = vld [vmem:[%s6 + $0xb0] sm:$0xff]
  %v527 = vld [vmem:[%s6 + $0xb8] sm:$0xff]
  %v528 = vld [vmem:[%s6 + $0xc0] sm:$0xff]
  %v529 = vld [vmem:[%s6 + $0xc8] sm:$0xff]
  %v530 = vld [vmem:[%s6 + $0xd0] sm:$0xff]
  %v531 = vld [vmem:[%s6 + $0xd8] sm:$0xff]
  %v532 = vld [vmem:[%s6 + $0xe0] sm:$0xff]
  %v533 = vld [vmem:[%s6 + $0xe8] sm:$0xff]
  %v534 = vld [vmem:[%s6 + $0xf0] sm:$0xff]
  %v535 = vld [vmem:[%s6 + $0xf8] sm:$0xff]
  %v536 = vld [vmem:[%s7] sm:$0x1]
  %v538 = vlaneseq
  %v539 = vshrl.u32 %v538, 7
  %v540 = vsub.s32 0, %v539
  %v541 = vrot.slane %v536, %v540
  %543 = vmatprep.subr.mxu0 0.0
  %544 = vmatpush1.msra.mxu0 %v519
  %545 = vmatprep.subr.mxu0 0.0
  %546 = vmatpush1.msra.mxu0 %v518
  %547 = vmatprep.subr.mxu0 0.0
  %548 = vmatpush1.msra.mxu0 %v517
  %549 = vmatprep.subr.mxu0 0.0
  %550 = vmatpush1.msra.mxu0 %v516
  %551 = vmatprep.subr.mxu0 0.0
  %552 = vmatpush1.msra.mxu0 %v515
  %553 = vmatprep.subr.mxu0 0.0
  %554 = vmatpush1.msra.mxu0 %v514
  %555 = vmatprep.subr.mxu0 0.0
  %556 = vmatpush1.msra.mxu0 %v513
  %557 = vmatprep.subr.mxu0 0.0
  %558 = vmatpush1.msra.mxu0 %v512
  %559 = vmatprep.subr.mxu0 0.0
  %560 = vmatpush1.msra.mxu0 %v511
  %561 = vmatprep.subr.mxu0 0.0
  %562 = vmatpush1.msra.mxu0 %v510
  %563 = vmatprep.subr.mxu0 0.0
  %564 = vmatpush1.msra.mxu0 %v509
  %565 = vmatprep.subr.mxu0 0.0
  %566 = vmatpush1.msra.mxu0 %v508
  %567 = vmatprep.subr.mxu0 0.0
  %568 = vmatpush1.msra.mxu0 %v507
  %569 = vmatprep.subr.mxu0 0.0
  %570 = vmatpush1.msra.mxu0 %v506
  %571 = vmatprep.subr.mxu0 0.0
  %572 = vmatpush1.msra.mxu0 %v505
  %573 = vmatprep.subr.mxu0 0.0
  %574 = vmatpush1.msra.mxu0 %v504
  %575 = vmatprep.subr.mxu0 0.0
  %576 = vmatpush2.msra.mxu0 %v535
  %577 = vmatprep.subr.mxu0 0.0
  %578 = vmatpush2.msra.mxu0 %v534
  %579 = vmatprep.subr.mxu0 0.0
  %580 = vmatpush2.msra.mxu0 %v533
  %581 = vmatprep.subr.mxu0 0.0
  %582 = vmatpush2.msra.mxu0 %v532
  %583 = vmatprep.subr.mxu0 0.0
  %584 = vmatpush2.msra.mxu0 %v531
  %585 = vmatprep.subr.mxu0 0.0
  %586 = vmatpush2.msra.mxu0 %v530
  %587 = vmatprep.subr.mxu0 0.0
  %588 = vmatpush2.msra.mxu0 %v529
  %589 = vmatprep.subr.mxu0 0.0
  %590 = vmatpush2.msra.mxu0 %v528
  %591 = vmatprep.subr.mxu0 0.0
  %592 = vmatpush2.msra.mxu0 %v527
  %593 = vmatprep.subr.mxu0 0.0
  %594 = vmatpush2.msra.mxu0 %v526
  %595 = vmatprep.subr.mxu0 0.0
  %596 = vmatpush2.msra.mxu0 %v525
  %597 = vmatprep.subr.mxu0 0.0
  %598 = vmatpush2.msra.mxu0 %v524
  %599 = vmatprep.subr.mxu0 0.0
  %600 = vmatpush2.msra.mxu0 %v523
  %601 = vmatprep.subr.mxu0 0.0
  %602 = vmatpush2.msra.mxu0 %v522
  %603 = vmatprep.subr.mxu0 0.0
  %604 = vmatpush2.msra.mxu0 %v521
  %605 = vmatprep.subr.mxu0 0.0
  %606 = vmatpush2.msra.mxu0 %v520
  %607 = vmatprep.mubr.f32.mxu0 %v503
  %608 = vmatmul.mubr.f32.gmra.mxu0 %v502
  %v609 = vpop.f32.mrf.mxu0
  %v610 = vadd.f32 %v541, %v609
  %v611 = vpop.f32.mrf.mxu0
  %612 = vdwg.mxu0
  %v613 = vld [vmem:[%s8] sm:$0xff]
  %v614 = vld [vmem:[%s8 + $0x8] sm:$0xff]
  %v615 = vld [vmem:[%s9] sm:$0x1]
  %v617 = vlaneseq
  %v618 = vshrl.u32 %v617, 7
  %v619 = vsub.s32 0, %v618
  %v620 = vrot.slane %v615, %v619
  %v623 = vsel %vm206, %v610, 0
  %625 = vmatprep.subr.mxu0 0.0
  %626 = vmatpush1.msra.mxu0 0.0
  %627 = vmatprep.subr.mxu0 0.0
  %628 = vmatpush1.msra.mxu0 0.0
  %629 = vmatprep.subr.mxu0 0.0
  %630 = vmatpush1.msra.mxu0 0.0
  %631 = vmatprep.subr.mxu0 0.0
  %632 = vmatpush1.msra.mxu0 0.0
  %633 = vmatprep.subr.mxu0 0.0
  %634 = vmatpush1.msra.mxu0 0.0
  %635 = vmatprep.subr.mxu0 0.0
  %636 = vmatpush1.msra.mxu0 0.0
  %637 = vmatprep.subr.mxu0 0.0
  %638 = vmatpush1.msra.mxu0 0.0
  %639 = vmatprep.subr.mxu0 0.0
  %640 = vmatpush1.msra.mxu0 0.0
  %641 = vmatprep.subr.mxu0 0.0
  %642 = vmatpush1.msra.mxu0 0.0
  %643 = vmatprep.subr.mxu0 0.0
  %644 = vmatpush1.msra.mxu0 0.0
  %645 = vmatprep.subr.mxu0 0.0
  %646 = vmatpush1.msra.mxu0 0.0
  %647 = vmatprep.subr.mxu0 0.0
  %648 = vmatpush1.msra.mxu0 0.0
  %649 = vmatprep.subr.mxu0 0.0
  %650 = vmatpush1.msra.mxu0 0.0
  %651 = vmatprep.subr.mxu0 0.0
  %652 = vmatpush1.msra.mxu0 0.0
  %653 = vmatprep.subr.mxu0 0.0
  %654 = vmatpush1.msra.mxu0 %v614
  %655 = vmatprep.subr.mxu0 0.0
  %656 = vmatpush1.msra.mxu0 %v613
  %657 = vmatprep.subr.mxu0 0.0
  %658 = vmatpush2.msra.mxu0 0.0
  %659 = vmatprep.subr.mxu0 0.0
  %660 = vmatpush2.msra.mxu0 0.0
  %661 = vmatprep.subr.mxu0 0.0
  %662 = vmatpush2.msra.mxu0 0.0
  %663 = vmatprep.subr.mxu0 0.0
  %664 = vmatpush2.msra.mxu0 0.0
  %665 = vmatprep.subr.mxu0 0.0
  %666 = vmatpush2.msra.mxu0 0.0
  %667 = vmatprep.subr.mxu0 0.0
  %668 = vmatpush2.msra.mxu0 0.0
  %669 = vmatprep.subr.mxu0 0.0
  %670 = vmatpush2.msra.mxu0 0.0
  %671 = vmatprep.subr.mxu0 0.0
  %672 = vmatpush2.msra.mxu0 0.0
  %673 = vmatprep.subr.mxu0 0.0
  %674 = vmatpush2.msra.mxu0 0.0
  %675 = vmatprep.subr.mxu0 0.0
  %676 = vmatpush2.msra.mxu0 0.0
  %677 = vmatprep.subr.mxu0 0.0
  %678 = vmatpush2.msra.mxu0 0.0
  %679 = vmatprep.subr.mxu0 0.0
  %680 = vmatpush2.msra.mxu0 0.0
  %681 = vmatprep.subr.mxu0 0.0
  %682 = vmatpush2.msra.mxu0 0.0
  %683 = vmatprep.subr.mxu0 0.0
  %684 = vmatpush2.msra.mxu0 0.0
  %685 = vmatprep.subr.mxu0 0.0
  %686 = vmatpush2.msra.mxu0 0.0
  %687 = vmatprep.subr.mxu0 0.0
  %688 = vmatpush2.msra.mxu0 0.0
  %689 = vmatprep.mubr.f32.mxu0 0.0
  %690 = vmatmul.mubr.f32.gmra.mxu0 %v623
  %v691 = vpop.f32.mrf.mxu0
  %v692 = vadd.f32 %v620, %v691
  %v693 = vpop.f32.mrf.mxu0
  %694 = vdwg.mxu0
  %vm695 = vcmask 523264
  %696 = vst.msk [vmem:[%s11] sm:$0xff] %vm695, %v692
  // Predicated region
  $region42: #{hrmodule_m2mrf_forward.6} parent=0 // pred_check
    _
  $region43: #{hrmodule_m2mrf_forward.6} parent=0 // pred_check_branch
    %698 = sbr.rel (0) target = $region45
  $region44: #{hrmodule_m2mrf_forward.6} parent=0 // pred_region
    _
  $region45: #{hrmodule_m2mrf_forward.6} parent=0 // pred_fallthru
    _
  // Predicated region
  $region46: #{hrmodule_m2mrf_forward.6} parent=0 // pred_check
    _
  $region47: #{hrmodule_m2mrf_forward.6} parent=0 // pred_check_branch
    %700 = sbr.rel (0) target = $region49
  $region48: #{hrmodule_m2mrf_forward.6} parent=0 // pred_region
    _
  $region49: #{hrmodule_m2mrf_forward.6} parent=0 // pred_fallthru
    _
  // Predicated region
  $region50: #{hrmodule_m2mrf_forward.6} parent=0 // pred_check
    _
  $region51: #{hrmodule_m2mrf_forward.6} parent=0 // pred_check_branch
    %702 = sbr.rel (0) target = $region53
  $region52: #{hrmodule_m2mrf_forward.6} parent=0 // pred_region
    _
  $region53: #{hrmodule_m2mrf_forward.6} parent=0 // pred_fallthru
    _
  // Predicated region
  $region54: #{hrmodule_m2mrf_forward.6} parent=0 // pred_check
    _
  $region55: #{hrmodule_m2mrf_forward.6} parent=0 // pred_check_branch
    %704 = sbr.rel (0) target = $region57
  $region56: #{hrmodule_m2mrf_forward.6} parent=0 // pred_region
    _
  $region57: #{hrmodule_m2mrf_forward.6} parent=0 // pred_fallthru
    _

// kernel: hrmodule_m2mrf_forward.7
$region0: #{hrmodule_m2mrf_forward.7}
  #allocation0 [shape = 'u32[]', space=smem, size = 0x4, offset = 0x4, fixed_abs, tag = 'smem constant byte address 0x4 - core index']
  #allocation1 [shape = 'u32[144,128]{1,0:T(1,128)}', space=vmem, size = 0x12000, scoped, tag = 'internal scratch']
  %s0 = inlined_call_operand.vmem [shape: f32[8,512], index: 0, kind: input, shape index: {}]
  %s1 = inlined_call_operand.vmem [shape: f32[16,8], index: 1, kind: input, shape index: {}]
  %s2 = inlined_call_operand.vmem [shape: f32[16,1], index: 2, kind: input, shape index: {}]
  %s3 = inlined_call_operand.vmem [shape: f32[16,512], index: 3, kind: input, shape index: {}, may-alias: {3,10}]
  %s4 = inlined_call_operand.vmem [shape: f32[8,128], index: 4, kind: input, shape index: {}]
  %s5 = inlined_call_operand.vmem [shape: f32[32,8], index: 5, kind: input, shape index: {}]
  %s6 = inlined_call_operand.vmem [shape: f32[32,1], index: 6, kind: input, shape index: {}]
  %s7 = inlined_call_operand.vmem [shape: f32[32,1], index: 7, kind: input, shape index: {}]
  %s8 = inlined_call_operand.vmem [shape: f32[32,1], index: 8, kind: input, shape index: {}]
  %s9 = inlined_call_operand.vmem [shape: f32[32,128], index: 9, kind: input, shape index: {}, may-alias: {9,11}]
  %s10 = inlined_call_operand.vmem [shape: f32[16,512], index: 10, kind: output, shape index: {0}, may-alias: {3,10}]
  %s11 = inlined_call_operand.vmem [shape: f32[32,128], index: 11, kind: output, shape index: {1}, may-alias: {9,11}]
  %12 = xla_tuple %s10, %s11
  %s13 = sld [smem:[#allocation0]]
  $region58: #{hrmodule_m2mrf_forward.7} parent=0
    _
  %s15 = ssub.s32 1, %s13
  %s16 = scalar_select 0, %s15, %s13
  // Predicated region
  $region2: #{hrmodule_m2mrf_forward.7} parent=0 // pred_check
    _
  $region3: #{hrmodule_m2mrf_forward.7} parent=0 // pred_check_branch
    %18 = sbr.rel (0) target = $region5
  $region4: #{hrmodule_m2mrf_forward.7} parent=0 // pred_region
    _
  $region5: #{hrmodule_m2mrf_forward.7} parent=0 // pred_fallthru
    _
  // Predicated region
  $region6: #{hrmodule_m2mrf_forward.7} parent=0 // pred_check
    _
  $region7: #{hrmodule_m2mrf_forward.7} parent=0 // pred_check_branch
    %20 = sbr.rel (0) target = $region9
  $region8: #{hrmodule_m2mrf_forward.7} parent=0 // pred_region
    _
  $region9: #{hrmodule_m2mrf_forward.7} parent=0 // pred_fallthru
    _
  // Predicated region
  $region10: #{hrmodule_m2mrf_forward.7} parent=0 // pred_check
    _
  $region11: #{hrmodule_m2mrf_forward.7} parent=0 // pred_check_branch
    %22 = sbr.rel (0) target = $region13
  $region12: #{hrmodule_m2mrf_forward.7} parent=0 // pred_region
    _
  $region13: #{hrmodule_m2mrf_forward.7} parent=0 // pred_fallthru
    _
  // Predicated region
  $region14: #{hrmodule_m2mrf_forward.7} parent=0 // pred_check
    _
  $region15: #{hrmodule_m2mrf_forward.7} parent=0 // pred_check_branch
    %24 = sbr.rel (0) target = $region17
  $region16: #{hrmodule_m2mrf_forward.7} parent=0 // pred_region
    _
  $region17: #{hrmodule_m2mrf_forward.7} parent=0 // pred_fallthru
    _
  // Predicated region
  $region18: #{hrmodule_m2mrf_forward.7} parent=0 // pred_check
    _
  $region19: #{hrmodule_m2mrf_forward.7} parent=0 // pred_check_branch
    %26 = sbr.rel (0) target = $region21
  $region20: #{hrmodule_m2mrf_forward.7} parent=0 // pred_region
    _
  $region21: #{hrmodule_m2mrf_forward.7} parent=0 // pred_fallthru
    _
  // Predicated region
  $region22: #{hrmodule_m2mrf_forward.7} parent=0 // pred_check
    _
  $region23: #{hrmodule_m2mrf_forward.7} parent=0 // pred_check_branch
    %28 = sbr.rel (0) target = $region25
  $region24: #{hrmodule_m2mrf_forward.7} parent=0 // pred_region
    _
  $region25: #{hrmodule_m2mrf_forward.7} parent=0 // pred_fallthru
    _
  // Predicated region
  $region26: #{hrmodule_m2mrf_forward.7} parent=0 // pred_check
    _
  $region27: #{hrmodule_m2mrf_forward.7} parent=0 // pred_check_branch
    %30 = sbr.rel (0) target = $region29
  $region28: #{hrmodule_m2mrf_forward.7} parent=0 // pred_region
    _
  $region29: #{hrmodule_m2mrf_forward.7} parent=0 // pred_fallthru
    _
  // Predicated region
  $region30: #{hrmodule_m2mrf_forward.7} parent=0 // pred_check
    _
  $region31: #{hrmodule_m2mrf_forward.7} parent=0 // pred_check_branch
    %32 = sbr.rel (0) target = $region33
  $region32: #{hrmodule_m2mrf_forward.7} parent=0 // pred_region
    _
  $region33: #{hrmodule_m2mrf_forward.7} parent=0 // pred_fallthru
    _
  // Predicated region
  $region34: #{hrmodule_m2mrf_forward.7} parent=0 // pred_check
    _
  $region35: #{hrmodule_m2mrf_forward.7} parent=0 // pred_check_branch
    %34 = sbr.rel (0) target = $region37
  $region36: #{hrmodule_m2mrf_forward.7} parent=0 // pred_region
    _
  $region37: #{hrmodule_m2mrf_forward.7} parent=0 // pred_fallthru
    _
  // Predicated region
  $region38: #{hrmodule_m2mrf_forward.7} parent=0 // pred_check
    _
  $region39: #{hrmodule_m2mrf_forward.7} parent=0 // pred_check_branch
    %36 = sbr.rel (0) target = $region41
  $region40: #{hrmodule_m2mrf_forward.7} parent=0 // pred_region
    _
  $region41: #{hrmodule_m2mrf_forward.7} parent=0 // pred_fallthru
    _
  %v37 = vld [vmem:[%s1] sm:$0xff]
  %v38 = vld [vmem:[%s1 + $0x8] sm:$0xff]
  %v39 = vld [vmem:[%s0] sm:$0xff]
  %v40 = vld [vmem:[%s0 + $0x8] sm:$0xff]
  %v41 = vld [vmem:[%s0 + $0x10] sm:$0xff]
  %v42 = vld [vmem:[%s0 + $0x18] sm:$0xff]
  %v43 = vld [vmem:[%s2] sm:$0xff]
  %v44 = vld [vmem:[%s2 + $0x8] sm:$0xff]
  %46 = vset.pattern.permute.xlu0 0
  %47 = vperm.xlu0 %46, %v43
  %v48 = vpop.permute.xlu0 %47
  %51 = vset.pattern.permute.xlu0 0
  %52 = vperm.xlu0 %51, %v44
  %v53 = vpop.permute.xlu0 %52
  %vm55 = vcmask 64512
  %v57 = vsel %vm55, %v37, 0
  %v60 = vsel %vm55, %v38, 0
  %62 = vmatprep.subr.mxu0 0.0
  %63 = vmatpush1.msra.mxu0 0.0
  %64 = vmatprep.subr.mxu0 0.0
  %65 = vmatpush1.msra.mxu0 0.0
  %66 = vmatprep.subr.mxu0 0.0
  %67 = vmatpush1.msra.mxu0 0.0
  %68 = vmatprep.subr.mxu0 0.0
  %69 = vmatpush1.msra.mxu0 0.0
  %70 = vmatprep.subr.mxu0 0.0
  %71 = vmatpush1.msra.mxu0 0.0
  %72 = vmatprep.subr.mxu0 0.0
  %73 = vmatpush1.msra.mxu0 0.0
  %74 = vmatprep.subr.mxu0 0.0
  %75 = vmatpush1.msra.mxu0 0.0
  %76 = vmatprep.subr.mxu0 0.0
  %77 = vmatpush1.msra.mxu0 0.0
  %78 = vmatprep.subr.mxu0 0.0
  %79 = vmatpush1.msra.mxu0 0.0
  %80 = vmatprep.subr.mxu0 0.0
  %81 = vmatpush1.msra.mxu0 0.0
  %82 = vmatprep.subr.mxu0 0.0
  %83 = vmatpush1.msra.mxu0 0.0
  %84 = vmatprep.subr.mxu0 0.0
  %85 = vmatpush1.msra.mxu0 0.0
  %86 = vmatprep.subr.mxu0 0.0
  %87 = vmatpush1.msra.mxu0 0.0
  %88 = vmatprep.subr.mxu0 0.0
  %89 = vmatpush1.msra.mxu0 0.0
  %90 = vmatprep.subr.mxu0 0.0
  %91 = vmatpush1.msra.mxu0 0.0
  %92 = vmatprep.subr.mxu0 %v40
  %93 = vmatpush1.msra.mxu0 %v39
  %94 = vmatprep.subr.mxu0 0.0
  %95 = vmatpush2.msra.mxu0 0.0
  %96 = vmatprep.subr.mxu0 0.0
  %97 = vmatpush2.msra.mxu0 0.0
  %98 = vmatprep.subr.mxu0 0.0
  %99 = vmatpush2.msra.mxu0 0.0
  %100 = vmatprep.subr.mxu0 0.0
  %101 = vmatpush2.msra.mxu0 0.0
  %102 = vmatprep.subr.mxu0 0.0
  %103 = vmatpush2.msra.mxu0 0.0
  %104 = vmatprep.subr.mxu0 0.0
  %105 = vmatpush2.msra.mxu0 0.0
  %106 = vmatprep.subr.mxu0 0.0
  %107 = vmatpush2.msra.mxu0 0.0
  %108 = vmatprep.subr.mxu0 0.0
  %109 = vmatpush2.msra.mxu0 0.0
  %110 = vmatprep.subr.mxu0 0.0
  %111 = vmatpush2.msra.mxu0 0.0
  %112 = vmatprep.subr.mxu0 0.0
  %113 = vmatpush2.msra.mxu0 0.0
  %114 = vmatprep.subr.mxu0 0.0
  %115 = vmatpush2.msra.mxu0 0.0
  %116 = vmatprep.subr.mxu0 0.0
  %117 = vmatpush2.msra.mxu0 0.0
  %118 = vmatprep.subr.mxu0 0.0
  %119 = vmatpush2.msra.mxu0 0.0
  %120 = vmatprep.subr.mxu0 0.0
  %121 = vmatpush2.msra.mxu0 0.0
  %122 = vmatprep.subr.mxu0 0.0
  %123 = vmatpush2.msra.mxu0 0.0
  %124 = vmatprep.subr.mxu0 0.0
  %125 = vmatpush2.msra.mxu0 0.0
  %126 = vmatprep.mubr.f32.mxu0 0.0
  %127 = vmatmul.mubr.f32.gmra.mxu0 %v57
  %v128 = vpop.f32.mrf.mxu0
  %v129 = vadd.f32 %v48, %v128
  %v130 = vpop.f32.mrf.mxu0
  %v131 = vadd.f32 %v48, %v130
  %132 = vmatprep.mubr.f32.mxu0 0.0
  %133 = vmatmul.mubr.f32.gmra.mxu0 %v60
  %v134 = vpop.f32.mrf.mxu0
  %v135 = vadd.f32 %v53, %v134
  %v136 = vpop.f32.mrf.mxu0
  %v137 = vadd.f32 %v53, %v136
  %138 = vdwg.mxu0
  %139 = vmatprep.subr.mxu0 0.0
  %140 = vmatpush1.msra.mxu0 0.0
  %141 = vmatprep.subr.mxu0 0.0
  %142 = vmatpush1.msra.mxu0 0.0
  %143 = vmatprep.subr.mxu0 0.0
  %144 = vmatpush1.msra.mxu0 0.0
  %145 = vmatprep.subr.mxu0 0.0
  %146 = vmatpush1.msra.mxu0 0.0
  %147 = vmatprep.subr.mxu0 0.0
  %148 = vmatpush1.msra.mxu0 0.0
  %149 = vmatprep.subr.mxu0 0.0
  %150 = vmatpush1.msra.mxu0 0.0
  %151 = vmatprep.subr.mxu0 0.0
  %152 = vmatpush1.msra.mxu0 0.0
  %153 = vmatprep.subr.mxu0 0.0
  %154 = vmatpush1.msra.mxu0 0.0
  %155 = vmatprep.subr.mxu0 0.0
  %156 = vmatpush1.msra.mxu0 0.0
  %157 = vmatprep.subr.mxu0 0.0
  %158 = vmatpush1.msra.mxu0 0.0
  %159 = vmatprep.subr.mxu0 0.0
  %160 = vmatpush1.msra.mxu0 0.0
  %161 = vmatprep.subr.mxu0 0.0
  %162 = vmatpush1.msra.mxu0 0.0
  %163 = vmatprep.subr.mxu0 0.0
  %164 = vmatpush1.msra.mxu0 0.0
  %165 = vmatprep.subr.mxu0 0.0
  %166 = vmatpush1.msra.mxu0 0.0
  %167 = vmatprep.subr.mxu0 0.0
  %168 = vmatpush1.msra.mxu0 0.0
  %169 = vmatprep.subr.mxu0 %v42
  %170 = vmatpush1.msra.mxu0 %v41
  %171 = vmatprep.subr.mxu0 0.0
  %172 = vmatpush2.msra.mxu0 0.0
  %173 = vmatprep.subr.mxu0 0.0
  %174 = vmatpush2.msra.mxu0 0.0
  %175 = vmatprep.subr.mxu0 0.0
  %176 = vmatpush2.msra.mxu0 0.0
  %177 = vmatprep.subr.mxu0 0.0
  %178 = vmatpush2.msra.mxu0 0.0
  %179 = vmatprep.subr.mxu0 0.0
  %180 = vmatpush2.msra.mxu0 0.0
  %181 = vmatprep.subr.mxu0 0.0
  %182 = vmatpush2.msra.mxu0 0.0
  %183 = vmatprep.subr.mxu0 0.0
  %184 = vmatpush2.msra.mxu0 0.0
  %185 = vmatprep.subr.mxu0 0.0
  %186 = vmatpush2.msra.mxu0 0.0
  %187 = vmatprep.subr.mxu0 0.0
  %188 = vmatpush2.msra.mxu0 0.0
  %189 = vmatprep.subr.mxu0 0.0
  %190 = vmatpush2.msra.mxu0 0.0
  %191 = vmatprep.subr.mxu0 0.0
  %192 = vmatpush2.msra.mxu0 0.0
  %193 = vmatprep.subr.mxu0 0.0
  %194 = vmatpush2.msra.mxu0 0.0
  %195 = vmatprep.subr.mxu0 0.0
  %196 = vmatpush2.msra.mxu0 0.0
  %197 = vmatprep.subr.mxu0 0.0
  %198 = vmatpush2.msra.mxu0 0.0
  %199 = vmatprep.subr.mxu0 0.0
  %200 = vmatpush2.msra.mxu0 0.0
  %201 = vmatprep.subr.mxu0 0.0
  %202 = vmatpush2.msra.mxu0 0.0
  %203 = vmatprep.mubr.f32.mxu0 0.0
  %204 = vmatmul.mubr.f32.gmra.mxu0 %v57
  %v205 = vpop.f32.mrf.mxu0
  %v206 = vadd.f32 %v48, %v205
  %v207 = vpop.f32.mrf.mxu0
  %v208 = vadd.f32 %v48, %v207
  %209 = vmatprep.mubr.f32.mxu0 0.0
  %210 = vmatmul.mubr.f32.gmra.mxu0 %v60
  %v211 = vpop.f32.mrf.mxu0
  %v212 = vadd.f32 %v53, %v211
  %v213 = vpop.f32.mrf.mxu0
  %v214 = vadd.f32 %v53, %v213
  %215 = vdwg.mxu0
  %v216 = vld [vmem:[%s3] sm:$0xff]
  %v217 = vld [vmem:[%s3 + $0x8] sm:$0xff]
  %v218 = vld [vmem:[%s3 + $0x10] sm:$0xff]
  %v219 = vld [vmem:[%s3 + $0x18] sm:$0xff]
  %v220 = vld [vmem:[%s3 + $0x20] sm:$0xff]
  %v221 = vld [vmem:[%s3 + $0x28] sm:$0xff]
  %v222 = vld [vmem:[%s3 + $0x30] sm:$0xff]
  %v223 = vld [vmem:[%s3 + $0x38] sm:$0xff]
  %v224 = vadd.f32 %v216, %v129
  %v225 = vadd.f32 %v217, %v131
  %v226 = vadd.f32 %v218, %v206
  %v227 = vadd.f32 %v219, %v208
  %v228 = vadd.f32 %v220, %v135
  %v229 = vadd.f32 %v221, %v137
  %v230 = vadd.f32 %v222, %v212
  %v231 = vadd.f32 %v223, %v214
  %v232 = vmax.f32 %v224, 0.0
  %v233 = vmax.f32 %v225, 0.0
  %v234 = vmax.f32 %v226, 0.0
  %v235 = vmax.f32 %v227, 0.0
  %v236 = vmax.f32 %v228, 0.0
  %v237 = vmax.f32 %v229, 0.0
  %v238 = vmax.f32 %v230, 0.0
  %v239 = vmax.f32 %v231, 0.0
  %240 = vst [vmem:[%s10] sm:$0xff] %v232
  %241 = vst [vmem:[%s10 + $0x8] sm:$0xff] %v233
  %242 = vst [vmem:[%s10 + $0x10] sm:$0xff] %v234
  %243 = vst [vmem:[%s10 + $0x18] sm:$0xff] %v235
  %244 = vst [vmem:[%s10 + $0x20] sm:$0xff] %v236
  %245 = vst [vmem:[%s10 + $0x28] sm:$0xff] %v237
  %246 = vst [vmem:[%s10 + $0x30] sm:$0xff] %v238
  %247 = vst [vmem:[%s10 + $0x38] sm:$0xff] %v239
  %v248 = vld [vmem:[%s5] sm:$0xff]
  %v249 = vld [vmem:[%s5 + $0x8] sm:$0xff]
  %v250 = vld [vmem:[%s5 + $0x10] sm:$0xff]
  %v251 = vld [vmem:[%s5 + $0x18] sm:$0xff]
  %v252 = vld [vmem:[%s4] sm:$0xff]
  %v253 = vld [vmem:[%s6] sm:$0xff]
  %v254 = vld [vmem:[%s6 + $0x8] sm:$0xff]
  %v255 = vld [vmem:[%s6 + $0x10] sm:$0xff]
  %v256 = vld [vmem:[%s6 + $0x18] sm:$0xff]
  %258 = vset.pattern.permute.xlu0 0
  %259 = vperm.xlu0 %258, %v253
  %v260 = vpop.permute.xlu0 %259
  %263 = vset.pattern.permute.xlu0 0
  %264 = vperm.xlu0 %263, %v254
  %v265 = vpop.permute.xlu0 %264
  %268 = vset.pattern.permute.xlu0 0
  %269 = vperm.xlu0 %268, %v255
  %v270 = vpop.permute.xlu0 %269
  %273 = vset.pattern.permute.xlu0 0
  %274 = vperm.xlu0 %273, %v256
  %v275 = vpop.permute.xlu0 %274
  %v278 = vsel %vm55, %v248, 0
  %v281 = vsel %vm55, %v249, 0
  %v284 = vsel %vm55, %v250, 0
  %v287 = vsel %vm55, %v251, 0
  %289 = vmatprep.subr.mxu0 0.0
  %290 = vmatpush1.msra.mxu0 0.0
  %291 = vmatprep.subr.mxu0 0.0
  %292 = vmatpush1.msra.mxu0 0.0
  %293 = vmatprep.subr.mxu0 0.0
  %294 = vmatpush1.msra.mxu0 0.0
  %295 = vmatprep.subr.mxu0 0.0
  %296 = vmatpush1.msra.mxu0 0.0
  %297 = vmatprep.subr.mxu0 0.0
  %298 = vmatpush1.msra.mxu0 0.0
  %299 = vmatprep.subr.mxu0 0.0
  %300 = vmatpush1.msra.mxu0 0.0
  %301 = vmatprep.subr.mxu0 0.0
  %302 = vmatpush1.msra.mxu0 0.0
  %303 = vmatprep.subr.mxu0 0.0
  %304 = vmatpush1.msra.mxu0 0.0
  %305 = vmatprep.subr.mxu0 0.0
  %306 = vmatpush1.msra.mxu0 0.0
  %307 = vmatprep.subr.mxu0 0.0
  %308 = vmatpush1.msra.mxu0 0.0
  %309 = vmatprep.subr.mxu0 0.0
  %310 = vmatpush1.msra.mxu0 0.0
  %311 = vmatprep.subr.mxu0 0.0
  %312 = vmatpush1.msra.mxu0 0.0
  %313 = vmatprep.subr.mxu0 0.0
  %314 = vmatpush1.msra.mxu0 0.0
  %315 = vmatprep.subr.mxu0 0.0
  %316 = vmatpush1.msra.mxu0 0.0
  %317 = vmatprep.subr.mxu0 0.0
  %318 = vmatpush1.msra.mxu0 0.0
  %319 = vmatprep.subr.mxu0 0.0
  %320 = vmatpush1.msra.mxu0 %v252
  %321 = vmatprep.subr.mxu0 0.0
  %322 = vmatpush2.msra.mxu0 0.0
  %323 = vmatprep.subr.mxu0 0.0
  %324 = vmatpush2.msra.mxu0 0.0
  %325 = vmatprep.subr.mxu0 0.0
  %326 = vmatpush2.msra.mxu0 0.0
  %327 = vmatprep.subr.mxu0 0.0
  %328 = vmatpush2.msra.mxu0 0.0
  %329 = vmatprep.subr.mxu0 0.0
  %330 = vmatpush2.msra.mxu0 0.0
  %331 = vmatprep.subr.mxu0 0.0
  %332 = vmatpush2.msra.mxu0 0.0
  %333 = vmatprep.subr.mxu0 0.0
  %334 = vmatpush2.msra.mxu0 0.0
  %335 = vmatprep.subr.mxu0 0.0
  %336 = vmatpush2.msra.mxu0 0.0
  %337 = vmatprep.subr.mxu0 0.0
  %338 = vmatpush2.msra.mxu0 0.0
  %339 = vmatprep.subr.mxu0 0.0
  %340 = vmatpush2.msra.mxu0 0.0
  %341 = vmatprep.subr.mxu0 0.0
  %342 = vmatpush2.msra.mxu0 0.0
  %343 = vmatprep.subr.mxu0 0.0
  %344 = vmatpush2.msra.mxu0 0.0
  %345 = vmatprep.subr.mxu0 0.0
  %346 = vmatpush2.msra.mxu0 0.0
  %347 = vmatprep.subr.mxu0 0.0
  %348 = vmatpush2.msra.mxu0 0.0
  %349 = vmatprep.subr.mxu0 0.0
  %350 = vmatpush2.msra.mxu0 0.0
  %351 = vmatprep.subr.mxu0 0.0
  %352 = vmatpush2.msra.mxu0 0.0
  %353 = vmatprep.mubr.f32.mxu0 0.0
  %354 = vmatmul.mubr.f32.gmra.mxu0 %v278
  %v355 = vpop.f32.mrf.mxu0
  %v356 = vadd.f32 %v260, %v355
  %v357 = vpop.f32.mrf.mxu0
  %358 = vmatprep.mubr.f32.mxu0 0.0
  %359 = vmatmul.mubr.f32.gmra.mxu0 %v281
  %v360 = vpop.f32.mrf.mxu0
  %v361 = vadd.f32 %v265, %v360
  %v362 = vpop.f32.mrf.mxu0
  %363 = vmatprep.mubr.f32.mxu0 0.0
  %364 = vmatmul.mubr.f32.gmra.mxu0 %v284
  %v365 = vpop.f32.mrf.mxu0
  %v366 = vadd.f32 %v270, %v365
  %v367 = vpop.f32.mrf.mxu0
  %368 = vmatprep.mubr.f32.mxu0 0.0
  %369 = vmatmul.mubr.f32.gmra.mxu0 %v287
  %v370 = vpop.f32.mrf.mxu0
  %v371 = vadd.f32 %v275, %v370
  %v372 = vpop.f32.mrf.mxu0
  %373 = vdwg.mxu0
  %v374 = vld [vmem:[%s7] sm:$0xff]
  %v375 = vld [vmem:[%s7 + $0x8] sm:$0xff]
  %v376 = vld [vmem:[%s7 + $0x10] sm:$0xff]
  %v377 = vld [vmem:[%s7 + $0x18] sm:$0xff]
  %379 = vset.pattern.permute.xlu0 0
  %380 = vperm.xlu0 %379, %v374
  %v381 = vpop.permute.xlu0 %380
  %384 = vset.pattern.permute.xlu0 0
  %385 = vperm.xlu0 %384, %v375
  %v386 = vpop.permute.xlu0 %385
  %389 = vset.pattern.permute.xlu0 0
  %390 = vperm.xlu0 %389, %v376
  %v391 = vpop.permute.xlu0 %390
  %394 = vset.pattern.permute.xlu0 0
  %395 = vperm.xlu0 %394, %v377
  %v396 = vpop.permute.xlu0 %395
  %v398 = vmul.f32 %v356, %v381
  %v399 = vmul.f32 %v361, %v386
  %v400 = vmul.f32 %v366, %v391
  %v401 = vmul.f32 %v371, %v396
  %v402 = vld [vmem:[%s8] sm:$0xff]
  %v403 = vld [vmem:[%s8 + $0x8] sm:$0xff]
  %v404 = vld [vmem:[%s8 + $0x10] sm:$0xff]
  %v405 = vld [vmem:[%s8 + $0x18] sm:$0xff]
  %407 = vset.pattern.permute.xlu0 0
  %408 = vperm.xlu0 %407, %v402
  %v409 = vpop.permute.xlu0 %408
  %412 = vset.pattern.permute.xlu0 0
  %413 = vperm.xlu0 %412, %v403
  %v414 = vpop.permute.xlu0 %413
  %417 = vset.pattern.permute.xlu0 0
  %418 = vperm.xlu0 %417, %v404
  %v419 = vpop.permute.xlu0 %418
  %422 = vset.pattern.permute.xlu0 0
  %423 = vperm.xlu0 %422, %v405
  %v424 = vpop.permute.xlu0 %423
  %v426 = vadd.f32 %v398, %v409
  %v427 = vadd.f32 %v399, %v414
  %v428 = vadd.f32 %v400, %v419
  %v429 = vadd.f32 %v401, %v424
  %v430 = vld [vmem:[%s9] sm:$0xff]
  %v431 = vld [vmem:[%s9 + $0x8] sm:$0xff]
  %v432 = vld [vmem:[%s9 + $0x10] sm:$0xff]
  %v433 = vld [vmem:[%s9 + $0x18] sm:$0xff]
  %v434 = vadd.f32 %v426, %v430
  %v435 = vadd.f32 %v427, %v431
  %v436 = vadd.f32 %v428, %v432
  %v437 = vadd.f32 %v429, %v433
  %v438 = vmax.f32 %v434, 0.0
  %v439 = vmax.f32 %v435, 0.0
  %v440 = vmax.f32 %v436, 0.0
  %v441 = vmax.f32 %v437, 0.0
  %442 = vst [vmem:[%s11] sm:$0xff] %v438
  %443 = vst [vmem:[%s11 + $0x8] sm:$0xff] %v439
  %444 = vst [vmem:[%s11 + $0x10] sm:$0xff] %v440
  %445 = vst [vmem:[%s11 + $0x18] sm:$0xff] %v441
  // Predicated region
  $region42: #{hrmodule_m2mrf_forward.7} parent=0 // pred_check
    _
  $region43: #{hrmodule_m2mrf_forward.7} parent=0 // pred_check_branch
    %447 = sbr.rel (0) target = $region45
  $region44: #{hrmodule_m2mrf_forward.7} parent=0 // pred_region
    _
  $region45: #{hrmodule_m2mrf_forward.7} parent=0 // pred_fallthru
    _
  // Predicated region
  $region46: #{hrmodule_m2mrf_forward.7} parent=0 // pred_check
    _
  $region47: #{hrmodule_m2mrf_forward.7} parent=0 // pred_check_branch
    %449 = sbr.rel (0) target = $region49
  $region48: #{hrmodule_m2mrf_forward.7} parent=0 // pred_region
    _
  $region49: #{hrmodule_m2mrf_forward.7} parent=0 // pred_fallthru
    _
  // Predicated region
  $region50: #{hrmodule_m2mrf_forward.7} parent=0 // pred_check
    _
  $region51: #{hrmodule_m2mrf_forward.7} parent=0 // pred_check_branch
    %451 = sbr.rel (0) target = $region53
  $region52: #{hrmodule_m2mrf_forward.7} parent=0 // pred_region
    _
  $region53: #{hrmodule_m2mrf_forward.7} parent=0 // pred_fallthru
    _
  // Predicated region
  $region54: #{hrmodule_m2mrf_forward.7} parent=0 // pred_check
    _
  $region55: #{hrmodule_m2mrf_forward.7} parent=0 // pred_check_branch
    %453 = sbr.rel (0) target = $region57
  $region56: #{hrmodule_m2mrf_forward.7} parent=0 // pred_region
    _
  $region57: #{hrmodule_m2mrf_forward.7} parent=0 // pred_fallthru
    _

</llo_original>
